<compile_context>
chip_gen: v7x
topology: tpu7x:2x2x1
jax: 0.10.0
libtpu: 0.0.40
codegen_flags: <defaults>
</compile_context>

<pallas_src>
import functools
import math

import jax
import jax.numpy as jnp
from jax.experimental import pallas as pl
from jax.experimental.pallas import tpu as pltpu

# ------------------------- synthetic small config -------------------------
B = 2              # batch
C = 3              # image channels
IMG = 16           # image spatial size
PATCH = 8          # patch size
D = 32             # encoder_embed_dim
NUM_HEADS = 4
HEAD_DIM = D // NUM_HEADS
FFN_DIM = 64
NUM_LAYERS = 2
NPATCH = (IMG // PATCH) ** 2
T = NPATCH + 1     # real tokens (patches + cls)
T_PAD = 8          # per-image token rows padded to a sublane multiple
BT = B * T_PAD     # rows of the fused token block
EPS_LN = 1e-5      # nn.LayerNorm default eps
EPS_NORM = 1e-12   # F.normalize default eps
NEG_INF = -1e9     # additive mask for padded key positions


# ------------------------------ kernel utils ------------------------------
def _layernorm(x, w, b):
    mu = jnp.mean(x, axis=-1, keepdims=True)
    var = jnp.mean((x - mu) ** 2, axis=-1, keepdims=True)
    return (x - mu) * jax.lax.rsqrt(var + EPS_LN) * w + b


# ------------------------------ fused kernel -------------------------------
def fused_forward_kernel(patches_ref, base_ref, pw_ref,
                         ln1w, ln1b, wqkv, bqkv, lniw, lnib, wo, bo,
                         ln2w, ln2b, w1, b1, lnfw, lnfb, w2, b2,
                         lnFw, lnFb, headw,
                         o_ref, tok_ref, attn_ref, *, with_head):
    layer = pl.program_id(0)

    # --- patch embed + cls + positional embedding (first grid step only) ---
    # patches_padded has zero rows for the CLS slot and the padding slots, so
    # one full-tile matmul + add writes the whole (BT, D) token block.
    @pl.when(layer == 0)
    def _embed():
        tok_ref[...] = (jnp.dot(patches_ref[...], pw_ref[...],
                                preferred_element_type=jnp.float32)
                        + base_ref[...])

    x = tok_ref[...]                                           # (BT, D) f32

    # ------------------------------ attention ------------------------------
    h = _layernorm(x, ln1w[0], ln1b[0])
    qkv = jnp.dot(h.astype(jnp.bfloat16), wqkv[0],
                  preferred_element_type=jnp.float32) + bqkv[0]  # (BT, 3D)
    q = qkv[:, 0:D] * (1.0 / math.sqrt(HEAD_DIM))   # scaling after bias (torchscale)
    k = qkv[:, D:2 * D]
    v = qkv[:, 2 * D:3 * D]
    q3 = q.reshape(B, T_PAD, D)
    k3 = k.reshape(B, T_PAD, D)
    v3 = v.reshape(B, T_PAD, D)

    # additive mask for padded key rows (positions >= T within each image block)
    key_pos = jax.lax.broadcasted_iota(jnp.int32, (B, T_PAD, T_PAD), 2)
    neg_bias = jnp.where(key_pos < T, 0.0, NEG_INF).astype(jnp.float32)

    dn_qk = (((2,), (2,)), ((0,), (0,)))            # bqd,bkd->bqk
    dn_pv = (((2,), (1,)), ((0,), (0,)))            # bqk,bkd->bqd
    for hh in range(NUM_HEADS):
        sl = slice(hh * HEAD_DIM, (hh + 1) * HEAD_DIM)
        s = jax.lax.dot_general(q3[:, :, sl], k3[:, :, sl], dn_qk,
                                preferred_element_type=jnp.float32) + neg_bias
        s = s - jnp.max(s, axis=-1, keepdims=True)
        p = jnp.exp(s)
        p = p * pl.reciprocal(jnp.sum(p, axis=-1, keepdims=True), approx=True)
        oh = jax.lax.dot_general(p, v3[:, :, sl], dn_pv,
                                 preferred_element_type=jnp.float32)
        attn_ref[:, sl] = oh.reshape(BT, HEAD_DIM)  # lane-dense (BT, D) assembly

    # sub-LN inner_attn_ln as a plain per-row LN, then ONE output projection
    # with the head reduction in the MXU K dimension.
    o = _layernorm(attn_ref[...], lniw[0], lnib[0])
    x = x + jnp.dot(o.astype(jnp.bfloat16), wo[0],
                    preferred_element_type=jnp.float32) + bo[0]

    # ----------------------------- feed-forward ----------------------------
    h2 = _layernorm(x, ln2w[0], ln2b[0])
    f = jnp.dot(h2.astype(jnp.bfloat16), w1[0],
                preferred_element_type=jnp.float32) + b1[0]
    # TODO(synk): PyTorch/torchscale uses exact erf GELU; tanh approximation
    # used here for Mosaic portability (the in-file reference matches it).
    f = jax.nn.gelu(f, approximate=True)
    f = _layernorm(f, lnfw[0], lnfb[0])                        # sub-LN ffn LN
    f = jnp.dot(f.astype(jnp.bfloat16), w2[0],
                preferred_element_type=jnp.float32) + b2[0]
    x = x + f

    tok_ref[...] = x                                           # carry to next layer

    # ---------- final LN, CLS rows only, optional head, L2 normalise --------
    @pl.when(layer == NUM_LAYERS - 1)
    def _head():
        for b in range(B):                     # B is tiny & static here; at real
            row = x[b * T_PAD:b * T_PAD + 1, :]  # scale this is one (B, D) slab
            c = _layernorm(row, lnFw[...], lnFb[...])
            if with_head:
                c = jnp.dot(c, headw[...], preferred_element_type=jnp.float32)
            ssq = jnp.sum(c * c, axis=-1, keepdims=True)
            o_ref[b:b + 1, :] = c * jax.lax.rsqrt(
                jnp.maximum(ssq, EPS_NORM * EPS_NORM))


# ------------------------------ JAX glue -----------------------------------
def extract_patches(img):
    """(B, C, H, W) NCHW -> (B, NPATCH, C*P*P), non-overlapping stride=P."""
    Bn, Cn, H, W = img.shape
    gh, gw = H // PATCH, W // PATCH
    x = img.reshape(Bn, Cn, gh, PATCH, gw, PATCH)
    x = x.transpose(0, 2, 4, 1, 3, 5)                          # (B, gh, gw, C, p, p)
    return x.reshape(Bn, gh * gw, Cn * PATCH * PATCH)


def _shared_spec(arr):
    nd = arr.ndim
    return pl.BlockSpec(tuple(arr.shape), lambda l, _nd=nd: (0,) * _nd)


def _layer_spec(arr):
    # per-layer stacked (L, r, c) weights: block the leading layer axis only
    return pl.BlockSpec((1,) + tuple(arr.shape[1:]), lambda l: (l, 0, 0))


def musk_vision_forward(image, params, with_head=False):
    """Equivalent of MUSK_vision_embedding_model.forward(image) defaults:
    with_head as given, out_norm=True, ms_aug=False."""
    patches = extract_patches(image)                            # (B, NPATCH, K)
    K = patches.shape[-1]
    pad = T_PAD - T

    # (BT, K) padded patch matrix: the CLS row and padding rows are zero so a
    # single patch-embed matmul leaves them untouched.
    patches_padded = jnp.concatenate(
        [jnp.zeros((B, 1, K), jnp.float32), patches,
         jnp.zeros((B, pad, K), jnp.float32)], axis=1).reshape(BT, K)

    # (BT, D) additive base: [cls+pos0 | patch_b+pos[1:T] | zeros] per image.
    base = jnp.concatenate(
        [params["cls"] + params["pos"][0:1],
         params["patch_b"] + params["pos"][1:T],
         jnp.zeros((pad, D), jnp.float32)], axis=0)             # (T_PAD, D)
    embed_base = jnp.broadcast_to(base[None], (B, T_PAD, D)).reshape(BT, D)

    # Fused QKV weight + bf16 streaming of the big per-layer matmul weights.
    wqkv = jnp.concatenate([params["wq"], params["wk"], params["wv"]],
                           axis=-1).astype(jnp.bfloat16)        # (L, D, 3D)
    bqkv = jnp.concatenate([params["bq"], params["bk"], params["bv"]], axis=-1)

    layer_args = [params["ln1_w"], params["ln1_b"], wqkv, bqkv,
                  params["lni_w"], params["lni_b"],
                  params["wo"].astype(jnp.bfloat16), params["bo"],
                  params["ln2_w"], params["ln2_b"],
                  params["w1"].astype(jnp.bfloat16), params["b1"],
                  params["lnf_w"], params["lnf_b"],
                  params["w2"].astype(jnp.bfloat16), params["b2"]]
    shared_tail = [params["ln_final_w"], params["ln_final_b"], params["head_w"]]

    inputs = [patches_padded, embed_base, params["patch_w"],
              *layer_args, *shared_tail]
    in_specs = ([_shared_spec(patches_padded),
                 _shared_spec(embed_base),
                 _shared_spec(params["patch_w"])]
                + [_layer_spec(a) for a in layer_args]
                + [_shared_spec(a) for a in shared_tail])

    flops = (2 * BT * K * D
             + NUM_LAYERS * (2 * BT * D * 3 * D
                             + 2 * B * NUM_HEADS * T_PAD * T_PAD * HEAD_DIM * 2
                             + 2 * BT * D * D
                             + 2 * BT * D * FFN_DIM * 2)
             + (2 * B * D * D if with_head else 0))
    transcendentals = NUM_LAYERS * (B * NUM_HEADS * T_PAD * T_PAD + BT * FFN_DIM)
    bytes_accessed = sum(int(a.size) * a.dtype.itemsize for a in inputs) + B * D * 4

    return pl.pallas_call(
        functools.partial(fused_forward_kernel, with_head=with_head),
        grid=(NUM_LAYERS,),
        in_specs=in_specs,
        out_specs=pl.BlockSpec((B, D), lambda l: (0, 0)),
        out_shape=jax.ShapeDtypeStruct((B, D), jnp.float32),
        scratch_shapes=[pltpu.VMEM((BT, D), jnp.float32),      # token carry
                        pltpu.VMEM((BT, D), jnp.float32)],     # attn-out assembly
        compiler_params=pltpu.CompilerParams(
            dimension_semantics=("arbitrary",),
            vmem_limit_bytes=32 * 1024 * 1024),
        cost_estimate=pl.CostEstimate(flops=int(flops),
                                      transcendentals=int(transcendentals),
                                      bytes_accessed=int(bytes_accessed)),
    )(*inputs)


# --------------------------- deterministic params --------------------------
def init_params(key):
    keys = iter(jax.random.split(key, 40))

    def nrm(shape, std=0.02):
        return jax.random.normal(next(keys), shape, jnp.float32) * std

    K = C * PATCH * PATCH
    L = NUM_LAYERS
    p = {}
    conv_w = nrm((D, C, PATCH, PATCH))                  # Conv2d weight (D, C, p, p)
    p["patch_w"] = conv_w.reshape(D, K).T               # (K, D)
    p["patch_b"] = nrm((1, D))
    p["cls"] = nrm((1, D))
    p["pos"] = nrm((T, D))

    p["ln1_w"] = 1.0 + nrm((L, 1, D)); p["ln1_b"] = nrm((L, 1, D))
    p["wq"] = nrm((L, D, D)); p["bq"] = nrm((L, 1, D))
    p["wk"] = nrm((L, D, D)); p["bk"] = nrm((L, 1, D))
    p["wv"] = nrm((L, D, D)); p["bv"] = nrm((L, 1, D))
    p["lni_w"] = 1.0 + nrm((L, 1, D)); p["lni_b"] = nrm((L, 1, D))
    p["wo"] = nrm((L, D, D)); p["bo"] = nrm((L, 1, D))
    p["ln2_w"] = 1.0 + nrm((L, 1, D)); p["ln2_b"] = nrm((L, 1, D))
    p["w1"] = nrm((L, D, FFN_DIM)); p["b1"] = nrm((L, 1, FFN_DIM))
    p["lnf_w"] = 1.0 + nrm((L, 1, FFN_DIM)); p["lnf_b"] = nrm((L, 1, FFN_DIM))
    p["w2"] = nrm((L, FFN_DIM, D)); p["b2"] = nrm((L, 1, D))

    p["ln_final_w"] = 1.0 + nrm((1, D)); p["ln_final_b"] = nrm((1, D))
    p["head_w"] = nrm((D, D))                            # vision_head.weight^T (in, out)
    p["logit_scale"] = jnp.array(math.log(1.0 / 0.07), jnp.float32)  # unused in fwd
    return p


# --------------------------- pure-JAX reference -----------------------------
def reference_forward(image, params, with_head=False):
    """Pure-JAX reference of the module forward.  The heavy matmuls use the
    same bf16 operands / f32 accumulation as the kernel's intentional bf16
    weight streaming, so the comparison isolates kernel correctness."""
    HP = jax.lax.Precision.HIGHEST
    bf = jnp.bfloat16

    def ln(v, w, b):
        mu = jnp.mean(v, axis=-1, keepdims=True)
        var = jnp.mean((v - mu) ** 2, axis=-1, keepdims=True)
        return (v - mu) * jax.lax.rsqrt(var + EPS_LN) * w + b

    def mm(sub, a, w):
        return jnp.einsum(sub, a.astype(bf), w.astype(bf),
                          preferred_element_type=jnp.float32)

    patches = extract_patches(image)
    x = jnp.einsum("bnk,kd->bnd", patches, params["patch_w"],
                   precision=HP) + params["patch_b"]
    cls = jnp.broadcast_to(params["cls"][None], (image.shape[0], 1, D))
    tok = jnp.concatenate([cls, x], axis=1) + params["pos"][None]

    for li in range(NUM_LAYERS):
        h = ln(tok, params["ln1_w"][li], params["ln1_b"][li])
        q = (mm("btd,de->bte", h, params["wq"][li]) + params["bq"][li]) \
            * (1.0 / math.sqrt(HEAD_DIM))
        k = mm("btd,de->bte", h, params["wk"][li]) + params["bk"][li]
        v = mm("btd,de->bte", h, params["wv"][li]) + params["bv"][li]
        q = q.reshape(B, T, NUM_HEADS, HEAD_DIM)
        k = k.reshape(B, T, NUM_HEADS, HEAD_DIM)
        v = v.reshape(B, T, NUM_HEADS, HEAD_DIM)
        s = jnp.einsum("bihd,bjhd->bhij", q, k, precision=HP)
        pr = jax.nn.softmax(s, axis=-1)
        o = jnp.einsum("bhij,bjhd->bihd", pr, v, precision=HP).reshape(B, T, D)
        o = ln(o, params["lni_w"][li], params["lni_b"][li])
        x1 = tok + mm("btd,de->bte", o, params["wo"][li]) + params["bo"][li]
        h2 = ln(x1, params["ln2_w"][li], params["ln2_b"][li])
        f = mm("btd,df->btf", h2, params["w1"][li]) + params["b1"][li]
        f = jax.nn.gelu(f, approximate=True)
        f = ln(f, params["lnf_w"][li], params["lnf_b"][li])
        f = mm("btf,fd->btd", f, params["w2"][li]) + params["b2"][li]
        tok = x1 + f

    c = ln(tok[:, 0, :], params["ln_final_w"], params["ln_final_b"])
    if with_head:
        c = jnp.einsum("bd,de->be", c, params["head_w"], precision=HP)
    n = jnp.sqrt(jnp.sum(c * c, axis=-1, keepdims=True))
    return c / jnp.maximum(n, EPS_NORM)


# ---------------------------------- main -----------------------------------
if __name__ == "__main__":
    key = jax.random.PRNGKey(0)
    kp, kx = jax.random.split(key)
    params = init_params(kp)
    image = jax.random.normal(kx, (B, C, IMG, IMG), jnp.float32)

    vision_cls = musk_vision_forward(image, params, with_head=False)
    vision_cls = jax.block_until_ready(vision_cls)

    assert vision_cls.shape == (B, D)
    assert bool(jnp.all(jnp.isfinite(vision_cls)))

    ref = reference_forward(image, params, with_head=False)
    max_err = float(jnp.max(jnp.abs(vision_cls - ref)))
    assert max_err < 2e-2, f"mismatch vs reference: {max_err}"
    print("KERNEL_OK")
</pallas_src>

<mosaic_0001>
module attributes {stable_mosaic.version = 11 : i64} {
  func.func @fused_forward_kernel(%arg0: i32, %arg1: memref<16x192xf32, #tpu.memory_space<vmem>>, %arg2: memref<16x32xf32, #tpu.memory_space<vmem>>, %arg3: memref<192x32xf32, #tpu.memory_space<vmem>>, %arg4: memref<1x1x32xf32, #tpu.memory_space<vmem>>, %arg5: memref<1x1x32xf32, #tpu.memory_space<vmem>>, %arg6: memref<1x32x96xbf16, #tpu.memory_space<vmem>>, %arg7: memref<1x1x96xf32, #tpu.memory_space<vmem>>, %arg8: memref<1x1x32xf32, #tpu.memory_space<vmem>>, %arg9: memref<1x1x32xf32, #tpu.memory_space<vmem>>, %arg10: memref<1x32x32xbf16, #tpu.memory_space<vmem>>, %arg11: memref<1x1x32xf32, #tpu.memory_space<vmem>>, %arg12: memref<1x1x32xf32, #tpu.memory_space<vmem>>, %arg13: memref<1x1x32xf32, #tpu.memory_space<vmem>>, %arg14: memref<1x32x64xbf16, #tpu.memory_space<vmem>>, %arg15: memref<1x1x64xf32, #tpu.memory_space<vmem>>, %arg16: memref<1x1x64xf32, #tpu.memory_space<vmem>>, %arg17: memref<1x1x64xf32, #tpu.memory_space<vmem>>, %arg18: memref<1x64x32xbf16, #tpu.memory_space<vmem>>, %arg19: memref<1x1x32xf32, #tpu.memory_space<vmem>>, %arg20: memref<1x32xf32, #tpu.memory_space<vmem>>, %arg21: memref<1x32xf32, #tpu.memory_space<vmem>>, %arg22: memref<32x32xf32, #tpu.memory_space<vmem>>, %arg23: memref<2x32xf32, #tpu.memory_space<vmem>>, %arg24: memref<16x32xf32, #tpu.memory_space<vmem>>, %arg25: memref<16x32xf32, #tpu.memory_space<vmem>>) attributes {dimension_semantics = [#tpu.dimension_semantics<arbitrary>], iteration_bounds = array<i64: 2>, scalar_prefetch = 0 : i64, scratch_operands = 2 : i64, tpu.core_type = #tpu.core_type<tc>, window_params = [{pipeline_mode = #tpu.pipeline_mode<synchronous>, transform_indices = @transform_0, window_bounds = array<i64: 16, 192>}, {pipeline_mode = #tpu.pipeline_mode<synchronous>, transform_indices = @transform_1, window_bounds = array<i64: 16, 32>}, {pipeline_mode = #tpu.pipeline_mode<synchronous>, transform_indices = @transform_2, window_bounds = array<i64: 192, 32>}, {transform_indices = @transform_3, window_bounds = array<i64: 1, 1, 32>}, {transform_indices = @transform_4, window_bounds = array<i64: 1, 1, 32>}, {transform_indices = @transform_5, window_bounds = array<i64: 1, 32, 96>}, {transform_indices = @transform_6, window_bounds = array<i64: 1, 1, 96>}, {transform_indices = @transform_7, window_bounds = array<i64: 1, 1, 32>}, {transform_indices = @transform_8, window_bounds = array<i64: 1, 1, 32>}, {transform_indices = @transform_9, window_bounds = array<i64: 1, 32, 32>}, {transform_indices = @transform_10, window_bounds = array<i64: 1, 1, 32>}, {transform_indices = @transform_11, window_bounds = array<i64: 1, 1, 32>}, {transform_indices = @transform_12, window_bounds = array<i64: 1, 1, 32>}, {transform_indices = @transform_13, window_bounds = array<i64: 1, 32, 64>}, {transform_indices = @transform_14, window_bounds = array<i64: 1, 1, 64>}, {transform_indices = @transform_15, window_bounds = array<i64: 1, 1, 64>}, {transform_indices = @transform_16, window_bounds = array<i64: 1, 1, 64>}, {transform_indices = @transform_17, window_bounds = array<i64: 1, 64, 32>}, {transform_indices = @transform_18, window_bounds = array<i64: 1, 1, 32>}, {pipeline_mode = #tpu.pipeline_mode<synchronous>, transform_indices = @transform_19, window_bounds = array<i64: 1, 32>}, {pipeline_mode = #tpu.pipeline_mode<synchronous>, transform_indices = @transform_20, window_bounds = array<i64: 1, 32>}, {pipeline_mode = #tpu.pipeline_mode<synchronous>, transform_indices = @transform_21, window_bounds = array<i64: 32, 32>}, {pipeline_mode = #tpu.pipeline_mode<synchronous>, transform_indices = @transform_22, window_bounds = array<i64: 2, 32>}]} {
    %c0_i32 = arith.constant 0 : i32
    %0 = arith.cmpi eq, %arg0, %c0_i32 : i32
    %1 = arith.extui %0 : i1 to i32
    %c0_i32_0 = arith.constant 0 : i32
    %2 = arith.cmpi ne, %1, %c0_i32_0 : i32
    scf.if %2 {
      %c0_106 = arith.constant 0 : index
      %c0_107 = arith.constant 0 : index
      %246 = vector.load %arg1[%c0_106, %c0_107] : memref<16x192xf32, #tpu.memory_space<vmem>>, vector<16x192xf32>
      %c0_108 = arith.constant 0 : index
      %c0_109 = arith.constant 0 : index
      %247 = vector.load %arg3[%c0_108, %c0_109] : memref<192x32xf32, #tpu.memory_space<vmem>>, vector<192x32xf32>
      %cst_110 = arith.constant dense<0.000000e+00> : vector<16x32xf32>
      %248 = tpu.matmul %246, %247, %cst_110 {dimension_numbers = #tpu.dot_dimension_numbers<[1], [0], [0], [1], [0, 0, 1, 1], [], []>} : vector<16x192xf32>, vector<192x32xf32>, vector<16x32xf32> -> vector<16x32xf32>
      %c0_111 = arith.constant 0 : index
      %c0_112 = arith.constant 0 : index
      %249 = vector.load %arg2[%c0_111, %c0_112] : memref<16x32xf32, #tpu.memory_space<vmem>>, vector<16x32xf32>
      %250 = arith.addf %248, %249 : vector<16x32xf32>
      %c0_113 = arith.constant 0 : index
      %c0_114 = arith.constant 0 : index
      %251 = vector.load %arg24[%c0_113, %c0_114] : memref<16x32xf32, #tpu.memory_space<vmem>>, vector<16x32xf32>
      tpu.vector_store %arg24[%c0_113, %c0_114], %250 {strides = array<i32>} : memref<16x32xf32, #tpu.memory_space<vmem>>, vector<16x32xf32>,
    } else {
    }
    %c0 = arith.constant 0 : index
    %c0_1 = arith.constant 0 : index
    %3 = vector.load %arg24[%c0, %c0_1] : memref<16x32xf32, #tpu.memory_space<vmem>>, vector<16x32xf32>
    %c0_2 = arith.constant 0 : index
    %c0_3 = arith.constant 0 : index
    %c0_4 = arith.constant 0 : index
    %4 = vector.load %arg4[%c0_2, %c0_3, %c0_4] : memref<1x1x32xf32, #tpu.memory_space<vmem>>, vector<1x1x32xf32>
    %5 = vector.shape_cast %4 : vector<1x1x32xf32> to vector<1x32xf32>
    %c0_5 = arith.constant 0 : index
    %c0_6 = arith.constant 0 : index
    %c0_7 = arith.constant 0 : index
    %6 = vector.load %arg5[%c0_5, %c0_6, %c0_7] : memref<1x1x32xf32, #tpu.memory_space<vmem>>, vector<1x1x32xf32>
    %7 = vector.shape_cast %6 : vector<1x1x32xf32> to vector<1x32xf32>
    %cst = arith.constant dense<0.000000e+00> : vector<16xf32>
    %8 = vector.multi_reduction <add>, %3, %cst [1] : vector<16x32xf32> to vector<16xf32>
    %9 = vector.shape_cast %8 : vector<16xf32> to vector<16x1xf32>
    %cst_8 = arith.constant 3.200000e+01 : f32
    %10 = vector.broadcast %cst_8 : f32 to vector<16x1xf32>
    %11 = arith.divf %9, %10 : vector<16x1xf32>
    %12 = vector.broadcast %11 : vector<16x1xf32> to vector<16x32xf32>
    %13 = arith.subf %3, %12 : vector<16x32xf32>
    %14 = arith.mulf %13, %13 : vector<16x32xf32>
    %cst_9 = arith.constant dense<0.000000e+00> : vector<16xf32>
    %15 = vector.multi_reduction <add>, %14, %cst_9 [1] : vector<16x32xf32> to vector<16xf32>
    %16 = vector.shape_cast %15 : vector<16xf32> to vector<16x1xf32>
    %cst_10 = arith.constant 3.200000e+01 : f32
    %17 = vector.broadcast %cst_10 : f32 to vector<16x1xf32>
    %18 = arith.divf %16, %17 : vector<16x1xf32>
    %19 = vector.broadcast %11 : vector<16x1xf32> to vector<16x32xf32>
    %20 = arith.subf %3, %19 : vector<16x32xf32>
    %cst_11 = arith.constant 9.99999974E-6 : f32
    %21 = vector.broadcast %cst_11 : f32 to vector<16x1xf32>
    %22 = arith.addf %18, %21 : vector<16x1xf32>
    %23 = math.rsqrt %22 : vector<16x1xf32>
    %24 = vector.broadcast %23 : vector<16x1xf32> to vector<16x32xf32>
    %25 = arith.mulf %20, %24 : vector<16x32xf32>
    %26 = vector.broadcast %5 : vector<1x32xf32> to vector<16x32xf32>
    %27 = arith.mulf %25, %26 : vector<16x32xf32>
    %28 = vector.broadcast %7 : vector<1x32xf32> to vector<16x32xf32>
    %29 = arith.addf %27, %28 : vector<16x32xf32>
    %30 = arith.truncf %29 : vector<16x32xf32> to vector<16x32xbf16>
    %c0_12 = arith.constant 0 : index
    %c0_13 = arith.constant 0 : index
    %c0_14 = arith.constant 0 : index
    %31 = vector.load %arg6[%c0_12, %c0_13, %c0_14] : memref<1x32x96xbf16, #tpu.memory_space<vmem>>, vector<1x32x96xbf16>
    %32 = vector.shape_cast %31 : vector<1x32x96xbf16> to vector<32x96xbf16>
    %cst_15 = arith.constant dense<0.000000e+00> : vector<16x96xf32>
    %33 = tpu.matmul %30, %32, %cst_15 {dimension_numbers = #tpu.dot_dimension_numbers<[1], [0], [0], [1], [0, 0, 1, 1], [], []>} : vector<16x32xbf16>, vector<32x96xbf16>, vector<16x96xf32> -> vector<16x96xf32>
    %c0_16 = arith.constant 0 : index
    %c0_17 = arith.constant 0 : index
    %c0_18 = arith.constant 0 : index
    %34 = vector.load %arg7[%c0_16, %c0_17, %c0_18] : memref<1x1x96xf32, #tpu.memory_space<vmem>>, vector<1x1x96xf32>
    %35 = vector.shape_cast %34 : vector<1x1x96xf32> to vector<1x96xf32>
    %36 = vector.broadcast %35 : vector<1x96xf32> to vector<16x96xf32>
    %37 = arith.addf %33, %36 : vector<16x96xf32>
    %38 = vector.extract_strided_slice %37 {offsets = [0, 0], sizes = [16, 32], strides = [1, 1]} : vector<16x96xf32> to vector<16x32xf32>
    %cst_19 = arith.constant 0.353553385 : f32
    %39 = vector.broadcast %cst_19 : f32 to vector<16x32xf32>
    %40 = arith.mulf %38, %39 : vector<16x32xf32>
    %41 = vector.extract_strided_slice %37 {offsets = [0, 32], sizes = [16, 32], strides = [1, 1]} : vector<16x96xf32> to vector<16x32xf32>
    %42 = vector.extract_strided_slice %37 {offsets = [0, 64], sizes = [16, 32], strides = [1, 1]} : vector<16x96xf32> to vector<16x32xf32>
    %43 = vector.shape_cast %40 : vector<16x32xf32> to vector<2x8x32xf32>
    %44 = vector.shape_cast %41 : vector<16x32xf32> to vector<2x8x32xf32>
    %45 = vector.shape_cast %42 : vector<16x32xf32> to vector<2x8x32xf32>
    %46 = tpu.iota {dimensions = array<i32: 2>} : vector<2x8x8xi32>
    %c5_i32 = arith.constant 5 : i32
    %47 = vector.broadcast %c5_i32 : i32 to vector<2x8x8xi32>
    %48 = arith.cmpi slt, %46, %47 : vector<2x8x8xi32>
    %cst_20 = arith.constant 0.000000e+00 : f32
    %cst_21 = arith.constant -1.000000e+09 : f32
    %49 = vector.broadcast %cst_20 : f32 to vector<2x8x8xf32>
    %50 = vector.broadcast %cst_21 : f32 to vector<2x8x8xf32>
    %51 = arith.select %48, %49, %50 : vector<2x8x8xi1>, vector<2x8x8xf32>
    %52 = vector.extract_strided_slice %43 {offsets = [0, 0, 0], sizes = [2, 8, 8], strides = [1, 1, 1]} : vector<2x8x32xf32> to vector<2x8x8xf32>
    %53 = vector.extract_strided_slice %44 {offsets = [0, 0, 0], sizes = [2, 8, 8], strides = [1, 1, 1]} : vector<2x8x32xf32> to vector<2x8x8xf32>
    %cst_22 = arith.constant dense<0.000000e+00> : vector<2x8x8xf32>
    %54 = tpu.matmul %52, %53, %cst_22 {dimension_numbers = #tpu.dot_dimension_numbers<[2], [2], [1], [1], [0, 0, 0, 1, 1, 1], [0], [0]>} : vector<2x8x8xf32>, vector<2x8x8xf32>, vector<2x8x8xf32> -> vector<2x8x8xf32>
    %55 = arith.addf %54, %51 : vector<2x8x8xf32>
    %cst_23 = arith.constant dense<0xFF800000> : vector<2x8xf32>
    %56 = vector.multi_reduction <maximumf>, %55, %cst_23 [2] : vector<2x8x8xf32> to vector<2x8xf32>
    %57 = vector.shape_cast %56 : vector<2x8xf32> to vector<2x8x1xf32>
    %58 = vector.broadcast %57 : vector<2x8x1xf32> to vector<2x8x8xf32>
    %59 = arith.subf %55, %58 : vector<2x8x8xf32>
    %60 = math.exp %59 : vector<2x8x8xf32>
    %cst_24 = arith.constant dense<0.000000e+00> : vector<2x8xf32>
    %61 = vector.multi_reduction <add>, %60, %cst_24 [2] : vector<2x8x8xf32> to vector<2x8xf32>
    %62 = vector.shape_cast %61 : vector<2x8xf32> to vector<2x8x1xf32>
    %63 = tpu.reciprocal %62 {approx = true} : vector<2x8x1xf32> -> vector<2x8x1xf32>
    %64 = vector.broadcast %63 : vector<2x8x1xf32> to vector<2x8x8xf32>
    %65 = arith.mulf %60, %64 : vector<2x8x8xf32>
    %66 = vector.extract_strided_slice %45 {offsets = [0, 0, 0], sizes = [2, 8, 8], strides = [1, 1, 1]} : vector<2x8x32xf32> to vector<2x8x8xf32>
    %cst_25 = arith.constant dense<0.000000e+00> : vector<2x8x8xf32>
    %67 = tpu.matmul %65, %66, %cst_25 {dimension_numbers = #tpu.dot_dimension_numbers<[2], [1], [1], [2], [0, 0, 0, 1, 1, 2], [0], [0]>} : vector<2x8x8xf32>, vector<2x8x8xf32>, vector<2x8x8xf32> -> vector<2x8x8xf32>
    %68 = vector.shape_cast %67 : vector<2x8x8xf32> to vector<16x8xf32>
    %c0_26 = arith.constant 0 : index
    %c0_27 = arith.constant 0 : index
    %69 = vector.load %arg25[%c0_26, %c0_27] : memref<16x32xf32, #tpu.memory_space<vmem>>, vector<16x8xf32>
    tpu.vector_store %arg25[%c0_26, %c0_27], %68 {strides = array<i32>} : memref<16x32xf32, #tpu.memory_space<vmem>>, vector<16x8xf32>,
    %70 = vector.extract_strided_slice %43 {offsets = [0, 0, 8], sizes = [2, 8, 8], strides = [1, 1, 1]} : vector<2x8x32xf32> to vector<2x8x8xf32>
    %71 = vector.extract_strided_slice %44 {offsets = [0, 0, 8], sizes = [2, 8, 8], strides = [1, 1, 1]} : vector<2x8x32xf32> to vector<2x8x8xf32>
    %cst_28 = arith.constant dense<0.000000e+00> : vector<2x8x8xf32>
    %72 = tpu.matmul %70, %71, %cst_28 {dimension_numbers = #tpu.dot_dimension_numbers<[2], [2], [1], [1], [0, 0, 0, 1, 1, 1], [0], [0]>} : vector<2x8x8xf32>, vector<2x8x8xf32>, vector<2x8x8xf32> -> vector<2x8x8xf32>
    %73 = arith.addf %72, %51 : vector<2x8x8xf32>
    %cst_29 = arith.constant dense<0xFF800000> : vector<2x8xf32>
    %74 = vector.multi_reduction <maximumf>, %73, %cst_29 [2] : vector<2x8x8xf32> to vector<2x8xf32>
    %75 = vector.shape_cast %74 : vector<2x8xf32> to vector<2x8x1xf32>
    %76 = vector.broadcast %75 : vector<2x8x1xf32> to vector<2x8x8xf32>
    %77 = arith.subf %73, %76 : vector<2x8x8xf32>
    %78 = math.exp %77 : vector<2x8x8xf32>
    %cst_30 = arith.constant dense<0.000000e+00> : vector<2x8xf32>
    %79 = vector.multi_reduction <add>, %78, %cst_30 [2] : vector<2x8x8xf32> to vector<2x8xf32>
    %80 = vector.shape_cast %79 : vector<2x8xf32> to vector<2x8x1xf32>
    %81 = tpu.reciprocal %80 {approx = true} : vector<2x8x1xf32> -> vector<2x8x1xf32>
    %82 = vector.broadcast %81 : vector<2x8x1xf32> to vector<2x8x8xf32>
    %83 = arith.mulf %78, %82 : vector<2x8x8xf32>
    %84 = vector.extract_strided_slice %45 {offsets = [0, 0, 8], sizes = [2, 8, 8], strides = [1, 1, 1]} : vector<2x8x32xf32> to vector<2x8x8xf32>
    %cst_31 = arith.constant dense<0.000000e+00> : vector<2x8x8xf32>
    %85 = tpu.matmul %83, %84, %cst_31 {dimension_numbers = #tpu.dot_dimension_numbers<[2], [1], [1], [2], [0, 0, 0, 1, 1, 2], [0], [0]>} : vector<2x8x8xf32>, vector<2x8x8xf32>, vector<2x8x8xf32> -> vector<2x8x8xf32>
    %86 = vector.shape_cast %85 : vector<2x8x8xf32> to vector<16x8xf32>
    %c0_32 = arith.constant 0 : index
    %c8 = arith.constant 8 : index
    %87 = vector.load %arg25[%c0_32, %c8] : memref<16x32xf32, #tpu.memory_space<vmem>>, vector<16x8xf32>
    tpu.vector_store %arg25[%c0_32, %c8], %86 {strides = array<i32>} : memref<16x32xf32, #tpu.memory_space<vmem>>, vector<16x8xf32>,
    %88 = vector.extract_strided_slice %43 {offsets = [0, 0, 16], sizes = [2, 8, 8], strides = [1, 1, 1]} : vector<2x8x32xf32> to vector<2x8x8xf32>
    %89 = vector.extract_strided_slice %44 {offsets = [0, 0, 16], sizes = [2, 8, 8], strides = [1, 1, 1]} : vector<2x8x32xf32> to vector<2x8x8xf32>
    %cst_33 = arith.constant dense<0.000000e+00> : vector<2x8x8xf32>
    %90 = tpu.matmul %88, %89, %cst_33 {dimension_numbers = #tpu.dot_dimension_numbers<[2], [2], [1], [1], [0, 0, 0, 1, 1, 1], [0], [0]>} : vector<2x8x8xf32>, vector<2x8x8xf32>, vector<2x8x8xf32> -> vector<2x8x8xf32>
    %91 = arith.addf %90, %51 : vector<2x8x8xf32>
    %cst_34 = arith.constant dense<0xFF800000> : vector<2x8xf32>
    %92 = vector.multi_reduction <maximumf>, %91, %cst_34 [2] : vector<2x8x8xf32> to vector<2x8xf32>
    %93 = vector.shape_cast %92 : vector<2x8xf32> to vector<2x8x1xf32>
    %94 = vector.broadcast %93 : vector<2x8x1xf32> to vector<2x8x8xf32>
    %95 = arith.subf %91, %94 : vector<2x8x8xf32>
    %96 = math.exp %95 : vector<2x8x8xf32>
    %cst_35 = arith.constant dense<0.000000e+00> : vector<2x8xf32>
    %97 = vector.multi_reduction <add>, %96, %cst_35 [2] : vector<2x8x8xf32> to vector<2x8xf32>
    %98 = vector.shape_cast %97 : vector<2x8xf32> to vector<2x8x1xf32>
    %99 = tpu.reciprocal %98 {approx = true} : vector<2x8x1xf32> -> vector<2x8x1xf32>
    %100 = vector.broadcast %99 : vector<2x8x1xf32> to vector<2x8x8xf32>
    %101 = arith.mulf %96, %100 : vector<2x8x8xf32>
    %102 = vector.extract_strided_slice %45 {offsets = [0, 0, 16], sizes = [2, 8, 8], strides = [1, 1, 1]} : vector<2x8x32xf32> to vector<2x8x8xf32>
    %cst_36 = arith.constant dense<0.000000e+00> : vector<2x8x8xf32>
    %103 = tpu.matmul %101, %102, %cst_36 {dimension_numbers = #tpu.dot_dimension_numbers<[2], [1], [1], [2], [0, 0, 0, 1, 1, 2], [0], [0]>} : vector<2x8x8xf32>, vector<2x8x8xf32>, vector<2x8x8xf32> -> vector<2x8x8xf32>
    %104 = vector.shape_cast %103 : vector<2x8x8xf32> to vector<16x8xf32>
    %c0_37 = arith.constant 0 : index
    %c16 = arith.constant 16 : index
    %105 = vector.load %arg25[%c0_37, %c16] : memref<16x32xf32, #tpu.memory_space<vmem>>, vector<16x8xf32>
    tpu.vector_store %arg25[%c0_37, %c16], %104 {strides = array<i32>} : memref<16x32xf32, #tpu.memory_space<vmem>>, vector<16x8xf32>,
    %106 = vector.extract_strided_slice %43 {offsets = [0, 0, 24], sizes = [2, 8, 8], strides = [1, 1, 1]} : vector<2x8x32xf32> to vector<2x8x8xf32>
    %107 = vector.extract_strided_slice %44 {offsets = [0, 0, 24], sizes = [2, 8, 8], strides = [1, 1, 1]} : vector<2x8x32xf32> to vector<2x8x8xf32>
    %cst_38 = arith.constant dense<0.000000e+00> : vector<2x8x8xf32>
    %108 = tpu.matmul %106, %107, %cst_38 {dimension_numbers = #tpu.dot_dimension_numbers<[2], [2], [1], [1], [0, 0, 0, 1, 1, 1], [0], [0]>} : vector<2x8x8xf32>, vector<2x8x8xf32>, vector<2x8x8xf32> -> vector<2x8x8xf32>
    %109 = arith.addf %108, %51 : vector<2x8x8xf32>
    %cst_39 = arith.constant dense<0xFF800000> : vector<2x8xf32>
    %110 = vector.multi_reduction <maximumf>, %109, %cst_39 [2] : vector<2x8x8xf32> to vector<2x8xf32>
    %111 = vector.shape_cast %110 : vector<2x8xf32> to vector<2x8x1xf32>
    %112 = vector.broadcast %111 : vector<2x8x1xf32> to vector<2x8x8xf32>
    %113 = arith.subf %109, %112 : vector<2x8x8xf32>
    %114 = math.exp %113 : vector<2x8x8xf32>
    %cst_40 = arith.constant dense<0.000000e+00> : vector<2x8xf32>
    %115 = vector.multi_reduction <add>, %114, %cst_40 [2] : vector<2x8x8xf32> to vector<2x8xf32>
    %116 = vector.shape_cast %115 : vector<2x8xf32> to vector<2x8x1xf32>
    %117 = tpu.reciprocal %116 {approx = true} : vector<2x8x1xf32> -> vector<2x8x1xf32>
    %118 = vector.broadcast %117 : vector<2x8x1xf32> to vector<2x8x8xf32>
    %119 = arith.mulf %114, %118 : vector<2x8x8xf32>
    %120 = vector.extract_strided_slice %45 {offsets = [0, 0, 24], sizes = [2, 8, 8], strides = [1, 1, 1]} : vector<2x8x32xf32> to vector<2x8x8xf32>
    %cst_41 = arith.constant dense<0.000000e+00> : vector<2x8x8xf32>
    %121 = tpu.matmul %119, %120, %cst_41 {dimension_numbers = #tpu.dot_dimension_numbers<[2], [1], [1], [2], [0, 0, 0, 1, 1, 2], [0], [0]>} : vector<2x8x8xf32>, vector<2x8x8xf32>, vector<2x8x8xf32> -> vector<2x8x8xf32>
    %122 = vector.shape_cast %121 : vector<2x8x8xf32> to vector<16x8xf32>
    %c0_42 = arith.constant 0 : index
    %c24 = arith.constant 24 : index
    %123 = vector.load %arg25[%c0_42, %c24] : memref<16x32xf32, #tpu.memory_space<vmem>>, vector<16x8xf32>
    tpu.vector_store %arg25[%c0_42, %c24], %122 {strides = array<i32>} : memref<16x32xf32, #tpu.memory_space<vmem>>, vector<16x8xf32>,
    %c0_43 = arith.constant 0 : index
    %c0_44 = arith.constant 0 : index
    %124 = vector.load %arg25[%c0_43, %c0_44] : memref<16x32xf32, #tpu.memory_space<vmem>>, vector<16x32xf32>
    %c0_45 = arith.constant 0 : index
    %c0_46 = arith.constant 0 : index
    %c0_47 = arith.constant 0 : index
    %125 = vector.load %arg8[%c0_45, %c0_46, %c0_47] : memref<1x1x32xf32, #tpu.memory_space<vmem>>, vector<1x1x32xf32>
    %126 = vector.shape_cast %125 : vector<1x1x32xf32> to vector<1x32xf32>
    %c0_48 = arith.constant 0 : index
    %c0_49 = arith.constant 0 : index
    %c0_50 = arith.constant 0 : index
    %127 = vector.load %arg9[%c0_48, %c0_49, %c0_50] : memref<1x1x32xf32, #tpu.memory_space<vmem>>, vector<1x1x32xf32>
    %128 = vector.shape_cast %127 : vector<1x1x32xf32> to vector<1x32xf32>
    %cst_51 = arith.constant dense<0.000000e+00> : vector<16xf32>
    %129 = vector.multi_reduction <add>, %124, %cst_51 [1] : vector<16x32xf32> to vector<16xf32>
    %130 = vector.shape_cast %129 : vector<16xf32> to vector<16x1xf32>
    %cst_52 = arith.constant 3.200000e+01 : f32
    %131 = vector.broadcast %cst_52 : f32 to vector<16x1xf32>
    %132 = arith.divf %130, %131 : vector<16x1xf32>
    %133 = vector.broadcast %132 : vector<16x1xf32> to vector<16x32xf32>
    %134 = arith.subf %124, %133 : vector<16x32xf32>
    %135 = arith.mulf %134, %134 : vector<16x32xf32>
    %cst_53 = arith.constant dense<0.000000e+00> : vector<16xf32>
    %136 = vector.multi_reduction <add>, %135, %cst_53 [1] : vector<16x32xf32> to vector<16xf32>
    %137 = vector.shape_cast %136 : vector<16xf32> to vector<16x1xf32>
    %cst_54 = arith.constant 3.200000e+01 : f32
    %138 = vector.broadcast %cst_54 : f32 to vector<16x1xf32>
    %139 = arith.divf %137, %138 : vector<16x1xf32>
    %140 = vector.broadcast %132 : vector<16x1xf32> to vector<16x32xf32>
    %141 = arith.subf %124, %140 : vector<16x32xf32>
    %cst_55 = arith.constant 9.99999974E-6 : f32
    %142 = vector.broadcast %cst_55 : f32 to vector<16x1xf32>
    %143 = arith.addf %139, %142 : vector<16x1xf32>
    %144 = math.rsqrt %143 : vector<16x1xf32>
    %145 = vector.broadcast %144 : vector<16x1xf32> to vector<16x32xf32>
    %146 = arith.mulf %141, %145 : vector<16x32xf32>
    %147 = vector.broadcast %126 : vector<1x32xf32> to vector<16x32xf32>
    %148 = arith.mulf %146, %147 : vector<16x32xf32>
    %149 = vector.broadcast %128 : vector<1x32xf32> to vector<16x32xf32>
    %150 = arith.addf %148, %149 : vector<16x32xf32>
    %151 = arith.truncf %150 : vector<16x32xf32> to vector<16x32xbf16>
    %c0_56 = arith.constant 0 : index
    %c0_57 = arith.constant 0 : index
    %c0_58 = arith.constant 0 : index
    %152 = vector.load %arg10[%c0_56, %c0_57, %c0_58] : memref<1x32x32xbf16, #tpu.memory_space<vmem>>, vector<1x32x32xbf16>
    %153 = vector.shape_cast %152 : vector<1x32x32xbf16> to vector<32x32xbf16>
    %cst_59 = arith.constant dense<0.000000e+00> : vector<16x32xf32>
    %154 = tpu.matmul %151, %153, %cst_59 {dimension_numbers = #tpu.dot_dimension_numbers<[1], [0], [0], [1], [0, 0, 1, 1], [], []>} : vector<16x32xbf16>, vector<32x32xbf16>, vector<16x32xf32> -> vector<16x32xf32>
    %155 = arith.addf %3, %154 : vector<16x32xf32>
    %c0_60 = arith.constant 0 : index
    %c0_61 = arith.constant 0 : index
    %c0_62 = arith.constant 0 : index
    %156 = vector.load %arg11[%c0_60, %c0_61, %c0_62] : memref<1x1x32xf32, #tpu.memory_space<vmem>>, vector<1x1x32xf32>
    %157 = vector.shape_cast %156 : vector<1x1x32xf32> to vector<1x32xf32>
    %158 = vector.broadcast %157 : vector<1x32xf32> to vector<16x32xf32>
    %159 = arith.addf %155, %158 : vector<16x32xf32>
    %c0_63 = arith.constant 0 : index
    %c0_64 = arith.constant 0 : index
    %c0_65 = arith.constant 0 : index
    %160 = vector.load %arg12[%c0_63, %c0_64, %c0_65] : memref<1x1x32xf32, #tpu.memory_space<vmem>>, vector<1x1x32xf32>
    %161 = vector.shape_cast %160 : vector<1x1x32xf32> to vector<1x32xf32>
    %c0_66 = arith.constant 0 : index
    %c0_67 = arith.constant 0 : index
    %c0_68 = arith.constant 0 : index
    %162 = vector.load %arg13[%c0_66, %c0_67, %c0_68] : memref<1x1x32xf32, #tpu.memory_space<vmem>>, vector<1x1x32xf32>
    %163 = vector.shape_cast %162 : vector<1x1x32xf32> to vector<1x32xf32>
    %cst_69 = arith.constant dense<0.000000e+00> : vector<16xf32>
    %164 = vector.multi_reduction <add>, %159, %cst_69 [1] : vector<16x32xf32> to vector<16xf32>
    %165 = vector.shape_cast %164 : vector<16xf32> to vector<16x1xf32>
    %cst_70 = arith.constant 3.200000e+01 : f32
    %166 = vector.broadcast %cst_70 : f32 to vector<16x1xf32>
    %167 = arith.divf %165, %166 : vector<16x1xf32>
    %168 = vector.broadcast %167 : vector<16x1xf32> to vector<16x32xf32>
    %169 = arith.subf %159, %168 : vector<16x32xf32>
    %170 = arith.mulf %169, %169 : vector<16x32xf32>
    %cst_71 = arith.constant dense<0.000000e+00> : vector<16xf32>
    %171 = vector.multi_reduction <add>, %170, %cst_71 [1] : vector<16x32xf32> to vector<16xf32>
    %172 = vector.shape_cast %171 : vector<16xf32> to vector<16x1xf32>
    %cst_72 = arith.constant 3.200000e+01 : f32
    %173 = vector.broadcast %cst_72 : f32 to vector<16x1xf32>
    %174 = arith.divf %172, %173 : vector<16x1xf32>
    %175 = vector.broadcast %167 : vector<16x1xf32> to vector<16x32xf32>
    %176 = arith.subf %159, %175 : vector<16x32xf32>
    %cst_73 = arith.constant 9.99999974E-6 : f32
    %177 = vector.broadcast %cst_73 : f32 to vector<16x1xf32>
    %178 = arith.addf %174, %177 : vector<16x1xf32>
    %179 = math.rsqrt %178 : vector<16x1xf32>
    %180 = vector.broadcast %179 : vector<16x1xf32> to vector<16x32xf32>
    %181 = arith.mulf %176, %180 : vector<16x32xf32>
    %182 = vector.broadcast %161 : vector<1x32xf32> to vector<16x32xf32>
    %183 = arith.mulf %181, %182 : vector<16x32xf32>
    %184 = vector.broadcast %163 : vector<1x32xf32> to vector<16x32xf32>
    %185 = arith.addf %183, %184 : vector<16x32xf32>
    %186 = arith.truncf %185 : vector<16x32xf32> to vector<16x32xbf16>
    %c0_74 = arith.constant 0 : index
    %c0_75 = arith.constant 0 : index
    %c0_76 = arith.constant 0 : index
    %187 = vector.load %arg14[%c0_74, %c0_75, %c0_76] : memref<1x32x64xbf16, #tpu.memory_space<vmem>>, vector<1x32x64xbf16>
    %188 = vector.shape_cast %187 : vector<1x32x64xbf16> to vector<32x64xbf16>
    %cst_77 = arith.constant dense<0.000000e+00> : vector<16x64xf32>
    %189 = tpu.matmul %186, %188, %cst_77 {dimension_numbers = #tpu.dot_dimension_numbers<[1], [0], [0], [1], [0, 0, 1, 1], [], []>} : vector<16x32xbf16>, vector<32x64xbf16>, vector<16x64xf32> -> vector<16x64xf32>
    %c0_78 = arith.constant 0 : index
    %c0_79 = arith.constant 0 : index
    %c0_80 = arith.constant 0 : index
    %190 = vector.load %arg15[%c0_78, %c0_79, %c0_80] : memref<1x1x64xf32, #tpu.memory_space<vmem>>, vector<1x1x64xf32>
    %191 = vector.shape_cast %190 : vector<1x1x64xf32> to vector<1x64xf32>
    %192 = vector.broadcast %191 : vector<1x64xf32> to vector<16x64xf32>
    %193 = arith.addf %189, %192 : vector<16x64xf32>
    %194 = arith.mulf %193, %193 : vector<16x64xf32>
    %195 = arith.mulf %193, %194 : vector<16x64xf32>
    %cst_81 = arith.constant 4.471500e-02 : f32
    %196 = vector.broadcast %cst_81 : f32 to vector<16x64xf32>
    %197 = arith.mulf %196, %195 : vector<16x64xf32>
    %198 = arith.addf %193, %197 : vector<16x64xf32>
    %cst_82 = arith.constant 0.797884583 : f32
    %199 = vector.broadcast %cst_82 : f32 to vector<16x64xf32>
    %200 = arith.mulf %199, %198 : vector<16x64xf32>
    %201 = math.tanh %200 : vector<16x64xf32>
    %cst_83 = arith.constant 1.000000e+00 : f32
    %202 = vector.broadcast %cst_83 : f32 to vector<16x64xf32>
    %203 = arith.addf %202, %201 : vector<16x64xf32>
    %cst_84 = arith.constant 5.000000e-01 : f32
    %204 = vector.broadcast %cst_84 : f32 to vector<16x64xf32>
    %205 = arith.mulf %204, %203 : vector<16x64xf32>
    %206 = arith.mulf %193, %205 : vector<16x64xf32>
    %c0_85 = arith.constant 0 : index
    %c0_86 = arith.constant 0 : index
    %c0_87 = arith.constant 0 : index
    %207 = vector.load %arg16[%c0_85, %c0_86, %c0_87] : memref<1x1x64xf32, #tpu.memory_space<vmem>>, vector<1x1x64xf32>
    %208 = vector.shape_cast %207 : vector<1x1x64xf32> to vector<1x64xf32>
    %c0_88 = arith.constant 0 : index
    %c0_89 = arith.constant 0 : index
    %c0_90 = arith.constant 0 : index
    %209 = vector.load %arg17[%c0_88, %c0_89, %c0_90] : memref<1x1x64xf32, #tpu.memory_space<vmem>>, vector<1x1x64xf32>
    %210 = vector.shape_cast %209 : vector<1x1x64xf32> to vector<1x64xf32>
    %cst_91 = arith.constant dense<0.000000e+00> : vector<16xf32>
    %211 = vector.multi_reduction <add>, %206, %cst_91 [1] : vector<16x64xf32> to vector<16xf32>
    %212 = vector.shape_cast %211 : vector<16xf32> to vector<16x1xf32>
    %cst_92 = arith.constant 6.400000e+01 : f32
    %213 = vector.broadcast %cst_92 : f32 to vector<16x1xf32>
    %214 = arith.divf %212, %213 : vector<16x1xf32>
    %215 = vector.broadcast %214 : vector<16x1xf32> to vector<16x64xf32>
    %216 = arith.subf %206, %215 : vector<16x64xf32>
    %217 = arith.mulf %216, %216 : vector<16x64xf32>
    %cst_93 = arith.constant dense<0.000000e+00> : vector<16xf32>
    %218 = vector.multi_reduction <add>, %217, %cst_93 [1] : vector<16x64xf32> to vector<16xf32>
    %219 = vector.shape_cast %218 : vector<16xf32> to vector<16x1xf32>
    %cst_94 = arith.constant 6.400000e+01 : f32
    %220 = vector.broadcast %cst_94 : f32 to vector<16x1xf32>
    %221 = arith.divf %219, %220 : vector<16x1xf32>
    %222 = vector.broadcast %214 : vector<16x1xf32> to vector<16x64xf32>
    %223 = arith.subf %206, %222 : vector<16x64xf32>
    %cst_95 = arith.constant 9.99999974E-6 : f32
    %224 = vector.broadcast %cst_95 : f32 to vector<16x1xf32>
    %225 = arith.addf %221, %224 : vector<16x1xf32>
    %226 = math.rsqrt %225 : vector<16x1xf32>
    %227 = vector.broadcast %226 : vector<16x1xf32> to vector<16x64xf32>
    %228 = arith.mulf %223, %227 : vector<16x64xf32>
    %229 = vector.broadcast %208 : vector<1x64xf32> to vector<16x64xf32>
    %230 = arith.mulf %228, %229 : vector<16x64xf32>
    %231 = vector.broadcast %210 : vector<1x64xf32> to vector<16x64xf32>
    %232 = arith.addf %230, %231 : vector<16x64xf32>
    %233 = arith.truncf %232 : vector<16x64xf32> to vector<16x64xbf16>
    %c0_96 = arith.constant 0 : index
    %c0_97 = arith.constant 0 : index
    %c0_98 = arith.constant 0 : index
    %234 = vector.load %arg18[%c0_96, %c0_97, %c0_98] : memref<1x64x32xbf16, #tpu.memory_space<vmem>>, vector<1x64x32xbf16>
    %235 = vector.shape_cast %234 : vector<1x64x32xbf16> to vector<64x32xbf16>
    %cst_99 = arith.constant dense<0.000000e+00> : vector<16x32xf32>
    %236 = tpu.matmul %233, %235, %cst_99 {dimension_numbers = #tpu.dot_dimension_numbers<[1], [0], [0], [1], [0, 0, 1, 1], [], []>} : vector<16x64xbf16>, vector<64x32xbf16>, vector<16x32xf32> -> vector<16x32xf32>
    %c0_100 = arith.constant 0 : index
    %c0_101 = arith.constant 0 : index
    %c0_102 = arith.constant 0 : index
    %237 = vector.load %arg19[%c0_100, %c0_101, %c0_102] : memref<1x1x32xf32, #tpu.memory_space<vmem>>, vector<1x1x32xf32>
    %238 = vector.shape_cast %237 : vector<1x1x32xf32> to vector<1x32xf32>
    %239 = vector.broadcast %238 : vector<1x32xf32> to vector<16x32xf32>
    %240 = arith.addf %236, %239 : vector<16x32xf32>
    %241 = arith.addf %159, %240 : vector<16x32xf32>
    %c0_103 = arith.constant 0 : index
    %c0_104 = arith.constant 0 : index
    %242 = vector.load %arg24[%c0_103, %c0_104] : memref<16x32xf32, #tpu.memory_space<vmem>>, vector<16x32xf32>
    tpu.vector_store %arg24[%c0_103, %c0_104], %241 {strides = array<i32>} : memref<16x32xf32, #tpu.memory_space<vmem>>, vector<16x32xf32>,
    %c1_i32 = arith.constant 1 : i32
    %243 = arith.cmpi eq, %arg0, %c1_i32 : i32
    %244 = arith.extui %243 : i1 to i32
    %c0_i32_105 = arith.constant 0 : i32
    %245 = arith.cmpi ne, %244, %c0_i32_105 : i32
    scf.if %245 {
      %246 = vector.extract_strided_slice %241 {offsets = [0, 0], sizes = [1, 32], strides = [1, 1]} : vector<16x32xf32> to vector<1x32xf32>
      %c0_106 = arith.constant 0 : index
      %c0_107 = arith.constant 0 : index
      %247 = vector.load %arg20[%c0_106, %c0_107] : memref<1x32xf32, #tpu.memory_space<vmem>>, vector<1x32xf32>
      %c0_108 = arith.constant 0 : index
      %c0_109 = arith.constant 0 : index
      %248 = vector.load %arg21[%c0_108, %c0_109] : memref<1x32xf32, #tpu.memory_space<vmem>>, vector<1x32xf32>
      %cst_110 = arith.constant dense<0.000000e+00> : vector<1xf32>
      %249 = vector.multi_reduction <add>, %246, %cst_110 [1] : vector<1x32xf32> to vector<1xf32>
      %250 = vector.shape_cast %249 : vector<1xf32> to vector<1x1xf32>
      %cst_111 = arith.constant 3.200000e+01 : f32
      %251 = vector.broadcast %cst_111 : f32 to vector<1x1xf32>
      %252 = arith.divf %250, %251 : vector<1x1xf32>
      %253 = vector.broadcast %252 : vector<1x1xf32> to vector<1x32xf32>
      %254 = arith.subf %246, %253 : vector<1x32xf32>
      %255 = arith.mulf %254, %254 : vector<1x32xf32>
      %cst_112 = arith.constant dense<0.000000e+00> : vector<1xf32>
      %256 = vector.multi_reduction <add>, %255, %cst_112 [1] : vector<1x32xf32> to vector<1xf32>
      %257 = vector.shape_cast %256 : vector<1xf32> to vector<1x1xf32>
      %cst_113 = arith.constant 3.200000e+01 : f32
      %258 = vector.broadcast %cst_113 : f32 to vector<1x1xf32>
      %259 = arith.divf %257, %258 : vector<1x1xf32>
      %260 = vector.broadcast %252 : vector<1x1xf32> to vector<1x32xf32>
      %261 = arith.subf %246, %260 : vector<1x32xf32>
      %cst_114 = arith.constant 9.99999974E-6 : f32
      %262 = vector.broadcast %cst_114 : f32 to vector<1x1xf32>
      %263 = arith.addf %259, %262 : vector<1x1xf32>
      %264 = math.rsqrt %263 : vector<1x1xf32>
      %265 = vector.broadcast %264 : vector<1x1xf32> to vector<1x32xf32>
      %266 = arith.mulf %261, %265 : vector<1x32xf32>
      %267 = arith.mulf %266, %247 : vector<1x32xf32>
      %268 = arith.addf %267, %248 : vector<1x32xf32>
      %269 = arith.mulf %268, %268 : vector<1x32xf32>
      %cst_115 = arith.constant dense<0.000000e+00> : vector<1xf32>
      %270 = vector.multi_reduction <add>, %269, %cst_115 [1] : vector<1x32xf32> to vector<1xf32>
      %271 = vector.shape_cast %270 : vector<1xf32> to vector<1x1xf32>
      %cst_116 = arith.constant 1.000000e-24 : f32
      %272 = vector.broadcast %cst_116 : f32 to vector<1x1xf32>
      %273 = arith.maximumf %271, %272 : vector<1x1xf32>
      %274 = math.rsqrt %273 : vector<1x1xf32>
      %275 = vector.broadcast %274 : vector<1x1xf32> to vector<1x32xf32>
      %276 = arith.mulf %268, %275 : vector<1x32xf32>
      %c0_117 = arith.constant 0 : index
      %c0_118 = arith.constant 0 : index
      %277 = vector.load %arg23[%c0_117, %c0_118] : memref<2x32xf32, #tpu.memory_space<vmem>>, vector<1x32xf32>
      tpu.vector_store %arg23[%c0_117, %c0_118], %276 {strides = array<i32>} : memref<2x32xf32, #tpu.memory_space<vmem>>, vector<1x32xf32>,
      %278 = vector.extract_strided_slice %241 {offsets = [8, 0], sizes = [1, 32], strides = [1, 1]} : vector<16x32xf32> to vector<1x32xf32>
      %c0_119 = arith.constant 0 : index
      %c0_120 = arith.constant 0 : index
      %279 = vector.load %arg20[%c0_119, %c0_120] : memref<1x32xf32, #tpu.memory_space<vmem>>, vector<1x32xf32>
      %c0_121 = arith.constant 0 : index
      %c0_122 = arith.constant 0 : index
      %280 = vector.load %arg21[%c0_121, %c0_122] : memref<1x32xf32, #tpu.memory_space<vmem>>, vector<1x32xf32>
      %cst_123 = arith.constant dense<0.000000e+00> : vector<1xf32>
      %281 = vector.multi_reduction <add>, %278, %cst_123 [1] : vector<1x32xf32> to vector<1xf32>
      %282 = vector.shape_cast %281 : vector<1xf32> to vector<1x1xf32>
      %cst_124 = arith.constant 3.200000e+01 : f32
      %283 = vector.broadcast %cst_124 : f32 to vector<1x1xf32>
      %284 = arith.divf %282, %283 : vector<1x1xf32>
      %285 = vector.broadcast %284 : vector<1x1xf32> to vector<1x32xf32>
      %286 = arith.subf %278, %285 : vector<1x32xf32>
      %287 = arith.mulf %286, %286 : vector<1x32xf32>
      %cst_125 = arith.constant dense<0.000000e+00> : vector<1xf32>
      %288 = vector.multi_reduction <add>, %287, %cst_125 [1] : vector<1x32xf32> to vector<1xf32>
      %289 = vector.shape_cast %288 : vector<1xf32> to vector<1x1xf32>
      %cst_126 = arith.constant 3.200000e+01 : f32
      %290 = vector.broadcast %cst_126 : f32 to vector<1x1xf32>
      %291 = arith.divf %289, %290 : vector<1x1xf32>
      %292 = vector.broadcast %284 : vector<1x1xf32> to vector<1x32xf32>
      %293 = arith.subf %278, %292 : vector<1x32xf32>
      %cst_127 = arith.constant 9.99999974E-6 : f32
      %294 = vector.broadcast %cst_127 : f32 to vector<1x1xf32>
      %295 = arith.addf %291, %294 : vector<1x1xf32>
      %296 = math.rsqrt %295 : vector<1x1xf32>
      %297 = vector.broadcast %296 : vector<1x1xf32> to vector<1x32xf32>
      %298 = arith.mulf %293, %297 : vector<1x32xf32>
      %299 = arith.mulf %298, %279 : vector<1x32xf32>
      %300 = arith.addf %299, %280 : vector<1x32xf32>
      %301 = arith.mulf %300, %300 : vector<1x32xf32>
      %cst_128 = arith.constant dense<0.000000e+00> : vector<1xf32>
      %302 = vector.multi_reduction <add>, %301, %cst_128 [1] : vector<1x32xf32> to vector<1xf32>
      %303 = vector.shape_cast %302 : vector<1xf32> to vector<1x1xf32>
      %cst_129 = arith.constant 1.000000e-24 : f32
      %304 = vector.broadcast %cst_129 : f32 to vector<1x1xf32>
      %305 = arith.maximumf %303, %304 : vector<1x1xf32>
      %306 = math.rsqrt %305 : vector<1x1xf32>
      %307 = vector.broadcast %306 : vector<1x1xf32> to vector<1x32xf32>
      %308 = arith.mulf %300, %307 : vector<1x32xf32>
      %c1 = arith.constant 1 : index
      %c0_130 = arith.constant 0 : index
      %309 = vector.load %arg23[%c1, %c0_130] : memref<2x32xf32, #tpu.memory_space<vmem>>, vector<1x32xf32>
      tpu.vector_store %arg23[%c1, %c0_130], %308 {strides = array<i32>} : memref<2x32xf32, #tpu.memory_space<vmem>>, vector<1x32xf32>,
    } else {
    }
    return
  }
  func.func @transform_0(%arg0: i32) -> (i32, i32) {
    %c0_i32 = arith.constant 0 : i32
    %c0_i32_0 = arith.constant 0 : i32
    %c0_i32_1 = arith.constant 0 : i32
    return %c0_i32, %c0_i32_0 : i32, i32
  }
  func.func @transform_1(%arg0: i32) -> (i32, i32) {
    %c0_i32 = arith.constant 0 : i32
    %c0_i32_0 = arith.constant 0 : i32
    %c0_i32_1 = arith.constant 0 : i32
    return %c0_i32, %c0_i32_0 : i32, i32
  }
  func.func @transform_2(%arg0: i32) -> (i32, i32) {
    %c0_i32 = arith.constant 0 : i32
    %c0_i32_0 = arith.constant 0 : i32
    %c0_i32_1 = arith.constant 0 : i32
    return %c0_i32, %c0_i32_0 : i32, i32
  }
  func.func @transform_3(%arg0: i32) -> (i32, i32, i32) {
    %c0_i32 = arith.constant 0 : i32
    %c0_i32_0 = arith.constant 0 : i32
    %c0_i32_1 = arith.constant 0 : i32
    return %arg0, %c0_i32, %c0_i32_0 : i32, i32, i32
  }
  func.func @transform_4(%arg0: i32) -> (i32, i32, i32) {
    %c0_i32 = arith.constant 0 : i32
    %c0_i32_0 = arith.constant 0 : i32
    %c0_i32_1 = arith.constant 0 : i32
    return %arg0, %c0_i32, %c0_i32_0 : i32, i32, i32
  }
  func.func @transform_5(%arg0: i32) -> (i32, i32, i32) {
    %c0_i32 = arith.constant 0 : i32
    %c0_i32_0 = arith.constant 0 : i32
    %c0_i32_1 = arith.constant 0 : i32
    return %arg0, %c0_i32, %c0_i32_0 : i32, i32, i32
  }
  func.func @transform_6(%arg0: i32) -> (i32, i32, i32) {
    %c0_i32 = arith.constant 0 : i32
    %c0_i32_0 = arith.constant 0 : i32
    %c0_i32_1 = arith.constant 0 : i32
    return %arg0, %c0_i32, %c0_i32_0 : i32, i32, i32
  }
  func.func @transform_7(%arg0: i32) -> (i32, i32, i32) {
    %c0_i32 = arith.constant 0 : i32
    %c0_i32_0 = arith.constant 0 : i32
    %c0_i32_1 = arith.constant 0 : i32
    return %arg0, %c0_i32, %c0_i32_0 : i32, i32, i32
  }
  func.func @transform_8(%arg0: i32) -> (i32, i32, i32) {
    %c0_i32 = arith.constant 0 : i32
    %c0_i32_0 = arith.constant 0 : i32
    %c0_i32_1 = arith.constant 0 : i32
    return %arg0, %c0_i32, %c0_i32_0 : i32, i32, i32
  }
  func.func @transform_9(%arg0: i32) -> (i32, i32, i32) {
    %c0_i32 = arith.constant 0 : i32
    %c0_i32_0 = arith.constant 0 : i32
    %c0_i32_1 = arith.constant 0 : i32
    return %arg0, %c0_i32, %c0_i32_0 : i32, i32, i32
  }
  func.func @transform_10(%arg0: i32) -> (i32, i32, i32) {
    %c0_i32 = arith.constant 0 : i32
    %c0_i32_0 = arith.constant 0 : i32
    %c0_i32_1 = arith.constant 0 : i32
    return %arg0, %c0_i32, %c0_i32_0 : i32, i32, i32
  }
  func.func @transform_11(%arg0: i32) -> (i32, i32, i32) {
    %c0_i32 = arith.constant 0 : i32
    %c0_i32_0 = arith.constant 0 : i32
    %c0_i32_1 = arith.constant 0 : i32
    return %arg0, %c0_i32, %c0_i32_0 : i32, i32, i32
  }
  func.func @transform_12(%arg0: i32) -> (i32, i32, i32) {
    %c0_i32 = arith.constant 0 : i32
    %c0_i32_0 = arith.constant 0 : i32
    %c0_i32_1 = arith.constant 0 : i32
    return %arg0, %c0_i32, %c0_i32_0 : i32, i32, i32
  }
  func.func @transform_13(%arg0: i32) -> (i32, i32, i32) {
    %c0_i32 = arith.constant 0 : i32
    %c0_i32_0 = arith.constant 0 : i32
    %c0_i32_1 = arith.constant 0 : i32
    return %arg0, %c0_i32, %c0_i32_0 : i32, i32, i32
  }
  func.func @transform_14(%arg0: i32) -> (i32, i32, i32) {
    %c0_i32 = arith.constant 0 : i32
    %c0_i32_0 = arith.constant 0 : i32
    %c0_i32_1 = arith.constant 0 : i32
    return %arg0, %c0_i32, %c0_i32_0 : i32, i32, i32
  }
  func.func @transform_15(%arg0: i32) -> (i32, i32, i32) {
    %c0_i32 = arith.constant 0 : i32
    %c0_i32_0 = arith.constant 0 : i32
    %c0_i32_1 = arith.constant 0 : i32
    return %arg0, %c0_i32, %c0_i32_0 : i32, i32, i32
  }
  func.func @transform_16(%arg0: i32) -> (i32, i32, i32) {
    %c0_i32 = arith.constant 0 : i32
    %c0_i32_0 = arith.constant 0 : i32
    %c0_i32_1 = arith.constant 0 : i32
    return %arg0, %c0_i32, %c0_i32_0 : i32, i32, i32
  }
  func.func @transform_17(%arg0: i32) -> (i32, i32, i32) {
    %c0_i32 = arith.constant 0 : i32
    %c0_i32_0 = arith.constant 0 : i32
    %c0_i32_1 = arith.constant 0 : i32
    return %arg0, %c0_i32, %c0_i32_0 : i32, i32, i32
  }
  func.func @transform_18(%arg0: i32) -> (i32, i32, i32) {
    %c0_i32 = arith.constant 0 : i32
    %c0_i32_0 = arith.constant 0 : i32
    %c0_i32_1 = arith.constant 0 : i32
    return %arg0, %c0_i32, %c0_i32_0 : i32, i32, i32
  }
  func.func @transform_19(%arg0: i32) -> (i32, i32) {
    %c0_i32 = arith.constant 0 : i32
    %c0_i32_0 = arith.constant 0 : i32
    %c0_i32_1 = arith.constant 0 : i32
    return %c0_i32, %c0_i32_0 : i32, i32
  }
  func.func @transform_20(%arg0: i32) -> (i32, i32) {
    %c0_i32 = arith.constant 0 : i32
    %c0_i32_0 = arith.constant 0 : i32
    %c0_i32_1 = arith.constant 0 : i32
    return %c0_i32, %c0_i32_0 : i32, i32
  }
  func.func @transform_21(%arg0: i32) -> (i32, i32) {
    %c0_i32 = arith.constant 0 : i32
    %c0_i32_0 = arith.constant 0 : i32
    %c0_i32_1 = arith.constant 0 : i32
    return %c0_i32, %c0_i32_0 : i32, i32
  }
  func.func @transform_22(%arg0: i32) -> (i32, i32) {
    %c0_i32 = arith.constant 0 : i32
    %c0_i32_0 = arith.constant 0 : i32
    %c0_i32_1 = arith.constant 0 : i32
    return %c0_i32, %c0_i32_0 : i32, i32
  }
}

</mosaic_0001>

<llo_original>
// kernel: tpu_custom_call.1
$region0: #{tpu_custom_call.1}
  #allocation0 [shape = 'u32[]', space=smem, size = 0x4, offset = 0x4, fixed_abs, tag = 'smem constant byte address 0x4 - core index']
  #allocation1 [shape = 'u32[144,128]{1,0:T(1,128)}', space=vmem, size = 0x12000, scoped, tag = 'internal scratch']
  #allocation2 [shape = 'f32[16,32]{1,0:T(8,128)}', space=vmem, size = 0x2000, scoped, tag = 'scratch operand']
  #allocation3 [shape = 'f32[16,32]{1,0:T(8,128)}', space=vmem, size = 0x2000, scoped, tag = 'scratch operand']
  %s0 = inlined_call_operand.vmem [shape: f32[16,192], index: 0, kind: input, shape index: {}]
  %s1 = inlined_call_operand.vmem [shape: f32[16,32], index: 1, kind: input, shape index: {}]
  %s2 = inlined_call_operand.vmem [shape: f32[192,32], index: 2, kind: input, shape index: {}]
  %s3 = inlined_call_operand.vmem [shape: f32[2,1,32], index: 3, kind: input, shape index: {}]
  %s4 = inlined_call_operand.vmem [shape: f32[2,1,32], index: 4, kind: input, shape index: {}]
  %s5 = inlined_call_operand.vmem [shape: bf16[2,32,96], index: 5, kind: input, shape index: {}]
  %s6 = inlined_call_operand.vmem [shape: f32[2,1,96], index: 6, kind: input, shape index: {}]
  %s7 = inlined_call_operand.vmem [shape: f32[2,1,32], index: 7, kind: input, shape index: {}]
  %s8 = inlined_call_operand.vmem [shape: f32[2,1,32], index: 8, kind: input, shape index: {}]
  %s9 = inlined_call_operand.vmem [shape: bf16[2,32,32], index: 9, kind: input, shape index: {}]
  %s10 = inlined_call_operand.vmem [shape: f32[2,1,32], index: 10, kind: input, shape index: {}]
  %s11 = inlined_call_operand.vmem [shape: f32[2,1,32], index: 11, kind: input, shape index: {}]
  %s12 = inlined_call_operand.vmem [shape: f32[2,1,32], index: 12, kind: input, shape index: {}]
  %s13 = inlined_call_operand.vmem [shape: bf16[2,32,64], index: 13, kind: input, shape index: {}]
  %s14 = inlined_call_operand.vmem [shape: f32[2,1,64], index: 14, kind: input, shape index: {}]
  %s15 = inlined_call_operand.vmem [shape: f32[2,1,64], index: 15, kind: input, shape index: {}]
  %s16 = inlined_call_operand.vmem [shape: f32[2,1,64], index: 16, kind: input, shape index: {}]
  %s17 = inlined_call_operand.vmem [shape: bf16[2,64,32], index: 17, kind: input, shape index: {}]
  %s18 = inlined_call_operand.vmem [shape: f32[2,1,32], index: 18, kind: input, shape index: {}]
  %s19 = inlined_call_operand.vmem [shape: f32[1,32], index: 19, kind: input, shape index: {}]
  %s20 = inlined_call_operand.vmem [shape: f32[1,32], index: 20, kind: input, shape index: {}]
  %s21 = inlined_call_operand.vmem [shape: f32[32,32], index: 21, kind: input, shape index: {}]
  %s22 = inlined_call_operand.hbm [shape: f32[2,32], index: 22, kind: output, shape index: {}]
  %s23 = sld [smem:[#allocation0]]
  $region129: #{tpu_custom_call.1} parent=0
    _
  %s25 = ssub.s32 1, %s23
  %s26 = scalar_select 0, %s25, %s23
  $region1: #{tpu_custom_call.1} parent=0
    #allocation4 [shape = 'u8[1024]{0}', space=vmem, size = 0x400, scoped, tag = 'output window, operand 0, single buffered']
    #allocation5 [shape = 's32[2]{0}', space=sflag, size = 0x8, scoped, tag = 'scoped memory for tpu_custom_call.1']
    %27 = vsyncpa [#allocation5], 0
    loop: start=0, step=1, limit=4
    $region2: #{tpu_custom_call.1} parent=1 // loop_pre_header
      _
    $region3: #{tpu_custom_call.1} parent=1 // loop_header
      %s29 = sphi 0, %s33
      %p30 = scmp.ge.s32.totalorder %s29, 4
      %s37 = sphi 0, %s37
      %s39 = sphi 0, %s37
      %s40 = sphi 0, %s39
      %s54 = sphi 0, %s40
      %s58 = sphi 0, %s58
      %s60 = sphi 0, %s58
      %s61 = sphi 0, %s60
      %s75 = sphi 0, %s61
      %s79 = sphi 0, %s79
      %s81 = sphi 0, %s79
      %s82 = sphi 0, %s81
      %s96 = sphi 0, %s82
      %s102 = sphi 0, %s104
      %s105 = sphi 0, %s102
      %s106 = sphi 0, %s105
      %s122 = sphi 0, %s106
      %s128 = sphi 0, %s130
      %s131 = sphi 0, %s128
      %s132 = sphi 0, %s131
      %s148 = sphi 0, %s132
      %s154 = sphi 0, %s156
      %s157 = sphi 0, %s154
      %s158 = sphi 0, %s157
      %s174 = sphi 0, %s158
      %s180 = sphi 0, %s182
      %s183 = sphi 0, %s180
      %s184 = sphi 0, %s183
      %s200 = sphi 0, %s184
      %s206 = sphi 0, %s208
      %s209 = sphi 0, %s206
      %s210 = sphi 0, %s209
      %s226 = sphi 0, %s210
      %s232 = sphi 0, %s234
      %s235 = sphi 0, %s232
      %s236 = sphi 0, %s235
      %s252 = sphi 0, %s236
      %s258 = sphi 0, %s260
      %s261 = sphi 0, %s258
      %s262 = sphi 0, %s261
      %s278 = sphi 0, %s262
      %s284 = sphi 0, %s286
      %s287 = sphi 0, %s284
      %s288 = sphi 0, %s287
      %s304 = sphi 0, %s288
      %s310 = sphi 0, %s312
      %s313 = sphi 0, %s310
      %s314 = sphi 0, %s313
      %s330 = sphi 0, %s314
      %s336 = sphi 0, %s338
      %s339 = sphi 0, %s336
      %s340 = sphi 0, %s339
      %s356 = sphi 0, %s340
      %s362 = sphi 0, %s364
      %s365 = sphi 0, %s362
      %s366 = sphi 0, %s365
      %s382 = sphi 0, %s366
      %s388 = sphi 0, %s390
      %s391 = sphi 0, %s388
      %s392 = sphi 0, %s391
      %s408 = sphi 0, %s392
      %s414 = sphi 0, %s416
      %s417 = sphi 0, %s414
      %s418 = sphi 0, %s417
      %s434 = sphi 0, %s418
      %s440 = sphi 0, %s442
      %s443 = sphi 0, %s440
      %s444 = sphi 0, %s443
      %s460 = sphi 0, %s444
      %s466 = sphi 0, %s468
      %s469 = sphi 0, %s466
      %s470 = sphi 0, %s469
      %s486 = sphi 0, %s470
      %s492 = sphi 0, %s494
      %s495 = sphi 0, %s492
      %s496 = sphi 0, %s495
      %s512 = sphi 0, %s496
      %s516 = sphi 0, %s516
      %s518 = sphi 0, %s516
      %s519 = sphi 0, %s518
      %s533 = sphi 0, %s519
      %s537 = sphi 0, %s537
      %s539 = sphi 0, %s537
      %s540 = sphi 0, %s539
      %s554 = sphi 0, %s540
      %s558 = sphi 0, %s558
      %s560 = sphi 0, %s558
      %s561 = sphi 0, %s560
      %s575 = sphi 0, %s561
      %s579 = sphi 0, %s579
      %s581 = sphi 0, %s579
      %s582 = sphi 0, %s581
      %s596 = sphi 0, %s582
    $region4: #{tpu_custom_call.1} parent=1 // loop_header_branch
      %32 = sbr.rel (%p30) target = $region8
    $region5: #{tpu_custom_call.1} parent=1 // loop_body
      %s34 = ssub.s32 %s29, 1
      %s35 = ssub.s32 %s29, 2
      %s36 = sadd.s32 %s29, 1
      %s38 = sadd.s32 %s37, 1
      %p41 = scmp.eq.s32.totalorder %s29, 1
      %p42 = scmp.ne.s32.totalorder %s37, %s39
      %p43 = scmp.eq.s32.totalorder %s29, 0
      %p44 = por %p42, %p43
      %p45 = scmp.ne.s32.totalorder %s37, %s39
      %p46 = scmp.eq.s32.totalorder %s34, 1
      %p47 = por %p45, %p46
      %p48 = scmp.ne.s32.totalorder %s39, %s40
      %p49 = scmp.eq.s32.totalorder %s34, 0
      %p50 = por %p48, %p49
      %p51 = scmp.ne.s32.totalorder %s39, %s40
      %p52 = scmp.eq.s32.totalorder %s35, 1
      %p53 = por %p51, %p52
      %p55 = scmp.ne.s32.totalorder %s40, %s54
      %p56 = scmp.eq.s32.totalorder %s35, 0
      %p57 = por %p55, %p56
      %s59 = sadd.s32 %s58, 1
      %p62 = scmp.eq.s32.totalorder %s29, 1
      %p63 = scmp.ne.s32.totalorder %s58, %s60
      %p64 = scmp.eq.s32.totalorder %s29, 0
      %p65 = por %p63, %p64
      %p66 = scmp.ne.s32.totalorder %s58, %s60
      %p67 = scmp.eq.s32.totalorder %s34, 1
      %p68 = por %p66, %p67
      %p69 = scmp.ne.s32.totalorder %s60, %s61
      %p70 = scmp.eq.s32.totalorder %s34, 0
      %p71 = por %p69, %p70
      %p72 = scmp.ne.s32.totalorder %s60, %s61
      %p73 = scmp.eq.s32.totalorder %s35, 1
      %p74 = por %p72, %p73
      %p76 = scmp.ne.s32.totalorder %s61, %s75
      %p77 = scmp.eq.s32.totalorder %s35, 0
      %p78 = por %p76, %p77
      %s80 = sadd.s32 %s79, 1
      %p83 = scmp.eq.s32.totalorder %s29, 1
      %p84 = scmp.ne.s32.totalorder %s79, %s81
      %p85 = scmp.eq.s32.totalorder %s29, 0
      %p86 = por %p84, %p85
      %p87 = scmp.ne.s32.totalorder %s79, %s81
      %p88 = scmp.eq.s32.totalorder %s34, 1
      %p89 = por %p87, %p88
      %p90 = scmp.ne.s32.totalorder %s81, %s82
      %p91 = scmp.eq.s32.totalorder %s34, 0
      %p92 = por %p90, %p91
      %p93 = scmp.ne.s32.totalorder %s81, %s82
      %p94 = scmp.eq.s32.totalorder %s35, 1
      %p95 = por %p93, %p94
      %p97 = scmp.ne.s32.totalorder %s82, %s96
      %p98 = scmp.eq.s32.totalorder %s35, 0
      %p99 = por %p97, %p98
      %s100 = ssub.s32 %s29, %s36
      %p101 = scmp.eq.s32.totalorder %s100, 0
      %s103 = sadd.s32 %s102, 1
      %s104 = scalar_select %p101, %s102, %s103
      %p107 = pneg %p101
      %p108 = scmp.eq.s32.totalorder %s29, 1
      %p109 = por %p107, %p108
      %p110 = scmp.ne.s32.totalorder %s102, %s105
      %p111 = scmp.eq.s32.totalorder %s29, 0
      %p112 = por %p110, %p111
      %p113 = scmp.ne.s32.totalorder %s102, %s105
      %p114 = scmp.eq.s32.totalorder %s34, 1
      %p115 = por %p113, %p114
      %p116 = scmp.ne.s32.totalorder %s105, %s106
      %p117 = scmp.eq.s32.totalorder %s34, 0
      %p118 = por %p116, %p117
      %p119 = scmp.ne.s32.totalorder %s105, %s106
      %p120 = scmp.eq.s32.totalorder %s35, 1
      %p121 = por %p119, %p120
      %p123 = scmp.ne.s32.totalorder %s106, %s122
      %p124 = scmp.eq.s32.totalorder %s35, 0
      %p125 = por %p123, %p124
      %s126 = ssub.s32 %s29, %s36
      %p127 = scmp.eq.s32.totalorder %s126, 0
      %s129 = sadd.s32 %s128, 1
      %s130 = scalar_select %p127, %s128, %s129
      %p133 = pneg %p127
      %p134 = scmp.eq.s32.totalorder %s29, 1
      %p135 = por %p133, %p134
      %p136 = scmp.ne.s32.totalorder %s128, %s131
      %p137 = scmp.eq.s32.totalorder %s29, 0
      %p138 = por %p136, %p137
      %p139 = scmp.ne.s32.totalorder %s128, %s131
      %p140 = scmp.eq.s32.totalorder %s34, 1
      %p141 = por %p139, %p140
      %p142 = scmp.ne.s32.totalorder %s131, %s132
      %p143 = scmp.eq.s32.totalorder %s34, 0
      %p144 = por %p142, %p143
      %p145 = scmp.ne.s32.totalorder %s131, %s132
      %p146 = scmp.eq.s32.totalorder %s35, 1
      %p147 = por %p145, %p146
      %p149 = scmp.ne.s32.totalorder %s132, %s148
      %p150 = scmp.eq.s32.totalorder %s35, 0
      %p151 = por %p149, %p150
      %s152 = ssub.s32 %s29, %s36
      %p153 = scmp.eq.s32.totalorder %s152, 0
      %s155 = sadd.s32 %s154, 1
      %s156 = scalar_select %p153, %s154, %s155
      %p159 = pneg %p153
      %p160 = scmp.eq.s32.totalorder %s29, 1
      %p161 = por %p159, %p160
      %p162 = scmp.ne.s32.totalorder %s154, %s157
      %p163 = scmp.eq.s32.totalorder %s29, 0
      %p164 = por %p162, %p163
      %p165 = scmp.ne.s32.totalorder %s154, %s157
      %p166 = scmp.eq.s32.totalorder %s34, 1
      %p167 = por %p165, %p166
      %p168 = scmp.ne.s32.totalorder %s157, %s158
      %p169 = scmp.eq.s32.totalorder %s34, 0
      %p170 = por %p168, %p169
      %p171 = scmp.ne.s32.totalorder %s157, %s158
      %p172 = scmp.eq.s32.totalorder %s35, 1
      %p173 = por %p171, %p172
      %p175 = scmp.ne.s32.totalorder %s158, %s174
      %p176 = scmp.eq.s32.totalorder %s35, 0
      %p177 = por %p175, %p176
      %s178 = ssub.s32 %s29, %s36
      %p179 = scmp.eq.s32.totalorder %s178, 0
      %s181 = sadd.s32 %s180, 1
      %s182 = scalar_select %p179, %s180, %s181
      %p185 = pneg %p179
      %p186 = scmp.eq.s32.totalorder %s29, 1
      %p187 = por %p185, %p186
      %p188 = scmp.ne.s32.totalorder %s180, %s183
      %p189 = scmp.eq.s32.totalorder %s29, 0
      %p190 = por %p188, %p189
      %p191 = scmp.ne.s32.totalorder %s180, %s183
      %p192 = scmp.eq.s32.totalorder %s34, 1
      %p193 = por %p191, %p192
      %p194 = scmp.ne.s32.totalorder %s183, %s184
      %p195 = scmp.eq.s32.totalorder %s34, 0
      %p196 = por %p194, %p195
      %p197 = scmp.ne.s32.totalorder %s183, %s184
      %p198 = scmp.eq.s32.totalorder %s35, 1
      %p199 = por %p197, %p198
      %p201 = scmp.ne.s32.totalorder %s184, %s200
      %p202 = scmp.eq.s32.totalorder %s35, 0
      %p203 = por %p201, %p202
      %s204 = ssub.s32 %s29, %s36
      %p205 = scmp.eq.s32.totalorder %s204, 0
      %s207 = sadd.s32 %s206, 1
      %s208 = scalar_select %p205, %s206, %s207
      %p211 = pneg %p205
      %p212 = scmp.eq.s32.totalorder %s29, 1
      %p213 = por %p211, %p212
      %p214 = scmp.ne.s32.totalorder %s206, %s209
      %p215 = scmp.eq.s32.totalorder %s29, 0
      %p216 = por %p214, %p215
      %p217 = scmp.ne.s32.totalorder %s206, %s209
      %p218 = scmp.eq.s32.totalorder %s34, 1
      %p219 = por %p217, %p218
      %p220 = scmp.ne.s32.totalorder %s209, %s210
      %p221 = scmp.eq.s32.totalorder %s34, 0
      %p222 = por %p220, %p221
      %p223 = scmp.ne.s32.totalorder %s209, %s210
      %p224 = scmp.eq.s32.totalorder %s35, 1
      %p225 = por %p223, %p224
      %p227 = scmp.ne.s32.totalorder %s210, %s226
      %p228 = scmp.eq.s32.totalorder %s35, 0
      %p229 = por %p227, %p228
      %s230 = ssub.s32 %s29, %s36
      %p231 = scmp.eq.s32.totalorder %s230, 0
      %s233 = sadd.s32 %s232, 1
      %s234 = scalar_select %p231, %s232, %s233
      %p237 = pneg %p231
      %p238 = scmp.eq.s32.totalorder %s29, 1
      %p239 = por %p237, %p238
      %p240 = scmp.ne.s32.totalorder %s232, %s235
      %p241 = scmp.eq.s32.totalorder %s29, 0
      %p242 = por %p240, %p241
      %p243 = scmp.ne.s32.totalorder %s232, %s235
      %p244 = scmp.eq.s32.totalorder %s34, 1
      %p245 = por %p243, %p244
      %p246 = scmp.ne.s32.totalorder %s235, %s236
      %p247 = scmp.eq.s32.totalorder %s34, 0
      %p248 = por %p246, %p247
      %p249 = scmp.ne.s32.totalorder %s235, %s236
      %p250 = scmp.eq.s32.totalorder %s35, 1
      %p251 = por %p249, %p250
      %p253 = scmp.ne.s32.totalorder %s236, %s252
      %p254 = scmp.eq.s32.totalorder %s35, 0
      %p255 = por %p253, %p254
      %s256 = ssub.s32 %s29, %s36
      %p257 = scmp.eq.s32.totalorder %s256, 0
      %s259 = sadd.s32 %s258, 1
      %s260 = scalar_select %p257, %s258, %s259
      %p263 = pneg %p257
      %p264 = scmp.eq.s32.totalorder %s29, 1
      %p265 = por %p263, %p264
      %p266 = scmp.ne.s32.totalorder %s258, %s261
      %p267 = scmp.eq.s32.totalorder %s29, 0
      %p268 = por %p266, %p267
      %p269 = scmp.ne.s32.totalorder %s258, %s261
      %p270 = scmp.eq.s32.totalorder %s34, 1
      %p271 = por %p269, %p270
      %p272 = scmp.ne.s32.totalorder %s261, %s262
      %p273 = scmp.eq.s32.totalorder %s34, 0
      %p274 = por %p272, %p273
      %p275 = scmp.ne.s32.totalorder %s261, %s262
      %p276 = scmp.eq.s32.totalorder %s35, 1
      %p277 = por %p275, %p276
      %p279 = scmp.ne.s32.totalorder %s262, %s278
      %p280 = scmp.eq.s32.totalorder %s35, 0
      %p281 = por %p279, %p280
      %s282 = ssub.s32 %s29, %s36
      %p283 = scmp.eq.s32.totalorder %s282, 0
      %s285 = sadd.s32 %s284, 1
      %s286 = scalar_select %p283, %s284, %s285
      %p289 = pneg %p283
      %p290 = scmp.eq.s32.totalorder %s29, 1
      %p291 = por %p289, %p290
      %p292 = scmp.ne.s32.totalorder %s284, %s287
      %p293 = scmp.eq.s32.totalorder %s29, 0
      %p294 = por %p292, %p293
      %p295 = scmp.ne.s32.totalorder %s284, %s287
      %p296 = scmp.eq.s32.totalorder %s34, 1
      %p297 = por %p295, %p296
      %p298 = scmp.ne.s32.totalorder %s287, %s288
      %p299 = scmp.eq.s32.totalorder %s34, 0
      %p300 = por %p298, %p299
      %p301 = scmp.ne.s32.totalorder %s287, %s288
      %p302 = scmp.eq.s32.totalorder %s35, 1
      %p303 = por %p301, %p302
      %p305 = scmp.ne.s32.totalorder %s288, %s304
      %p306 = scmp.eq.s32.totalorder %s35, 0
      %p307 = por %p305, %p306
      %s308 = ssub.s32 %s29, %s36
      %p309 = scmp.eq.s32.totalorder %s308, 0
      %s311 = sadd.s32 %s310, 1
      %s312 = scalar_select %p309, %s310, %s311
      %p315 = pneg %p309
      %p316 = scmp.eq.s32.totalorder %s29, 1
      %p317 = por %p315, %p316
      %p318 = scmp.ne.s32.totalorder %s310, %s313
      %p319 = scmp.eq.s32.totalorder %s29, 0
      %p320 = por %p318, %p319
      %p321 = scmp.ne.s32.totalorder %s310, %s313
      %p322 = scmp.eq.s32.totalorder %s34, 1
      %p323 = por %p321, %p322
      %p324 = scmp.ne.s32.totalorder %s313, %s314
      %p325 = scmp.eq.s32.totalorder %s34, 0
      %p326 = por %p324, %p325
      %p327 = scmp.ne.s32.totalorder %s313, %s314
      %p328 = scmp.eq.s32.totalorder %s35, 1
      %p329 = por %p327, %p328
      %p331 = scmp.ne.s32.totalorder %s314, %s330
      %p332 = scmp.eq.s32.totalorder %s35, 0
      %p333 = por %p331, %p332
      %s334 = ssub.s32 %s29, %s36
      %p335 = scmp.eq.s32.totalorder %s334, 0
      %s337 = sadd.s32 %s336, 1
      %s338 = scalar_select %p335, %s336, %s337
      %p341 = pneg %p335
      %p342 = scmp.eq.s32.totalorder %s29, 1
      %p343 = por %p341, %p342
      %p344 = scmp.ne.s32.totalorder %s336, %s339
      %p345 = scmp.eq.s32.totalorder %s29, 0
      %p346 = por %p344, %p345
      %p347 = scmp.ne.s32.totalorder %s336, %s339
      %p348 = scmp.eq.s32.totalorder %s34, 1
      %p349 = por %p347, %p348
      %p350 = scmp.ne.s32.totalorder %s339, %s340
      %p351 = scmp.eq.s32.totalorder %s34, 0
      %p352 = por %p350, %p351
      %p353 = scmp.ne.s32.totalorder %s339, %s340
      %p354 = scmp.eq.s32.totalorder %s35, 1
      %p355 = por %p353, %p354
      %p357 = scmp.ne.s32.totalorder %s340, %s356
      %p358 = scmp.eq.s32.totalorder %s35, 0
      %p359 = por %p357, %p358
      %s360 = ssub.s32 %s29, %s36
      %p361 = scmp.eq.s32.totalorder %s360, 0
      %s363 = sadd.s32 %s362, 1
      %s364 = scalar_select %p361, %s362, %s363
      %p367 = pneg %p361
      %p368 = scmp.eq.s32.totalorder %s29, 1
      %p369 = por %p367, %p368
      %p370 = scmp.ne.s32.totalorder %s362, %s365
      %p371 = scmp.eq.s32.totalorder %s29, 0
      %p372 = por %p370, %p371
      %p373 = scmp.ne.s32.totalorder %s362, %s365
      %p374 = scmp.eq.s32.totalorder %s34, 1
      %p375 = por %p373, %p374
      %p376 = scmp.ne.s32.totalorder %s365, %s366
      %p377 = scmp.eq.s32.totalorder %s34, 0
      %p378 = por %p376, %p377
      %p379 = scmp.ne.s32.totalorder %s365, %s366
      %p380 = scmp.eq.s32.totalorder %s35, 1
      %p381 = por %p379, %p380
      %p383 = scmp.ne.s32.totalorder %s366, %s382
      %p384 = scmp.eq.s32.totalorder %s35, 0
      %p385 = por %p383, %p384
      %s386 = ssub.s32 %s29, %s36
      %p387 = scmp.eq.s32.totalorder %s386, 0
      %s389 = sadd.s32 %s388, 1
      %s390 = scalar_select %p387, %s388, %s389
      %p393 = pneg %p387
      %p394 = scmp.eq.s32.totalorder %s29, 1
      %p395 = por %p393, %p394
      %p396 = scmp.ne.s32.totalorder %s388, %s391
      %p397 = scmp.eq.s32.totalorder %s29, 0
      %p398 = por %p396, %p397
      %p399 = scmp.ne.s32.totalorder %s388, %s391
      %p400 = scmp.eq.s32.totalorder %s34, 1
      %p401 = por %p399, %p400
      %p402 = scmp.ne.s32.totalorder %s391, %s392
      %p403 = scmp.eq.s32.totalorder %s34, 0
      %p404 = por %p402, %p403
      %p405 = scmp.ne.s32.totalorder %s391, %s392
      %p406 = scmp.eq.s32.totalorder %s35, 1
      %p407 = por %p405, %p406
      %p409 = scmp.ne.s32.totalorder %s392, %s408
      %p410 = scmp.eq.s32.totalorder %s35, 0
      %p411 = por %p409, %p410
      %s412 = ssub.s32 %s29, %s36
      %p413 = scmp.eq.s32.totalorder %s412, 0
      %s415 = sadd.s32 %s414, 1
      %s416 = scalar_select %p413, %s414, %s415
      %p419 = pneg %p413
      %p420 = scmp.eq.s32.totalorder %s29, 1
      %p421 = por %p419, %p420
      %p422 = scmp.ne.s32.totalorder %s414, %s417
      %p423 = scmp.eq.s32.totalorder %s29, 0
      %p424 = por %p422, %p423
      %p425 = scmp.ne.s32.totalorder %s414, %s417
      %p426 = scmp.eq.s32.totalorder %s34, 1
      %p427 = por %p425, %p426
      %p428 = scmp.ne.s32.totalorder %s417, %s418
      %p429 = scmp.eq.s32.totalorder %s34, 0
      %p430 = por %p428, %p429
      %p431 = scmp.ne.s32.totalorder %s417, %s418
      %p432 = scmp.eq.s32.totalorder %s35, 1
      %p433 = por %p431, %p432
      %p435 = scmp.ne.s32.totalorder %s418, %s434
      %p436 = scmp.eq.s32.totalorder %s35, 0
      %p437 = por %p435, %p436
      %s438 = ssub.s32 %s29, %s36
      %p439 = scmp.eq.s32.totalorder %s438, 0
      %s441 = sadd.s32 %s440, 1
      %s442 = scalar_select %p439, %s440, %s441
      %p445 = pneg %p439
      %p446 = scmp.eq.s32.totalorder %s29, 1
      %p447 = por %p445, %p446
      %p448 = scmp.ne.s32.totalorder %s440, %s443
      %p449 = scmp.eq.s32.totalorder %s29, 0
      %p450 = por %p448, %p449
      %p451 = scmp.ne.s32.totalorder %s440, %s443
      %p452 = scmp.eq.s32.totalorder %s34, 1
      %p453 = por %p451, %p452
      %p454 = scmp.ne.s32.totalorder %s443, %s444
      %p455 = scmp.eq.s32.totalorder %s34, 0
      %p456 = por %p454, %p455
      %p457 = scmp.ne.s32.totalorder %s443, %s444
      %p458 = scmp.eq.s32.totalorder %s35, 1
      %p459 = por %p457, %p458
      %p461 = scmp.ne.s32.totalorder %s444, %s460
      %p462 = scmp.eq.s32.totalorder %s35, 0
      %p463 = por %p461, %p462
      %s464 = ssub.s32 %s29, %s36
      %p465 = scmp.eq.s32.totalorder %s464, 0
      %s467 = sadd.s32 %s466, 1
      %s468 = scalar_select %p465, %s466, %s467
      %p471 = pneg %p465
      %p472 = scmp.eq.s32.totalorder %s29, 1
      %p473 = por %p471, %p472
      %p474 = scmp.ne.s32.totalorder %s466, %s469
      %p475 = scmp.eq.s32.totalorder %s29, 0
      %p476 = por %p474, %p475
      %p477 = scmp.ne.s32.totalorder %s466, %s469
      %p478 = scmp.eq.s32.totalorder %s34, 1
      %p479 = por %p477, %p478
      %p480 = scmp.ne.s32.totalorder %s469, %s470
      %p481 = scmp.eq.s32.totalorder %s34, 0
      %p482 = por %p480, %p481
      %p483 = scmp.ne.s32.totalorder %s469, %s470
      %p484 = scmp.eq.s32.totalorder %s35, 1
      %p485 = por %p483, %p484
      %p487 = scmp.ne.s32.totalorder %s470, %s486
      %p488 = scmp.eq.s32.totalorder %s35, 0
      %p489 = por %p487, %p488
      %s490 = ssub.s32 %s29, %s36
      %p491 = scmp.eq.s32.totalorder %s490, 0
      %s493 = sadd.s32 %s492, 1
      %s494 = scalar_select %p491, %s492, %s493
      %p497 = pneg %p491
      %p498 = scmp.eq.s32.totalorder %s29, 1
      %p499 = por %p497, %p498
      %p500 = scmp.ne.s32.totalorder %s492, %s495
      %p501 = scmp.eq.s32.totalorder %s29, 0
      %p502 = por %p500, %p501
      %p503 = scmp.ne.s32.totalorder %s492, %s495
      %p504 = scmp.eq.s32.totalorder %s34, 1
      %p505 = por %p503, %p504
      %p506 = scmp.ne.s32.totalorder %s495, %s496
      %p507 = scmp.eq.s32.totalorder %s34, 0
      %p508 = por %p506, %p507
      %p509 = scmp.ne.s32.totalorder %s495, %s496
      %p510 = scmp.eq.s32.totalorder %s35, 1
      %p511 = por %p509, %p510
      %p513 = scmp.ne.s32.totalorder %s496, %s512
      %p514 = scmp.eq.s32.totalorder %s35, 0
      %p515 = por %p513, %p514
      %s517 = sadd.s32 %s516, 1
      %p520 = scmp.eq.s32.totalorder %s29, 1
      %p521 = scmp.ne.s32.totalorder %s516, %s518
      %p522 = scmp.eq.s32.totalorder %s29, 0
      %p523 = por %p521, %p522
      %p524 = scmp.ne.s32.totalorder %s516, %s518
      %p525 = scmp.eq.s32.totalorder %s34, 1
      %p526 = por %p524, %p525
      %p527 = scmp.ne.s32.totalorder %s518, %s519
      %p528 = scmp.eq.s32.totalorder %s34, 0
      %p529 = por %p527, %p528
      %p530 = scmp.ne.s32.totalorder %s518, %s519
      %p531 = scmp.eq.s32.totalorder %s35, 1
      %p532 = por %p530, %p531
      %p534 = scmp.ne.s32.totalorder %s519, %s533
      %p535 = scmp.eq.s32.totalorder %s35, 0
      %p536 = por %p534, %p535
      %s538 = sadd.s32 %s537, 1
      %p541 = scmp.eq.s32.totalorder %s29, 1
      %p542 = scmp.ne.s32.totalorder %s537, %s539
      %p543 = scmp.eq.s32.totalorder %s29, 0
      %p544 = por %p542, %p543
      %p545 = scmp.ne.s32.totalorder %s537, %s539
      %p546 = scmp.eq.s32.totalorder %s34, 1
      %p547 = por %p545, %p546
      %p548 = scmp.ne.s32.totalorder %s539, %s540
      %p549 = scmp.eq.s32.totalorder %s34, 0
      %p550 = por %p548, %p549
      %p551 = scmp.ne.s32.totalorder %s539, %s540
      %p552 = scmp.eq.s32.totalorder %s35, 1
      %p553 = por %p551, %p552
      %p555 = scmp.ne.s32.totalorder %s540, %s554
      %p556 = scmp.eq.s32.totalorder %s35, 0
      %p557 = por %p555, %p556
      %s559 = sadd.s32 %s558, 1
      %p562 = scmp.eq.s32.totalorder %s29, 1
      %p563 = scmp.ne.s32.totalorder %s558, %s560
      %p564 = scmp.eq.s32.totalorder %s29, 0
      %p565 = por %p563, %p564
      %p566 = scmp.ne.s32.totalorder %s558, %s560
      %p567 = scmp.eq.s32.totalorder %s34, 1
      %p568 = por %p566, %p567
      %p569 = scmp.ne.s32.totalorder %s560, %s561
      %p570 = scmp.eq.s32.totalorder %s34, 0
      %p571 = por %p569, %p570
      %p572 = scmp.ne.s32.totalorder %s560, %s561
      %p573 = scmp.eq.s32.totalorder %s35, 1
      %p574 = por %p572, %p573
      %p576 = scmp.ne.s32.totalorder %s561, %s575
      %p577 = scmp.eq.s32.totalorder %s35, 0
      %p578 = por %p576, %p577
      %s580 = sadd.s32 %s579, 1
      %p583 = scmp.eq.s32.totalorder %s29, 1
      %p584 = scmp.ne.s32.totalorder %s579, %s581
      %p585 = scmp.eq.s32.totalorder %s29, 0
      %p586 = por %p584, %p585
      %p587 = scmp.ne.s32.totalorder %s579, %s581
      %p588 = scmp.eq.s32.totalorder %s34, 1
      %p589 = por %p587, %p588
      %p590 = scmp.ne.s32.totalorder %s581, %s582
      %p591 = scmp.eq.s32.totalorder %s34, 0
      %p592 = por %p590, %p591
      %p593 = scmp.ne.s32.totalorder %s581, %s582
      %p594 = scmp.eq.s32.totalorder %s35, 1
      %p595 = por %p593, %p594
      %p597 = scmp.ne.s32.totalorder %s582, %s596
      %p598 = scmp.eq.s32.totalorder %s35, 0
      %p599 = por %p597, %p598
      %p600 = scmp.le.s32.totalorder 1, %s29
      %p601 = scmp.lt.s32.totalorder %s29, 3
      %p602 = pnand %p600, %p601
      %p603 = pneg %p602
      // Predicated region
      $region9: #{tpu_custom_call.1} parent=5 // pred_check
        _
      $region10: #{tpu_custom_call.1} parent=5 // pred_check_branch
        %605 = sbr.rel (%p602) target = $region12
      $region11: #{tpu_custom_call.1} parent=5 // pred_region
        %s606 = ssub.s32 %s29, 1
        // Predicated region
        $region13: #{tpu_custom_call.1} parent=11 // pred_check
          %p607 = pneg %p50
        $region14: #{tpu_custom_call.1} parent=11 // pred_check_branch
          %609 = sbr.rel (%p607) target = $region16
        $region15: #{tpu_custom_call.1} parent=11 // pred_region
          _
        $region16: #{tpu_custom_call.1} parent=11 // pred_fallthru
          _
        // Predicated region
        $region17: #{tpu_custom_call.1} parent=11 // pred_check
          %p610 = pneg %p71
        $region18: #{tpu_custom_call.1} parent=11 // pred_check_branch
          %612 = sbr.rel (%p610) target = $region20
        $region19: #{tpu_custom_call.1} parent=11 // pred_region
          _
        $region20: #{tpu_custom_call.1} parent=11 // pred_fallthru
          _
        // Predicated region
        $region21: #{tpu_custom_call.1} parent=11 // pred_check
          %p613 = pneg %p92
        $region22: #{tpu_custom_call.1} parent=11 // pred_check_branch
          %615 = sbr.rel (%p613) target = $region24
        $region23: #{tpu_custom_call.1} parent=11 // pred_region
          _
        $region24: #{tpu_custom_call.1} parent=11 // pred_fallthru
          _
        // Predicated region
        $region25: #{tpu_custom_call.1} parent=11 // pred_check
          %p616 = pneg %p529
        $region26: #{tpu_custom_call.1} parent=11 // pred_check_branch
          %618 = sbr.rel (%p616) target = $region28
        $region27: #{tpu_custom_call.1} parent=11 // pred_region
          _
        $region28: #{tpu_custom_call.1} parent=11 // pred_fallthru
          _
        // Predicated region
        $region29: #{tpu_custom_call.1} parent=11 // pred_check
          %p619 = pneg %p550
        $region30: #{tpu_custom_call.1} parent=11 // pred_check_branch
          %621 = sbr.rel (%p619) target = $region32
        $region31: #{tpu_custom_call.1} parent=11 // pred_region
          _
        $region32: #{tpu_custom_call.1} parent=11 // pred_fallthru
          _
        // Predicated region
        $region33: #{tpu_custom_call.1} parent=11 // pred_check
          %p622 = pneg %p571
        $region34: #{tpu_custom_call.1} parent=11 // pred_check_branch
          %624 = sbr.rel (%p622) target = $region36
        $region35: #{tpu_custom_call.1} parent=11 // pred_region
          _
        $region36: #{tpu_custom_call.1} parent=11 // pred_fallthru
          _
      $region12: #{tpu_custom_call.1} parent=5 // pred_fallthru
        _
      %p625 = scmp.lt.s32.totalorder %s29, 2
      // Predicated region
      $region37: #{tpu_custom_call.1} parent=5 // pred_check
        %p626 = pneg %p625
      $region38: #{tpu_custom_call.1} parent=5 // pred_check_branch
        %628 = sbr.rel (%p626) target = $region40
      $region39: #{tpu_custom_call.1} parent=5 // pred_region
        // Predicated region
        $region41: #{tpu_custom_call.1} parent=39 // pred_check
          %p629 = pneg %p112
        $region42: #{tpu_custom_call.1} parent=39 // pred_check_branch
          %631 = sbr.rel (%p629) target = $region44
        $region43: #{tpu_custom_call.1} parent=39 // pred_region
          %p632 = scmp.lt.s32.totalorder %s29, 1
          %s633 = scalar_select %p632, %s29, 1
          %s634 = scalar_lea.vmem %s3, %s633
        $region44: #{tpu_custom_call.1} parent=39 // pred_fallthru
          _
        // Predicated region
        $region45: #{tpu_custom_call.1} parent=39 // pred_check
          %p635 = pneg %p138
        $region46: #{tpu_custom_call.1} parent=39 // pred_check_branch
          %637 = sbr.rel (%p635) target = $region48
        $region47: #{tpu_custom_call.1} parent=39 // pred_region
          %p638 = scmp.lt.s32.totalorder %s29, 1
          %s639 = scalar_select %p638, %s29, 1
          %s640 = scalar_lea.vmem %s4, %s639
        $region48: #{tpu_custom_call.1} parent=39 // pred_fallthru
          _
        // Predicated region
        $region49: #{tpu_custom_call.1} parent=39 // pred_check
          %p641 = pneg %p164
        $region50: #{tpu_custom_call.1} parent=39 // pred_check_branch
          %643 = sbr.rel (%p641) target = $region52
        $region51: #{tpu_custom_call.1} parent=39 // pred_region
          %p644 = scmp.lt.s32.totalorder %s29, 1
          %s645 = scalar_select %p644, %s29, 1
          %s646 = smul.addr %s645, 4
          %s647 = smul.addr %s646, 4
          %s648 = scalar_lea.vmem %s5, %s647
        $region52: #{tpu_custom_call.1} parent=39 // pred_fallthru
          _
        // Predicated region
        $region53: #{tpu_custom_call.1} parent=39 // pred_check
          %p649 = pneg %p190
        $region54: #{tpu_custom_call.1} parent=39 // pred_check_branch
          %651 = sbr.rel (%p649) target = $region56
        $region55: #{tpu_custom_call.1} parent=39 // pred_region
          %p652 = scmp.lt.s32.totalorder %s29, 1
          %s653 = scalar_select %p652, %s29, 1
          %s654 = scalar_lea.vmem %s6, %s653
        $region56: #{tpu_custom_call.1} parent=39 // pred_fallthru
          _
        // Predicated region
        $region57: #{tpu_custom_call.1} parent=39 // pred_check
          %p655 = pneg %p216
        $region58: #{tpu_custom_call.1} parent=39 // pred_check_branch
          %657 = sbr.rel (%p655) target = $region60
        $region59: #{tpu_custom_call.1} parent=39 // pred_region
          %p658 = scmp.lt.s32.totalorder %s29, 1
          %s659 = scalar_select %p658, %s29, 1
          %s660 = scalar_lea.vmem %s7, %s659
        $region60: #{tpu_custom_call.1} parent=39 // pred_fallthru
          _
        // Predicated region
        $region61: #{tpu_custom_call.1} parent=39 // pred_check
          %p661 = pneg %p242
        $region62: #{tpu_custom_call.1} parent=39 // pred_check_branch
          %663 = sbr.rel (%p661) target = $region64
        $region63: #{tpu_custom_call.1} parent=39 // pred_region
          %p664 = scmp.lt.s32.totalorder %s29, 1
          %s665 = scalar_select %p664, %s29, 1
          %s666 = scalar_lea.vmem %s8, %s665
        $region64: #{tpu_custom_call.1} parent=39 // pred_fallthru
          _
        // Predicated region
        $region65: #{tpu_custom_call.1} parent=39 // pred_check
          %p667 = pneg %p268
        $region66: #{tpu_custom_call.1} parent=39 // pred_check_branch
          %669 = sbr.rel (%p667) target = $region68
        $region67: #{tpu_custom_call.1} parent=39 // pred_region
          %p670 = scmp.lt.s32.totalorder %s29, 1
          %s671 = scalar_select %p670, %s29, 1
          %s672 = smul.addr %s671, 4
          %s673 = smul.addr %s672, 4
          %s674 = scalar_lea.vmem %s9, %s673
        $region68: #{tpu_custom_call.1} parent=39 // pred_fallthru
          _
        // Predicated region
        $region69: #{tpu_custom_call.1} parent=39 // pred_check
          %p675 = pneg %p294
        $region70: #{tpu_custom_call.1} parent=39 // pred_check_branch
          %677 = sbr.rel (%p675) target = $region72
        $region71: #{tpu_custom_call.1} parent=39 // pred_region
          %p678 = scmp.lt.s32.totalorder %s29, 1
          %s679 = scalar_select %p678, %s29, 1
          %s680 = scalar_lea.vmem %s10, %s679
        $region72: #{tpu_custom_call.1} parent=39 // pred_fallthru
          _
        // Predicated region
        $region73: #{tpu_custom_call.1} parent=39 // pred_check
          %p681 = pneg %p320
        $region74: #{tpu_custom_call.1} parent=39 // pred_check_branch
          %683 = sbr.rel (%p681) target = $region76
        $region75: #{tpu_custom_call.1} parent=39 // pred_region
          %p684 = scmp.lt.s32.totalorder %s29, 1
          %s685 = scalar_select %p684, %s29, 1
          %s686 = scalar_lea.vmem %s11, %s685
        $region76: #{tpu_custom_call.1} parent=39 // pred_fallthru
          _
        // Predicated region
        $region77: #{tpu_custom_call.1} parent=39 // pred_check
          %p687 = pneg %p346
        $region78: #{tpu_custom_call.1} parent=39 // pred_check_branch
          %689 = sbr.rel (%p687) target = $region80
        $region79: #{tpu_custom_call.1} parent=39 // pred_region
          %p690 = scmp.lt.s32.totalorder %s29, 1
          %s691 = scalar_select %p690, %s29, 1
          %s692 = scalar_lea.vmem %s12, %s691
        $region80: #{tpu_custom_call.1} parent=39 // pred_fallthru
          _
        // Predicated region
        $region81: #{tpu_custom_call.1} parent=39 // pred_check
          %p693 = pneg %p372
        $region82: #{tpu_custom_call.1} parent=39 // pred_check_branch
          %695 = sbr.rel (%p693) target = $region84
        $region83: #{tpu_custom_call.1} parent=39 // pred_region
          %p696 = scmp.lt.s32.totalorder %s29, 1
          %s697 = scalar_select %p696, %s29, 1
          %s698 = smul.addr %s697, 4
          %s699 = smul.addr %s698, 4
          %s700 = scalar_lea.vmem %s13, %s699
        $region84: #{tpu_custom_call.1} parent=39 // pred_fallthru
          _
        // Predicated region
        $region85: #{tpu_custom_call.1} parent=39 // pred_check
          %p701 = pneg %p398
        $region86: #{tpu_custom_call.1} parent=39 // pred_check_branch
          %703 = sbr.rel (%p701) target = $region88
        $region87: #{tpu_custom_call.1} parent=39 // pred_region
          %p704 = scmp.lt.s32.totalorder %s29, 1
          %s705 = scalar_select %p704, %s29, 1
          %s706 = scalar_lea.vmem %s14, %s705
        $region88: #{tpu_custom_call.1} parent=39 // pred_fallthru
          _
        // Predicated region
        $region89: #{tpu_custom_call.1} parent=39 // pred_check
          %p707 = pneg %p424
        $region90: #{tpu_custom_call.1} parent=39 // pred_check_branch
          %709 = sbr.rel (%p707) target = $region92
        $region91: #{tpu_custom_call.1} parent=39 // pred_region
          %p710 = scmp.lt.s32.totalorder %s29, 1
          %s711 = scalar_select %p710, %s29, 1
          %s712 = scalar_lea.vmem %s15, %s711
        $region92: #{tpu_custom_call.1} parent=39 // pred_fallthru
          _
        // Predicated region
        $region93: #{tpu_custom_call.1} parent=39 // pred_check
          %p713 = pneg %p450
        $region94: #{tpu_custom_call.1} parent=39 // pred_check_branch
          %715 = sbr.rel (%p713) target = $region96
        $region95: #{tpu_custom_call.1} parent=39 // pred_region
          %p716 = scmp.lt.s32.totalorder %s29, 1
          %s717 = scalar_select %p716, %s29, 1
          %s718 = scalar_lea.vmem %s16, %s717
        $region96: #{tpu_custom_call.1} parent=39 // pred_fallthru
          _
        // Predicated region
        $region97: #{tpu_custom_call.1} parent=39 // pred_check
          %p719 = pneg %p476
        $region98: #{tpu_custom_call.1} parent=39 // pred_check_branch
          %721 = sbr.rel (%p719) target = $region100
        $region99: #{tpu_custom_call.1} parent=39 // pred_region
          %p722 = scmp.lt.s32.totalorder %s29, 1
          %s723 = scalar_select %p722, %s29, 1
          %s724 = smul.addr %s723, 8
          %s725 = smul.addr %s724, 4
          %s726 = scalar_lea.vmem %s17, %s725
        $region100: #{tpu_custom_call.1} parent=39 // pred_fallthru
          _
        // Predicated region
        $region101: #{tpu_custom_call.1} parent=39 // pred_check
          %p727 = pneg %p502
        $region102: #{tpu_custom_call.1} parent=39 // pred_check_branch
          %729 = sbr.rel (%p727) target = $region104
        $region103: #{tpu_custom_call.1} parent=39 // pred_region
          %p730 = scmp.lt.s32.totalorder %s29, 1
          %s731 = scalar_select %p730, %s29, 1
          %s732 = scalar_lea.vmem %s18, %s731
        $region104: #{tpu_custom_call.1} parent=39 // pred_fallthru
          _
      $region40: #{tpu_custom_call.1} parent=5 // pred_fallthru
        _
      %p733 = scmp.le.s32.totalorder 1, %s29
      %p734 = scmp.lt.s32.totalorder %s29, 3
      %p735 = pnand %p733, %p734
      %p736 = pneg %p735
      // Predicated region
      $region105: #{tpu_custom_call.1} parent=5 // pred_check
        _
      $region106: #{tpu_custom_call.1} parent=5 // pred_check_branch
        %738 = sbr.rel (%p735) target = $region108
      $region107: #{tpu_custom_call.1} parent=5 // pred_region
        %s739 = ssub.s32 %s29, 1
        %p740 = pneg %p50
        %p741 = pneg %p47
        %p742 = pneg %p71
        %p743 = pneg %p68
        %p744 = pneg %p92
        %p745 = pneg %p89
        %p746 = scmp.lt.s32.totalorder %s34, 1
        %s747 = scalar_select %p746, %s34, 1
        %s748 = scalar_lea.vmem %s3, %s747
        %p749 = pneg %p118
        %p750 = pneg %p115
        %p751 = scmp.lt.s32.totalorder %s34, 1
        %s752 = scalar_select %p751, %s34, 1
        %s753 = scalar_lea.vmem %s4, %s752
        %p754 = pneg %p144
        %p755 = pneg %p141
        %p756 = scmp.lt.s32.totalorder %s34, 1
        %s757 = scalar_select %p756, %s34, 1
        %s758 = smul.addr %s757, 4
        %s759 = smul.addr %s758, 4
        %s760 = scalar_lea.vmem %s5, %s759
        %p761 = pneg %p170
        %p762 = pneg %p167
        %p763 = scmp.lt.s32.totalorder %s34, 1
        %s764 = scalar_select %p763, %s34, 1
        %s765 = scalar_lea.vmem %s6, %s764
        %p766 = pneg %p196
        %p767 = pneg %p193
        %p768 = scmp.lt.s32.totalorder %s34, 1
        %s769 = scalar_select %p768, %s34, 1
        %s770 = scalar_lea.vmem %s7, %s769
        %p771 = pneg %p222
        %p772 = pneg %p219
        %p773 = scmp.lt.s32.totalorder %s34, 1
        %s774 = scalar_select %p773, %s34, 1
        %s775 = scalar_lea.vmem %s8, %s774
        %p776 = pneg %p248
        %p777 = pneg %p245
        %p778 = scmp.lt.s32.totalorder %s34, 1
        %s779 = scalar_select %p778, %s34, 1
        %s780 = smul.addr %s779, 4
        %s781 = smul.addr %s780, 4
        %s782 = scalar_lea.vmem %s9, %s781
        %p783 = pneg %p274
        %p784 = pneg %p271
        %p785 = scmp.lt.s32.totalorder %s34, 1
        %s786 = scalar_select %p785, %s34, 1
        %s787 = scalar_lea.vmem %s10, %s786
        %p788 = pneg %p300
        %p789 = pneg %p297
        %p790 = scmp.lt.s32.totalorder %s34, 1
        %s791 = scalar_select %p790, %s34, 1
        %s792 = scalar_lea.vmem %s11, %s791
        %p793 = pneg %p326
        %p794 = pneg %p323
        %p795 = scmp.lt.s32.totalorder %s34, 1
        %s796 = scalar_select %p795, %s34, 1
        %s797 = scalar_lea.vmem %s12, %s796
        %p798 = pneg %p352
        %p799 = pneg %p349
        %p800 = scmp.lt.s32.totalorder %s34, 1
        %s801 = scalar_select %p800, %s34, 1
        %s802 = smul.addr %s801, 4
        %s803 = smul.addr %s802, 4
        %s804 = scalar_lea.vmem %s13, %s803
        %p805 = pneg %p378
        %p806 = pneg %p375
        %p807 = scmp.lt.s32.totalorder %s34, 1
        %s808 = scalar_select %p807, %s34, 1
        %s809 = scalar_lea.vmem %s14, %s808
        %p810 = pneg %p404
        %p811 = pneg %p401
        %p812 = scmp.lt.s32.totalorder %s34, 1
        %s813 = scalar_select %p812, %s34, 1
        %s814 = scalar_lea.vmem %s15, %s813
        %p815 = pneg %p430
        %p816 = pneg %p427
        %p817 = scmp.lt.s32.totalorder %s34, 1
        %s818 = scalar_select %p817, %s34, 1
        %s819 = scalar_lea.vmem %s16, %s818
        %p820 = pneg %p456
        %p821 = pneg %p453
        %p822 = scmp.lt.s32.totalorder %s34, 1
        %s823 = scalar_select %p822, %s34, 1
        %s824 = smul.addr %s823, 8
        %s825 = smul.addr %s824, 4
        %s826 = scalar_lea.vmem %s17, %s825
        %p827 = pneg %p482
        %p828 = pneg %p479
        %p829 = scmp.lt.s32.totalorder %s34, 1
        %s830 = scalar_select %p829, %s34, 1
        %s831 = scalar_lea.vmem %s18, %s830
        %p832 = pneg %p508
        %p833 = pneg %p505
        %p834 = pneg %p529
        %p835 = pneg %p526
        %p836 = pneg %p550
        %p837 = pneg %p547
        %p838 = pneg %p571
        %p839 = pneg %p568
        %p840 = pneg %p592
        %p841 = pneg %p589
        %p842 = scmp.lt.s32.totalorder %s34, 1
        %s843 = scalar_select %p842, %s34, 1
        %s844 = scalar_lea.vmem %s3, %s843
        %p845 = scmp.lt.s32.totalorder %s34, 1
        %s846 = scalar_select %p845, %s34, 1
        %s847 = scalar_lea.vmem %s4, %s846
        %p848 = scmp.lt.s32.totalorder %s34, 1
        %s849 = scalar_select %p848, %s34, 1
        %s850 = smul.addr %s849, 4
        %s851 = smul.addr %s850, 4
        %s852 = scalar_lea.vmem %s5, %s851
        %p853 = scmp.lt.s32.totalorder %s34, 1
        %s854 = scalar_select %p853, %s34, 1
        %s855 = scalar_lea.vmem %s6, %s854
        %p856 = scmp.lt.s32.totalorder %s34, 1
        %s857 = scalar_select %p856, %s34, 1
        %s858 = scalar_lea.vmem %s7, %s857
        %p859 = scmp.lt.s32.totalorder %s34, 1
        %s860 = scalar_select %p859, %s34, 1
        %s861 = scalar_lea.vmem %s8, %s860
        %p862 = scmp.lt.s32.totalorder %s34, 1
        %s863 = scalar_select %p862, %s34, 1
        %s864 = smul.addr %s863, 4
        %s865 = smul.addr %s864, 4
        %s866 = scalar_lea.vmem %s9, %s865
        %p867 = scmp.lt.s32.totalorder %s34, 1
        %s868 = scalar_select %p867, %s34, 1
        %s869 = scalar_lea.vmem %s10, %s868
        %p870 = scmp.lt.s32.totalorder %s34, 1
        %s871 = scalar_select %p870, %s34, 1
        %s872 = scalar_lea.vmem %s11, %s871
        %p873 = scmp.lt.s32.totalorder %s34, 1
        %s874 = scalar_select %p873, %s34, 1
        %s875 = scalar_lea.vmem %s12, %s874
        %p876 = scmp.lt.s32.totalorder %s34, 1
        %s877 = scalar_select %p876, %s34, 1
        %s878 = smul.addr %s877, 4
        %s879 = smul.addr %s878, 4
        %s880 = scalar_lea.vmem %s13, %s879
        %p881 = scmp.lt.s32.totalorder %s34, 1
        %s882 = scalar_select %p881, %s34, 1
        %s883 = scalar_lea.vmem %s14, %s882
        %p884 = scmp.lt.s32.totalorder %s34, 1
        %s885 = scalar_select %p884, %s34, 1
        %s886 = scalar_lea.vmem %s15, %s885
        %p887 = scmp.lt.s32.totalorder %s34, 1
        %s888 = scalar_select %p887, %s34, 1
        %s889 = scalar_lea.vmem %s16, %s888
        %p890 = scmp.lt.s32.totalorder %s34, 1
        %s891 = scalar_select %p890, %s34, 1
        %s892 = smul.addr %s891, 8
        %s893 = smul.addr %s892, 4
        %s894 = scalar_lea.vmem %s17, %s893
        %p895 = scmp.lt.s32.totalorder %s34, 1
        %s896 = scalar_select %p895, %s34, 1
        %s897 = scalar_lea.vmem %s18, %s896
        %p899 = scmp.eq.s32.totalorder %s34, 0
        // Predicated region
        $region109: #{tpu_custom_call.1} parent=107 // pred_check
          %p900 = pneg %p899
        $region110: #{tpu_custom_call.1} parent=107 // pred_check_branch
          %902 = sbr.rel (%p900) target = $region112
        $region111: #{tpu_custom_call.1} parent=107 // pred_region
          %v903 = vld [vmem:[%s0] sm:$0xff]
          %v904 = vld [vmem:[%s0 + $0x8] sm:$0xff]
          %v905 = vld [vmem:[%s0 + $0x10] sm:$0xff]
          %v906 = vld [vmem:[%s0 + $0x18] sm:$0xff]
          %v907 = vld [vmem:[%s2] sm:$0xff]
          %v908 = vld [vmem:[%s2 + $0x8] sm:$0xff]
          %v909 = vld [vmem:[%s2 + $0x10] sm:$0xff]
          %v910 = vld [vmem:[%s2 + $0x18] sm:$0xff]
          %v911 = vld [vmem:[%s2 + $0x20] sm:$0xff]
          %v912 = vld [vmem:[%s2 + $0x28] sm:$0xff]
          %v913 = vld [vmem:[%s2 + $0x30] sm:$0xff]
          %v914 = vld [vmem:[%s2 + $0x38] sm:$0xff]
          %v915 = vld [vmem:[%s2 + $0x40] sm:$0xff]
          %v916 = vld [vmem:[%s2 + $0x48] sm:$0xff]
          %v917 = vld [vmem:[%s2 + $0x50] sm:$0xff]
          %v918 = vld [vmem:[%s2 + $0x58] sm:$0xff]
          %v919 = vld [vmem:[%s2 + $0x60] sm:$0xff]
          %v920 = vld [vmem:[%s2 + $0x68] sm:$0xff]
          %v921 = vld [vmem:[%s2 + $0x70] sm:$0xff]
          %v922 = vld [vmem:[%s2 + $0x78] sm:$0xff]
          %v923 = vld [vmem:[%s2 + $0x80] sm:$0xff]
          %v924 = vld [vmem:[%s2 + $0x88] sm:$0xff]
          %v925 = vld [vmem:[%s2 + $0x90] sm:$0xff]
          %v926 = vld [vmem:[%s2 + $0x98] sm:$0xff]
          %v927 = vld [vmem:[%s2 + $0xa0] sm:$0xff]
          %v928 = vld [vmem:[%s2 + $0xa8] sm:$0xff]
          %v929 = vld [vmem:[%s2 + $0xb0] sm:$0xff]
          %v930 = vld [vmem:[%s2 + $0xb8] sm:$0xff]
          %v931 = vld [vmem:[%s1] sm:$0xff]
          %v932 = vld [vmem:[%s1 + $0x8] sm:$0xff]
          %vm933 = vcmask 523264
          %v935 = vsel %vm933, %v904, 0
          %v938 = vsel %vm933, %v906, 0
          %940 = vmatprep.subr.mxu0 0.0
          %941 = vmatpush1.msra.mxu0 %v907
          %942 = vmatprep.subr.mxu0 0.0
          %943 = vmatpush1.msra.mxu0 %v908
          %944 = vmatprep.subr.mxu0 0.0
          %945 = vmatpush1.msra.mxu0 %v909
          %946 = vmatprep.subr.mxu0 0.0
          %947 = vmatpush1.msra.mxu0 %v910
          %948 = vmatprep.subr.mxu0 0.0
          %949 = vmatpush1.msra.mxu0 %v911
          %950 = vmatprep.subr.mxu0 0.0
          %951 = vmatpush1.msra.mxu0 %v912
          %952 = vmatprep.subr.mxu0 0.0
          %953 = vmatpush1.msra.mxu0 %v913
          %954 = vmatprep.subr.mxu0 0.0
          %955 = vmatpush1.msra.mxu0 %v914
          %956 = vmatprep.subr.mxu0 0.0
          %957 = vmatpush1.msra.mxu0 %v915
          %958 = vmatprep.subr.mxu0 0.0
          %959 = vmatpush1.msra.mxu0 %v916
          %960 = vmatprep.subr.mxu0 0.0
          %961 = vmatpush1.msra.mxu0 %v917
          %962 = vmatprep.subr.mxu0 0.0
          %963 = vmatpush1.msra.mxu0 %v918
          %964 = vmatprep.subr.mxu0 0.0
          %965 = vmatpush1.msra.mxu0 %v919
          %966 = vmatprep.subr.mxu0 0.0
          %967 = vmatpush1.msra.mxu0 %v920
          %968 = vmatprep.subr.mxu0 0.0
          %969 = vmatpush1.msra.mxu0 %v921
          %970 = vmatprep.subr.mxu0 0.0
          %971 = vmatpush1.msra.mxu0 %v922
          %972 = vmatprep.subr.mxu0 0.0
          %973 = vmatpush1.msra.mxu0 %v923
          %974 = vmatprep.subr.mxu0 0.0
          %975 = vmatpush1.msra.mxu0 %v924
          %976 = vmatprep.subr.mxu0 0.0
          %977 = vmatpush1.msra.mxu0 %v925
          %978 = vmatprep.subr.mxu0 0.0
          %979 = vmatpush1.msra.mxu0 %v926
          %980 = vmatprep.subr.mxu0 0.0
          %981 = vmatpush1.msra.mxu0 %v927
          %982 = vmatprep.subr.mxu0 0.0
          %983 = vmatpush1.msra.mxu0 %v928
          %984 = vmatprep.subr.mxu0 0.0
          %985 = vmatpush1.msra.mxu0 %v929
          %986 = vmatprep.subr.mxu0 0.0
          %987 = vmatpush1.msra.mxu0 %v930
          %988 = vmatprep.subr.mxu0 0.0
          %989 = vmatpush1.msra.mxu0 0.0
          %990 = vmatprep.subr.mxu0 0.0
          %991 = vmatpush1.msra.mxu0 0.0
          %992 = vmatprep.subr.mxu0 0.0
          %993 = vmatpush1.msra.mxu0 0.0
          %994 = vmatprep.subr.mxu0 0.0
          %995 = vmatpush1.msra.mxu0 0.0
          %996 = vmatprep.subr.mxu0 0.0
          %997 = vmatpush1.msra.mxu0 0.0
          %998 = vmatprep.subr.mxu0 0.0
          %999 = vmatpush1.msra.mxu0 0.0
          %1000 = vmatprep.subr.mxu0 0.0
          %1001 = vmatpush1.msra.mxu0 0.0
          %1002 = vmatprep.subr.mxu0 0.0
          %1003 = vmatpush1.msra.mxu0 0.0
          %1004 = vmatprep.mubr.f32.mxu0 %v935
          %1005 = vmatmul.mubr.f32.gmra.mrb[0].mxu0 %v903
          %v1006 = vpop.f32.mrb[0].mxu0
          %v1007 = vadd.f32 %v931, %v1006
          %v1008 = vpop.f32.mrb[0].mxu0
          %1009 = vmatprep.mubr.f32.mxu0 %v938
          %1010 = vmatmul.mubr.f32.gmra.mrb[0].mxu0 %v905
          %v1011 = vpop.f32.mrb[0].mxu0
          %v1012 = vadd.f32 %v932, %v1011
          %v1013 = vpop.f32.mrb[0].mxu0
          %1014 = vdwg.mxu0
          %vm1015 = vcmask 261120
          %1016 = vst.msk [vmem:[#allocation2] sm:$0xff] %vm1015, %v1007
          %1017 = vst.msk [vmem:[#allocation2 + $0x8] sm:$0xff] %vm1015, %v1012
        $region112: #{tpu_custom_call.1} parent=107 // pred_fallthru
          _
        %v1018 = vld [vmem:[#allocation2] sm:$0xff]
        %v1019 = vld [vmem:[#allocation2 + $0x8] sm:$0xff]
        %v1020 = vld [vmem:[%s844] sm:$0x1]
        %v1021 = vld [vmem:[%s847] sm:$0x1]
        %vm1022 = vcmask 261120
        %v1023 = vsel %vm1022, %v1018, 0.0
        %1024 = vadd.xlane.f32.xlu0 %v1023
        %v1025 = vpop.xlane.xlu0 %1024
        %v1026 = vsel %vm1022, %v1019, 0.0
        %1027 = vadd.xlane.f32.xlu0 %v1026
        %v1028 = vpop.xlane.xlu0 %1027
        %v1029 = vrcp.pop 32.0
        %v1030 = vmul.f32 %v1025, %v1029
        %v1031 = vmul.f32 %v1028, %v1029
        %v1032 = vsub.f32 %v1018, %v1030
        %v1033 = vsub.f32 %v1019, %v1031
        %v1034 = vmul.f32 %v1032, %v1032
        %v1035 = vmul.f32 %v1033, %v1033
        %v1036 = vsel %vm1022, %v1034, 0.0
        %1037 = vadd.xlane.f32.xlu0 %v1036
        %v1038 = vpop.xlane.xlu0 %1037
        %v1039 = vsel %vm1022, %v1035, 0.0
        %1040 = vadd.xlane.f32.xlu0 %v1039
        %v1041 = vpop.xlane.xlu0 %1040
        %v1042 = vmul.f32 %v1038, %v1029
        %v1043 = vmul.f32 %v1041, %v1029
        %v1044 = vadd.f32 %v1042, 1e-05
        %v1045 = vadd.f32 %v1043, 1e-05
        %v1046 = vrsqrt.pop %v1044
        %v1047 = vrsqrt.pop %v1045
        %v1048 = vmul.f32 %v1032, %v1046
        %v1049 = vmul.f32 %v1033, %v1047
        %v1051 = vlaneseq
        %v1052 = vshrl.u32 %v1051, 7
        %v1053 = vsub.s32 0, %v1052
        %v1054 = vrot.slane %v1020, %v1053
        %v1056 = vmul.f32 %v1048, %v1054
        %v1057 = vmul.f32 %v1049, %v1054
        %v1059 = vlaneseq
        %v1060 = vshrl.u32 %v1059, 7
        %v1061 = vsub.s32 0, %v1060
        %v1062 = vrot.slane %v1021, %v1061
        %v1064 = vadd.f32 %v1056, %v1062
        %v1065 = vadd.f32 %v1057, %v1062
        %v1066 = vpack.c.bf16 %v1065, %v1064
        %v1067 = vld [vmem:[%s852] sm:$0xf]
        %v1068 = vld [vmem:[%s852 + $0x4] sm:$0xf]
        %v1069 = vld [vmem:[%s852 + $0x8] sm:$0xf]
        %v1070 = vld [vmem:[%s852 + $0xc] sm:$0xf]
        %v1071 = vld [vmem:[%s855] sm:$0x1]
        %v1073 = vlaneseq
        %v1074 = vshrl.u32 %v1073, 7
        %v1075 = vsub.s32 0, %v1074
        %v1076 = vrot.slane %v1071, %v1075
        %v1082 = vunpack.c.l.b16 %v1067
        %v1083 = vunpack.c.l.b16 %v1068
        %v1084 = vunpack.c.l.b16 %v1069
        %v1085 = vunpack.c.l.b16 %v1070
        %v1086 = vpack.c.b16 %v1083, %v1082
        %v1087 = vpack.c.b16 %v1085, %v1084
        %v1091 = vsel %vm1022, %v1066, 0
        %1093 = vmatprep.subr.bf16.mxu0 0
        %1094 = vmatpush1.bf16.msra.mxu0 %v1086
        %1095 = vmatprep.subr.bf16.mxu0 0
        %1096 = vmatpush1.bf16.msra.mxu0 %v1087
        %1097 = vmatprep.subr.bf16.mxu0 0
        %1098 = vmatpush1.bf16.msra.mxu0 0
        %1099 = vmatprep.subr.bf16.mxu0 0
        %1100 = vmatpush1.bf16.msra.mxu0 0
        %1101 = vmatprep.subr.bf16.mxu0 0
        %1102 = vmatpush1.bf16.msra.mxu0 0
        %1103 = vmatprep.subr.bf16.mxu0 0
        %1104 = vmatpush1.bf16.msra.mxu0 0
        %1105 = vmatprep.subr.bf16.mxu0 0
        %1106 = vmatpush1.bf16.msra.mxu0 0
        %1107 = vmatprep.subr.bf16.mxu0 0
        %1108 = vmatpush1.bf16.msra.mxu0 0
        %1109 = vmatprep.subr.bf16.mxu0 0
        %1110 = vmatpush1.bf16.msra.mxu0 0
        %1111 = vmatprep.subr.bf16.mxu0 0
        %1112 = vmatpush1.bf16.msra.mxu0 0
        %1113 = vmatprep.subr.bf16.mxu0 0
        %1114 = vmatpush1.bf16.msra.mxu0 0
        %1115 = vmatprep.subr.bf16.mxu0 0
        %1116 = vmatpush1.bf16.msra.mxu0 0
        %1117 = vmatprep.subr.bf16.mxu0 0
        %1118 = vmatpush1.bf16.msra.mxu0 0
        %1119 = vmatprep.subr.bf16.mxu0 0
        %1120 = vmatpush1.bf16.msra.mxu0 0
        %1121 = vmatprep.subr.bf16.mxu0 0
        %1122 = vmatpush1.bf16.msra.mxu0 0
        %1123 = vmatprep.subr.bf16.mxu0 0
        %1124 = vmatpush1.bf16.msra.mxu0 0
        %1125 = vmatprep.mubr.bf16.mxu0 0
        %1126 = vmatmul.mubr.bf16.gmra.mrb[0].mxu0 %v1091
        %v1127 = vpop.f32.mrb[0].mxu0
        %v1128 = vadd.f32 %v1076, %v1127
        %v1129 = vpop.f32.mrb[0].mxu0
        %v1130 = vpop.f32.mrb[0].mxu0
        %v1131 = vadd.f32 %v1076, %v1130
        %v1132 = vpop.f32.mrb[0].mxu0
        %1133 = vdwg.mxu0
        %v1134 = vmul.f32 %v1128, 0.35355338
        %v1135 = vmul.f32 %v1131, 0.35355338
        %v1136 = vlaneseq
        %v1137 = vand.u32 %v1136, 127
        %vm1138 = vcmp.lt.s32.totalorder %v1137, 5
        %v1139 = vsel %vm1138, 0.0, -1e+09
        %1141 = vrot.lane.b32.xlu0 %v1128, 96
        %v1142 = vpop.permute.xlu0 %1141
        %vm1143 = vcmask 64512
        %v1145 = vsel %vm1143, %v1134, 0
        %v1147 = vsel %vm1143, %v1142, 0
        %1149 = vmatprep.subr.mxu0 0.0
        %1150 = vmatpush1.xpose.msra.mxu0 %v1147
        %1151 = vmatprep.subr.mxu0 0.0
        %1152 = vmatpush1.xpose.msra.mxu0 0.0
        %1153 = vmatprep.subr.mxu0 0.0
        %1154 = vmatpush1.xpose.msra.mxu0 0.0
        %1155 = vmatprep.subr.mxu0 0.0
        %1156 = vmatpush1.xpose.msra.mxu0 0.0
        %1157 = vmatprep.subr.mxu0 0.0
        %1158 = vmatpush1.xpose.msra.mxu0 0.0
        %1159 = vmatprep.subr.mxu0 0.0
        %1160 = vmatpush1.xpose.msra.mxu0 0.0
        %1161 = vmatprep.subr.mxu0 0.0
        %1162 = vmatpush1.xpose.msra.mxu0 0.0
        %1163 = vmatprep.subr.mxu0 0.0
        %1164 = vmatpush1.xpose.msra.mxu0 0.0
        %1165 = vmatprep.subr.mxu0 0.0
        %1166 = vmatpush1.xpose.msra.mxu0 0.0
        %1167 = vmatprep.subr.mxu0 0.0
        %1168 = vmatpush1.xpose.msra.mxu0 0.0
        %1169 = vmatprep.subr.mxu0 0.0
        %1170 = vmatpush1.xpose.msra.mxu0 0.0
        %1171 = vmatprep.subr.mxu0 0.0
        %1172 = vmatpush1.xpose.msra.mxu0 0.0
        %1173 = vmatprep.subr.mxu0 0.0
        %1174 = vmatpush1.xpose.msra.mxu0 0.0
        %1175 = vmatprep.subr.mxu0 0.0
        %1176 = vmatpush1.xpose.msra.mxu0 0.0
        %1177 = vmatprep.subr.mxu0 0.0
        %1178 = vmatpush1.xpose.msra.mxu0 0.0
        %1179 = vmatprep.subr.mxu0 0.0
        %1180 = vmatpush1.xpose.msra.mxu0 0.0
        %1181 = vmatprep.subr.mxu0 0.0
        %1182 = vmatpush1.xpose.msra.mxu0 0.0
        %1183 = vmatprep.subr.mxu0 0.0
        %1184 = vmatpush1.xpose.msra.mxu0 0.0
        %1185 = vmatprep.subr.mxu0 0.0
        %1186 = vmatpush1.xpose.msra.mxu0 0.0
        %1187 = vmatprep.subr.mxu0 0.0
        %1188 = vmatpush1.xpose.msra.mxu0 0.0
        %1189 = vmatprep.subr.mxu0 0.0
        %1190 = vmatpush1.xpose.msra.mxu0 0.0
        %1191 = vmatprep.subr.mxu0 0.0
        %1192 = vmatpush1.xpose.msra.mxu0 0.0
        %1193 = vmatprep.subr.mxu0 0.0
        %1194 = vmatpush1.xpose.msra.mxu0 0.0
        %1195 = vmatprep.subr.mxu0 0.0
        %1196 = vmatpush1.xpose.msra.mxu0 0.0
        %1197 = vmatprep.subr.mxu0 0.0
        %1198 = vmatpush1.xpose.msra.mxu0 0.0
        %1199 = vmatprep.subr.mxu0 0.0
        %1200 = vmatpush1.xpose.msra.mxu0 0.0
        %1201 = vmatprep.subr.mxu0 0.0
        %1202 = vmatpush1.xpose.msra.mxu0 0.0
        %1203 = vmatprep.subr.mxu0 0.0
        %1204 = vmatpush1.xpose.msra.mxu0 0.0
        %1205 = vmatprep.subr.mxu0 0.0
        %1206 = vmatpush1.xpose.msra.mxu0 0.0
        %1207 = vmatprep.subr.mxu0 0.0
        %1208 = vmatpush1.xpose.msra.mxu0 0.0
        %1209 = vmatprep.subr.mxu0 0.0
        %1210 = vmatpush1.xpose.msra.mxu0 0.0
        %1211 = vmatprep.subr.mxu0 0.0
        %1212 = vmatpush1.xpose.msra.mxu0 0.0
        %1213 = vmatprep.mubr.f32.mxu0 0.0
        %1214 = vmatmul.mubr.f32.gmra.mrb[0].mxu0 %v1145
        %v1215 = vpop.f32.mrb[0].mxu0
        %v1216 = vadd.f32 %v1139, %v1215
        %v1217 = vpop.f32.mrb[0].mxu0
        %1218 = vdwg.mxu0
        %1220 = vrot.lane.b32.xlu0 %v1131, 96
        %v1221 = vpop.permute.xlu0 %1220
        %v1223 = vsel %vm1143, %v1135, 0
        %v1225 = vsel %vm1143, %v1221, 0
        %1227 = vmatprep.subr.mxu0 0.0
        %1228 = vmatpush1.xpose.msra.mxu0 %v1225
        %1229 = vmatprep.subr.mxu0 0.0
        %1230 = vmatpush1.xpose.msra.mxu0 0.0
        %1231 = vmatprep.subr.mxu0 0.0
        %1232 = vmatpush1.xpose.msra.mxu0 0.0
        %1233 = vmatprep.subr.mxu0 0.0
        %1234 = vmatpush1.xpose.msra.mxu0 0.0
        %1235 = vmatprep.subr.mxu0 0.0
        %1236 = vmatpush1.xpose.msra.mxu0 0.0
        %1237 = vmatprep.subr.mxu0 0.0
        %1238 = vmatpush1.xpose.msra.mxu0 0.0
        %1239 = vmatprep.subr.mxu0 0.0
        %1240 = vmatpush1.xpose.msra.mxu0 0.0
        %1241 = vmatprep.subr.mxu0 0.0
        %1242 = vmatpush1.xpose.msra.mxu0 0.0
        %1243 = vmatprep.subr.mxu0 0.0
        %1244 = vmatpush1.xpose.msra.mxu0 0.0
        %1245 = vmatprep.subr.mxu0 0.0
        %1246 = vmatpush1.xpose.msra.mxu0 0.0
        %1247 = vmatprep.subr.mxu0 0.0
        %1248 = vmatpush1.xpose.msra.mxu0 0.0
        %1249 = vmatprep.subr.mxu0 0.0
        %1250 = vmatpush1.xpose.msra.mxu0 0.0
        %1251 = vmatprep.subr.mxu0 0.0
        %1252 = vmatpush1.xpose.msra.mxu0 0.0
        %1253 = vmatprep.subr.mxu0 0.0
        %1254 = vmatpush1.xpose.msra.mxu0 0.0
        %1255 = vmatprep.subr.mxu0 0.0
        %1256 = vmatpush1.xpose.msra.mxu0 0.0
        %1257 = vmatprep.subr.mxu0 0.0
        %1258 = vmatpush1.xpose.msra.mxu0 0.0
        %1259 = vmatprep.subr.mxu0 0.0
        %1260 = vmatpush1.xpose.msra.mxu0 0.0
        %1261 = vmatprep.subr.mxu0 0.0
        %1262 = vmatpush1.xpose.msra.mxu0 0.0
        %1263 = vmatprep.subr.mxu0 0.0
        %1264 = vmatpush1.xpose.msra.mxu0 0.0
        %1265 = vmatprep.subr.mxu0 0.0
        %1266 = vmatpush1.xpose.msra.mxu0 0.0
        %1267 = vmatprep.subr.mxu0 0.0
        %1268 = vmatpush1.xpose.msra.mxu0 0.0
        %1269 = vmatprep.subr.mxu0 0.0
        %1270 = vmatpush1.xpose.msra.mxu0 0.0
        %1271 = vmatprep.subr.mxu0 0.0
        %1272 = vmatpush1.xpose.msra.mxu0 0.0
        %1273 = vmatprep.subr.mxu0 0.0
        %1274 = vmatpush1.xpose.msra.mxu0 0.0
        %1275 = vmatprep.subr.mxu0 0.0
        %1276 = vmatpush1.xpose.msra.mxu0 0.0
        %1277 = vmatprep.subr.mxu0 0.0
        %1278 = vmatpush1.xpose.msra.mxu0 0.0
        %1279 = vmatprep.subr.mxu0 0.0
        %1280 = vmatpush1.xpose.msra.mxu0 0.0
        %1281 = vmatprep.subr.mxu0 0.0
        %1282 = vmatpush1.xpose.msra.mxu0 0.0
        %1283 = vmatprep.subr.mxu0 0.0
        %1284 = vmatpush1.xpose.msra.mxu0 0.0
        %1285 = vmatprep.subr.mxu0 0.0
        %1286 = vmatpush1.xpose.msra.mxu0 0.0
        %1287 = vmatprep.subr.mxu0 0.0
        %1288 = vmatpush1.xpose.msra.mxu0 0.0
        %1289 = vmatprep.subr.mxu0 0.0
        %1290 = vmatpush1.xpose.msra.mxu0 0.0
        %1291 = vmatprep.mubr.f32.mxu0 0.0
        %1292 = vmatmul.mubr.f32.gmra.mrb[0].mxu0 %v1223
        %v1293 = vpop.f32.mrb[0].mxu0
        %v1294 = vadd.f32 %v1139, %v1293
        %v1295 = vpop.f32.mrb[0].mxu0
        %1296 = vdwg.mxu0
        %v1297 = vsel %vm1143, %v1216, -inf
        %1298 = vmax.xlane.f32.xlu0 %v1297
        %v1299 = vpop.xlane.xlu0 %1298
        %v1300 = vsel %vm1143, %v1294, -inf
        %1301 = vmax.xlane.f32.xlu0 %v1300
        %v1302 = vpop.xlane.xlu0 %1301
        %v1303 = vsub.f32 %v1216, %v1299
        %v1304 = vsub.f32 %v1294, %v1302
        %v1305 = vmul.f32 %v1303, 1.442695
        %v1306 = vpow.pop %v1305
        %v1307 = vmul.f32 %v1304, 1.442695
        %v1308 = vpow.pop %v1307
        %v1309 = vsel %vm1143, %v1306, 0.0
        %1310 = vadd.xlane.f32.xlu0 %v1309
        %v1311 = vpop.xlane.xlu0 %1310
        %v1312 = vsel %vm1143, %v1308, 0.0
        %1313 = vadd.xlane.f32.xlu0 %v1312
        %v1314 = vpop.xlane.xlu0 %1313
        %v1315 = vrcp.pop %v1311
        %v1316 = vrcp.pop %v1314
        %v1317 = vmul.f32 %v1306, %v1315
        %v1318 = vmul.f32 %v1308, %v1316
        %1319 = vrot.lane.b32.xlu0 %v1128, 64
        %v1320 = vpop.permute.xlu0 %1319
        %v1323 = vsel %vm1143, %v1317, 0
        %1325 = vmatprep.subr.mxu0 0.0
        %1326 = vmatpush1.msra.mxu0 %v1320
        %1327 = vmatprep.subr.mxu0 0.0
        %1328 = vmatpush1.msra.mxu0 0.0
        %1329 = vmatprep.subr.mxu0 0.0
        %1330 = vmatpush1.msra.mxu0 0.0
        %1331 = vmatprep.subr.mxu0 0.0
        %1332 = vmatpush1.msra.mxu0 0.0
        %1333 = vmatprep.subr.mxu0 0.0
        %1334 = vmatpush1.msra.mxu0 0.0
        %1335 = vmatprep.subr.mxu0 0.0
        %1336 = vmatpush1.msra.mxu0 0.0
        %1337 = vmatprep.subr.mxu0 0.0
        %1338 = vmatpush1.msra.mxu0 0.0
        %1339 = vmatprep.subr.mxu0 0.0
        %1340 = vmatpush1.msra.mxu0 0.0
        %1341 = vmatprep.subr.mxu0 0.0
        %1342 = vmatpush1.msra.mxu0 0.0
        %1343 = vmatprep.subr.mxu0 0.0
        %1344 = vmatpush1.msra.mxu0 0.0
        %1345 = vmatprep.subr.mxu0 0.0
        %1346 = vmatpush1.msra.mxu0 0.0
        %1347 = vmatprep.subr.mxu0 0.0
        %1348 = vmatpush1.msra.mxu0 0.0
        %1349 = vmatprep.subr.mxu0 0.0
        %1350 = vmatpush1.msra.mxu0 0.0
        %1351 = vmatprep.subr.mxu0 0.0
        %1352 = vmatpush1.msra.mxu0 0.0
        %1353 = vmatprep.subr.mxu0 0.0
        %1354 = vmatpush1.msra.mxu0 0.0
        %1355 = vmatprep.subr.mxu0 0.0
        %1356 = vmatpush1.msra.mxu0 0.0
        %1357 = vmatprep.subr.mxu0 0.0
        %1358 = vmatpush1.msra.mxu0 0.0
        %1359 = vmatprep.subr.mxu0 0.0
        %1360 = vmatpush1.msra.mxu0 0.0
        %1361 = vmatprep.subr.mxu0 0.0
        %1362 = vmatpush1.msra.mxu0 0.0
        %1363 = vmatprep.subr.mxu0 0.0
        %1364 = vmatpush1.msra.mxu0 0.0
        %1365 = vmatprep.subr.mxu0 0.0
        %1366 = vmatpush1.msra.mxu0 0.0
        %1367 = vmatprep.subr.mxu0 0.0
        %1368 = vmatpush1.msra.mxu0 0.0
        %1369 = vmatprep.subr.mxu0 0.0
        %1370 = vmatpush1.msra.mxu0 0.0
        %1371 = vmatprep.subr.mxu0 0.0
        %1372 = vmatpush1.msra.mxu0 0.0
        %1373 = vmatprep.subr.mxu0 0.0
        %1374 = vmatpush1.msra.mxu0 0.0
        %1375 = vmatprep.subr.mxu0 0.0
        %1376 = vmatpush1.msra.mxu0 0.0
        %1377 = vmatprep.subr.mxu0 0.0
        %1378 = vmatpush1.msra.mxu0 0.0
        %1379 = vmatprep.subr.mxu0 0.0
        %1380 = vmatpush1.msra.mxu0 0.0
        %1381 = vmatprep.subr.mxu0 0.0
        %1382 = vmatpush1.msra.mxu0 0.0
        %1383 = vmatprep.subr.mxu0 0.0
        %1384 = vmatpush1.msra.mxu0 0.0
        %1385 = vmatprep.subr.mxu0 0.0
        %1386 = vmatpush1.msra.mxu0 0.0
        %1387 = vmatprep.subr.mxu0 0.0
        %1388 = vmatpush1.msra.mxu0 0.0
        %1389 = vmatprep.mubr.f32.mxu0 0.0
        %1390 = vmatmul.mubr.f32.gmra.mrb[0].mxu0 %v1323
        %v1391 = vpop.f32.mrb[0].mxu0
        %v1392 = vadd.f32 0.0, %v1391
        %v1393 = vpop.f32.mrb[0].mxu0
        %1394 = vdwg.mxu0
        %1395 = vrot.lane.b32.xlu0 %v1131, 64
        %v1396 = vpop.permute.xlu0 %1395
        %v1399 = vsel %vm1143, %v1318, 0
        %1401 = vmatprep.subr.mxu0 0.0
        %1402 = vmatpush1.msra.mxu0 %v1396
        %1403 = vmatprep.subr.mxu0 0.0
        %1404 = vmatpush1.msra.mxu0 0.0
        %1405 = vmatprep.subr.mxu0 0.0
        %1406 = vmatpush1.msra.mxu0 0.0
        %1407 = vmatprep.subr.mxu0 0.0
        %1408 = vmatpush1.msra.mxu0 0.0
        %1409 = vmatprep.subr.mxu0 0.0
        %1410 = vmatpush1.msra.mxu0 0.0
        %1411 = vmatprep.subr.mxu0 0.0
        %1412 = vmatpush1.msra.mxu0 0.0
        %1413 = vmatprep.subr.mxu0 0.0
        %1414 = vmatpush1.msra.mxu0 0.0
        %1415 = vmatprep.subr.mxu0 0.0
        %1416 = vmatpush1.msra.mxu0 0.0
        %1417 = vmatprep.subr.mxu0 0.0
        %1418 = vmatpush1.msra.mxu0 0.0
        %1419 = vmatprep.subr.mxu0 0.0
        %1420 = vmatpush1.msra.mxu0 0.0
        %1421 = vmatprep.subr.mxu0 0.0
        %1422 = vmatpush1.msra.mxu0 0.0
        %1423 = vmatprep.subr.mxu0 0.0
        %1424 = vmatpush1.msra.mxu0 0.0
        %1425 = vmatprep.subr.mxu0 0.0
        %1426 = vmatpush1.msra.mxu0 0.0
        %1427 = vmatprep.subr.mxu0 0.0
        %1428 = vmatpush1.msra.mxu0 0.0
        %1429 = vmatprep.subr.mxu0 0.0
        %1430 = vmatpush1.msra.mxu0 0.0
        %1431 = vmatprep.subr.mxu0 0.0
        %1432 = vmatpush1.msra.mxu0 0.0
        %1433 = vmatprep.subr.mxu0 0.0
        %1434 = vmatpush1.msra.mxu0 0.0
        %1435 = vmatprep.subr.mxu0 0.0
        %1436 = vmatpush1.msra.mxu0 0.0
        %1437 = vmatprep.subr.mxu0 0.0
        %1438 = vmatpush1.msra.mxu0 0.0
        %1439 = vmatprep.subr.mxu0 0.0
        %1440 = vmatpush1.msra.mxu0 0.0
        %1441 = vmatprep.subr.mxu0 0.0
        %1442 = vmatpush1.msra.mxu0 0.0
        %1443 = vmatprep.subr.mxu0 0.0
        %1444 = vmatpush1.msra.mxu0 0.0
        %1445 = vmatprep.subr.mxu0 0.0
        %1446 = vmatpush1.msra.mxu0 0.0
        %1447 = vmatprep.subr.mxu0 0.0
        %1448 = vmatpush1.msra.mxu0 0.0
        %1449 = vmatprep.subr.mxu0 0.0
        %1450 = vmatpush1.msra.mxu0 0.0
        %1451 = vmatprep.subr.mxu0 0.0
        %1452 = vmatpush1.msra.mxu0 0.0
        %1453 = vmatprep.subr.mxu0 0.0
        %1454 = vmatpush1.msra.mxu0 0.0
        %1455 = vmatprep.subr.mxu0 0.0
        %1456 = vmatpush1.msra.mxu0 0.0
        %1457 = vmatprep.subr.mxu0 0.0
        %1458 = vmatpush1.msra.mxu0 0.0
        %1459 = vmatprep.subr.mxu0 0.0
        %1460 = vmatpush1.msra.mxu0 0.0
        %1461 = vmatprep.subr.mxu0 0.0
        %1462 = vmatpush1.msra.mxu0 0.0
        %1463 = vmatprep.subr.mxu0 0.0
        %1464 = vmatpush1.msra.mxu0 0.0
        %1465 = vmatprep.mubr.f32.mxu0 0.0
        %1466 = vmatmul.mubr.f32.gmra.mrb[0].mxu0 %v1399
        %v1467 = vpop.f32.mrb[0].mxu0
        %v1468 = vadd.f32 0.0, %v1467
        %v1469 = vpop.f32.mrb[0].mxu0
        %1470 = vdwg.mxu0
        %1471 = vst.msk [vmem:[#allocation3] sm:$0xff] %vm1143, %v1392
        %1472 = vst.msk [vmem:[#allocation3 + $0x8] sm:$0xff] %vm1143, %v1468
        %1473 = vrot.lane.b32.xlu0 %v1134, 120
        %v1474 = vpop.permute.xlu0 %1473
        %1475 = vrot.lane.b32.xlu0 %v1128, 88
        %v1476 = vpop.permute.xlu0 %1475
        %v1477 = vsel %vm1143, %v1474, 0
        %v1479 = vsel %vm1143, %v1476, 0
        %1481 = vmatprep.subr.mxu0 0.0
        %1482 = vmatpush1.xpose.msra.mxu0 %v1479
        %1483 = vmatprep.subr.mxu0 0.0
        %1484 = vmatpush1.xpose.msra.mxu0 0.0
        %1485 = vmatprep.subr.mxu0 0.0
        %1486 = vmatpush1.xpose.msra.mxu0 0.0
        %1487 = vmatprep.subr.mxu0 0.0
        %1488 = vmatpush1.xpose.msra.mxu0 0.0
        %1489 = vmatprep.subr.mxu0 0.0
        %1490 = vmatpush1.xpose.msra.mxu0 0.0
        %1491 = vmatprep.subr.mxu0 0.0
        %1492 = vmatpush1.xpose.msra.mxu0 0.0
        %1493 = vmatprep.subr.mxu0 0.0
        %1494 = vmatpush1.xpose.msra.mxu0 0.0
        %1495 = vmatprep.subr.mxu0 0.0
        %1496 = vmatpush1.xpose.msra.mxu0 0.0
        %1497 = vmatprep.subr.mxu0 0.0
        %1498 = vmatpush1.xpose.msra.mxu0 0.0
        %1499 = vmatprep.subr.mxu0 0.0
        %1500 = vmatpush1.xpose.msra.mxu0 0.0
        %1501 = vmatprep.subr.mxu0 0.0
        %1502 = vmatpush1.xpose.msra.mxu0 0.0
        %1503 = vmatprep.subr.mxu0 0.0
        %1504 = vmatpush1.xpose.msra.mxu0 0.0
        %1505 = vmatprep.subr.mxu0 0.0
        %1506 = vmatpush1.xpose.msra.mxu0 0.0
        %1507 = vmatprep.subr.mxu0 0.0
        %1508 = vmatpush1.xpose.msra.mxu0 0.0
        %1509 = vmatprep.subr.mxu0 0.0
        %1510 = vmatpush1.xpose.msra.mxu0 0.0
        %1511 = vmatprep.subr.mxu0 0.0
        %1512 = vmatpush1.xpose.msra.mxu0 0.0
        %1513 = vmatprep.subr.mxu0 0.0
        %1514 = vmatpush1.xpose.msra.mxu0 0.0
        %1515 = vmatprep.subr.mxu0 0.0
        %1516 = vmatpush1.xpose.msra.mxu0 0.0
        %1517 = vmatprep.subr.mxu0 0.0
        %1518 = vmatpush1.xpose.msra.mxu0 0.0
        %1519 = vmatprep.subr.mxu0 0.0
        %1520 = vmatpush1.xpose.msra.mxu0 0.0
        %1521 = vmatprep.subr.mxu0 0.0
        %1522 = vmatpush1.xpose.msra.mxu0 0.0
        %1523 = vmatprep.subr.mxu0 0.0
        %1524 = vmatpush1.xpose.msra.mxu0 0.0
        %1525 = vmatprep.subr.mxu0 0.0
        %1526 = vmatpush1.xpose.msra.mxu0 0.0
        %1527 = vmatprep.subr.mxu0 0.0
        %1528 = vmatpush1.xpose.msra.mxu0 0.0
        %1529 = vmatprep.subr.mxu0 0.0
        %1530 = vmatpush1.xpose.msra.mxu0 0.0
        %1531 = vmatprep.subr.mxu0 0.0
        %1532 = vmatpush1.xpose.msra.mxu0 0.0
        %1533 = vmatprep.subr.mxu0 0.0
        %1534 = vmatpush1.xpose.msra.mxu0 0.0
        %1535 = vmatprep.subr.mxu0 0.0
        %1536 = vmatpush1.xpose.msra.mxu0 0.0
        %1537 = vmatprep.subr.mxu0 0.0
        %1538 = vmatpush1.xpose.msra.mxu0 0.0
        %1539 = vmatprep.subr.mxu0 0.0
        %1540 = vmatpush1.xpose.msra.mxu0 0.0
        %1541 = vmatprep.subr.mxu0 0.0
        %1542 = vmatpush1.xpose.msra.mxu0 0.0
        %1543 = vmatprep.subr.mxu0 0.0
        %1544 = vmatpush1.xpose.msra.mxu0 0.0
        %1545 = vmatprep.mubr.f32.mxu0 0.0
        %1546 = vmatmul.mubr.f32.gmra.mrb[0].mxu0 %v1477
        %v1547 = vpop.f32.mrb[0].mxu0
        %v1548 = vadd.f32 %v1139, %v1547
        %v1549 = vpop.f32.mrb[0].mxu0
        %1550 = vdwg.mxu0
        %1551 = vrot.lane.b32.xlu0 %v1135, 120
        %v1552 = vpop.permute.xlu0 %1551
        %1553 = vrot.lane.b32.xlu0 %v1131, 88
        %v1554 = vpop.permute.xlu0 %1553
        %v1555 = vsel %vm1143, %v1552, 0
        %v1557 = vsel %vm1143, %v1554, 0
        %1559 = vmatprep.subr.mxu0 0.0
        %1560 = vmatpush1.xpose.msra.mxu0 %v1557
        %1561 = vmatprep.subr.mxu0 0.0
        %1562 = vmatpush1.xpose.msra.mxu0 0.0
        %1563 = vmatprep.subr.mxu0 0.0
        %1564 = vmatpush1.xpose.msra.mxu0 0.0
        %1565 = vmatprep.subr.mxu0 0.0
        %1566 = vmatpush1.xpose.msra.mxu0 0.0
        %1567 = vmatprep.subr.mxu0 0.0
        %1568 = vmatpush1.xpose.msra.mxu0 0.0
        %1569 = vmatprep.subr.mxu0 0.0
        %1570 = vmatpush1.xpose.msra.mxu0 0.0
        %1571 = vmatprep.subr.mxu0 0.0
        %1572 = vmatpush1.xpose.msra.mxu0 0.0
        %1573 = vmatprep.subr.mxu0 0.0
        %1574 = vmatpush1.xpose.msra.mxu0 0.0
        %1575 = vmatprep.subr.mxu0 0.0
        %1576 = vmatpush1.xpose.msra.mxu0 0.0
        %1577 = vmatprep.subr.mxu0 0.0
        %1578 = vmatpush1.xpose.msra.mxu0 0.0
        %1579 = vmatprep.subr.mxu0 0.0
        %1580 = vmatpush1.xpose.msra.mxu0 0.0
        %1581 = vmatprep.subr.mxu0 0.0
        %1582 = vmatpush1.xpose.msra.mxu0 0.0
        %1583 = vmatprep.subr.mxu0 0.0
        %1584 = vmatpush1.xpose.msra.mxu0 0.0
        %1585 = vmatprep.subr.mxu0 0.0
        %1586 = vmatpush1.xpose.msra.mxu0 0.0
        %1587 = vmatprep.subr.mxu0 0.0
        %1588 = vmatpush1.xpose.msra.mxu0 0.0
        %1589 = vmatprep.subr.mxu0 0.0
        %1590 = vmatpush1.xpose.msra.mxu0 0.0
        %1591 = vmatprep.subr.mxu0 0.0
        %1592 = vmatpush1.xpose.msra.mxu0 0.0
        %1593 = vmatprep.subr.mxu0 0.0
        %1594 = vmatpush1.xpose.msra.mxu0 0.0
        %1595 = vmatprep.subr.mxu0 0.0
        %1596 = vmatpush1.xpose.msra.mxu0 0.0
        %1597 = vmatprep.subr.mxu0 0.0
        %1598 = vmatpush1.xpose.msra.mxu0 0.0
        %1599 = vmatprep.subr.mxu0 0.0
        %1600 = vmatpush1.xpose.msra.mxu0 0.0
        %1601 = vmatprep.subr.mxu0 0.0
        %1602 = vmatpush1.xpose.msra.mxu0 0.0
        %1603 = vmatprep.subr.mxu0 0.0
        %1604 = vmatpush1.xpose.msra.mxu0 0.0
        %1605 = vmatprep.subr.mxu0 0.0
        %1606 = vmatpush1.xpose.msra.mxu0 0.0
        %1607 = vmatprep.subr.mxu0 0.0
        %1608 = vmatpush1.xpose.msra.mxu0 0.0
        %1609 = vmatprep.subr.mxu0 0.0
        %1610 = vmatpush1.xpose.msra.mxu0 0.0
        %1611 = vmatprep.subr.mxu0 0.0
        %1612 = vmatpush1.xpose.msra.mxu0 0.0
        %1613 = vmatprep.subr.mxu0 0.0
        %1614 = vmatpush1.xpose.msra.mxu0 0.0
        %1615 = vmatprep.subr.mxu0 0.0
        %1616 = vmatpush1.xpose.msra.mxu0 0.0
        %1617 = vmatprep.subr.mxu0 0.0
        %1618 = vmatpush1.xpose.msra.mxu0 0.0
        %1619 = vmatprep.subr.mxu0 0.0
        %1620 = vmatpush1.xpose.msra.mxu0 0.0
        %1621 = vmatprep.subr.mxu0 0.0
        %1622 = vmatpush1.xpose.msra.mxu0 0.0
        %1623 = vmatprep.mubr.f32.mxu0 0.0
        %1624 = vmatmul.mubr.f32.gmra.mrb[0].mxu0 %v1555
        %v1625 = vpop.f32.mrb[0].mxu0
        %v1626 = vadd.f32 %v1139, %v1625
        %v1627 = vpop.f32.mrb[0].mxu0
        %1628 = vdwg.mxu0
        %v1629 = vsel %vm1143, %v1548, -inf
        %1630 = vmax.xlane.f32.xlu0 %v1629
        %v1631 = vpop.xlane.xlu0 %1630
        %v1632 = vsel %vm1143, %v1626, -inf
        %1633 = vmax.xlane.f32.xlu0 %v1632
        %v1634 = vpop.xlane.xlu0 %1633
        %v1635 = vsub.f32 %v1548, %v1631
        %v1636 = vsub.f32 %v1626, %v1634
        %v1637 = vmul.f32 %v1635, 1.442695
        %v1638 = vpow.pop %v1637
        %v1639 = vmul.f32 %v1636, 1.442695
        %v1640 = vpow.pop %v1639
        %v1641 = vsel %vm1143, %v1638, 0.0
        %1642 = vadd.xlane.f32.xlu0 %v1641
        %v1643 = vpop.xlane.xlu0 %1642
        %v1644 = vsel %vm1143, %v1640, 0.0
        %1645 = vadd.xlane.f32.xlu0 %v1644
        %v1646 = vpop.xlane.xlu0 %1645
        %v1647 = vrcp.pop %v1643
        %v1648 = vrcp.pop %v1646
        %v1649 = vmul.f32 %v1638, %v1647
        %v1650 = vmul.f32 %v1640, %v1648
        %1651 = vrot.lane.b32.xlu0 %v1128, 56
        %v1652 = vpop.permute.xlu0 %1651
        %v1655 = vsel %vm1143, %v1649, 0
        %1657 = vmatprep.subr.mxu0 0.0
        %1658 = vmatpush1.msra.mxu0 %v1652
        %1659 = vmatprep.subr.mxu0 0.0
        %1660 = vmatpush1.msra.mxu0 0.0
        %1661 = vmatprep.subr.mxu0 0.0
        %1662 = vmatpush1.msra.mxu0 0.0
        %1663 = vmatprep.subr.mxu0 0.0
        %1664 = vmatpush1.msra.mxu0 0.0
        %1665 = vmatprep.subr.mxu0 0.0
        %1666 = vmatpush1.msra.mxu0 0.0
        %1667 = vmatprep.subr.mxu0 0.0
        %1668 = vmatpush1.msra.mxu0 0.0
        %1669 = vmatprep.subr.mxu0 0.0
        %1670 = vmatpush1.msra.mxu0 0.0
        %1671 = vmatprep.subr.mxu0 0.0
        %1672 = vmatpush1.msra.mxu0 0.0
        %1673 = vmatprep.subr.mxu0 0.0
        %1674 = vmatpush1.msra.mxu0 0.0
        %1675 = vmatprep.subr.mxu0 0.0
        %1676 = vmatpush1.msra.mxu0 0.0
        %1677 = vmatprep.subr.mxu0 0.0
        %1678 = vmatpush1.msra.mxu0 0.0
        %1679 = vmatprep.subr.mxu0 0.0
        %1680 = vmatpush1.msra.mxu0 0.0
        %1681 = vmatprep.subr.mxu0 0.0
        %1682 = vmatpush1.msra.mxu0 0.0
        %1683 = vmatprep.subr.mxu0 0.0
        %1684 = vmatpush1.msra.mxu0 0.0
        %1685 = vmatprep.subr.mxu0 0.0
        %1686 = vmatpush1.msra.mxu0 0.0
        %1687 = vmatprep.subr.mxu0 0.0
        %1688 = vmatpush1.msra.mxu0 0.0
        %1689 = vmatprep.subr.mxu0 0.0
        %1690 = vmatpush1.msra.mxu0 0.0
        %1691 = vmatprep.subr.mxu0 0.0
        %1692 = vmatpush1.msra.mxu0 0.0
        %1693 = vmatprep.subr.mxu0 0.0
        %1694 = vmatpush1.msra.mxu0 0.0
        %1695 = vmatprep.subr.mxu0 0.0
        %1696 = vmatpush1.msra.mxu0 0.0
        %1697 = vmatprep.subr.mxu0 0.0
        %1698 = vmatpush1.msra.mxu0 0.0
        %1699 = vmatprep.subr.mxu0 0.0
        %1700 = vmatpush1.msra.mxu0 0.0
        %1701 = vmatprep.subr.mxu0 0.0
        %1702 = vmatpush1.msra.mxu0 0.0
        %1703 = vmatprep.subr.mxu0 0.0
        %1704 = vmatpush1.msra.mxu0 0.0
        %1705 = vmatprep.subr.mxu0 0.0
        %1706 = vmatpush1.msra.mxu0 0.0
        %1707 = vmatprep.subr.mxu0 0.0
        %1708 = vmatpush1.msra.mxu0 0.0
        %1709 = vmatprep.subr.mxu0 0.0
        %1710 = vmatpush1.msra.mxu0 0.0
        %1711 = vmatprep.subr.mxu0 0.0
        %1712 = vmatpush1.msra.mxu0 0.0
        %1713 = vmatprep.subr.mxu0 0.0
        %1714 = vmatpush1.msra.mxu0 0.0
        %1715 = vmatprep.subr.mxu0 0.0
        %1716 = vmatpush1.msra.mxu0 0.0
        %1717 = vmatprep.subr.mxu0 0.0
        %1718 = vmatpush1.msra.mxu0 0.0
        %1719 = vmatprep.subr.mxu0 0.0
        %1720 = vmatpush1.msra.mxu0 0.0
        %1721 = vmatprep.mubr.f32.mxu0 0.0
        %1722 = vmatmul.mubr.f32.gmra.mrb[0].mxu0 %v1655
        %v1723 = vpop.f32.mrb[0].mxu0
        %v1724 = vadd.f32 0.0, %v1723
        %v1725 = vpop.f32.mrb[0].mxu0
        %1726 = vdwg.mxu0
        %1727 = vrot.lane.b32.xlu0 %v1131, 56
        %v1728 = vpop.permute.xlu0 %1727
        %v1731 = vsel %vm1143, %v1650, 0
        %1733 = vmatprep.subr.mxu0 0.0
        %1734 = vmatpush1.msra.mxu0 %v1728
        %1735 = vmatprep.subr.mxu0 0.0
        %1736 = vmatpush1.msra.mxu0 0.0
        %1737 = vmatprep.subr.mxu0 0.0
        %1738 = vmatpush1.msra.mxu0 0.0
        %1739 = vmatprep.subr.mxu0 0.0
        %1740 = vmatpush1.msra.mxu0 0.0
        %1741 = vmatprep.subr.mxu0 0.0
        %1742 = vmatpush1.msra.mxu0 0.0
        %1743 = vmatprep.subr.mxu0 0.0
        %1744 = vmatpush1.msra.mxu0 0.0
        %1745 = vmatprep.subr.mxu0 0.0
        %1746 = vmatpush1.msra.mxu0 0.0
        %1747 = vmatprep.subr.mxu0 0.0
        %1748 = vmatpush1.msra.mxu0 0.0
        %1749 = vmatprep.subr.mxu0 0.0
        %1750 = vmatpush1.msra.mxu0 0.0
        %1751 = vmatprep.subr.mxu0 0.0
        %1752 = vmatpush1.msra.mxu0 0.0
        %1753 = vmatprep.subr.mxu0 0.0
        %1754 = vmatpush1.msra.mxu0 0.0
        %1755 = vmatprep.subr.mxu0 0.0
        %1756 = vmatpush1.msra.mxu0 0.0
        %1757 = vmatprep.subr.mxu0 0.0
        %1758 = vmatpush1.msra.mxu0 0.0
        %1759 = vmatprep.subr.mxu0 0.0
        %1760 = vmatpush1.msra.mxu0 0.0
        %1761 = vmatprep.subr.mxu0 0.0
        %1762 = vmatpush1.msra.mxu0 0.0
        %1763 = vmatprep.subr.mxu0 0.0
        %1764 = vmatpush1.msra.mxu0 0.0
        %1765 = vmatprep.subr.mxu0 0.0
        %1766 = vmatpush1.msra.mxu0 0.0
        %1767 = vmatprep.subr.mxu0 0.0
        %1768 = vmatpush1.msra.mxu0 0.0
        %1769 = vmatprep.subr.mxu0 0.0
        %1770 = vmatpush1.msra.mxu0 0.0
        %1771 = vmatprep.subr.mxu0 0.0
        %1772 = vmatpush1.msra.mxu0 0.0
        %1773 = vmatprep.subr.mxu0 0.0
        %1774 = vmatpush1.msra.mxu0 0.0
        %1775 = vmatprep.subr.mxu0 0.0
        %1776 = vmatpush1.msra.mxu0 0.0
        %1777 = vmatprep.subr.mxu0 0.0
        %1778 = vmatpush1.msra.mxu0 0.0
        %1779 = vmatprep.subr.mxu0 0.0
        %1780 = vmatpush1.msra.mxu0 0.0
        %1781 = vmatprep.subr.mxu0 0.0
        %1782 = vmatpush1.msra.mxu0 0.0
        %1783 = vmatprep.subr.mxu0 0.0
        %1784 = vmatpush1.msra.mxu0 0.0
        %1785 = vmatprep.subr.mxu0 0.0
        %1786 = vmatpush1.msra.mxu0 0.0
        %1787 = vmatprep.subr.mxu0 0.0
        %1788 = vmatpush1.msra.mxu0 0.0
        %1789 = vmatprep.subr.mxu0 0.0
        %1790 = vmatpush1.msra.mxu0 0.0
        %1791 = vmatprep.subr.mxu0 0.0
        %1792 = vmatpush1.msra.mxu0 0.0
        %1793 = vmatprep.subr.mxu0 0.0
        %1794 = vmatpush1.msra.mxu0 0.0
        %1795 = vmatprep.subr.mxu0 0.0
        %1796 = vmatpush1.msra.mxu0 0.0
        %1797 = vmatprep.mubr.f32.mxu0 0.0
        %1798 = vmatmul.mubr.f32.gmra.mrb[0].mxu0 %v1731
        %v1799 = vpop.f32.mrb[0].mxu0
        %v1800 = vadd.f32 0.0, %v1799
        %v1801 = vpop.f32.mrb[0].mxu0
        %1802 = vdwg.mxu0
        %1805 = vrot.lane.b32.xlu0 %v1724, 8
        %v1806 = vpop.permute.xlu0 %1805
        %1807 = vrot.lane.b32.xlu0 %v1800, 8
        %v1808 = vpop.permute.xlu0 %1807
        %vm1811 = vcmask 130112
        %1812 = vst.msk [vmem:[#allocation3] sm:$0xff] %vm1811, %v1806
        %1813 = vst.msk [vmem:[#allocation3 + $0x8] sm:$0xff] %vm1811, %v1808
        %1814 = vrot.lane.b32.xlu0 %v1134, 112
        %v1815 = vpop.permute.xlu0 %1814
        %1816 = vrot.lane.b32.xlu0 %v1128, 80
        %v1817 = vpop.permute.xlu0 %1816
        %v1818 = vsel %vm1143, %v1815, 0
        %v1820 = vsel %vm1143, %v1817, 0
        %1822 = vmatprep.subr.mxu0 0.0
        %1823 = vmatpush1.xpose.msra.mxu0 %v1820
        %1824 = vmatprep.subr.mxu0 0.0
        %1825 = vmatpush1.xpose.msra.mxu0 0.0
        %1826 = vmatprep.subr.mxu0 0.0
        %1827 = vmatpush1.xpose.msra.mxu0 0.0
        %1828 = vmatprep.subr.mxu0 0.0
        %1829 = vmatpush1.xpose.msra.mxu0 0.0
        %1830 = vmatprep.subr.mxu0 0.0
        %1831 = vmatpush1.xpose.msra.mxu0 0.0
        %1832 = vmatprep.subr.mxu0 0.0
        %1833 = vmatpush1.xpose.msra.mxu0 0.0
        %1834 = vmatprep.subr.mxu0 0.0
        %1835 = vmatpush1.xpose.msra.mxu0 0.0
        %1836 = vmatprep.subr.mxu0 0.0
        %1837 = vmatpush1.xpose.msra.mxu0 0.0
        %1838 = vmatprep.subr.mxu0 0.0
        %1839 = vmatpush1.xpose.msra.mxu0 0.0
        %1840 = vmatprep.subr.mxu0 0.0
        %1841 = vmatpush1.xpose.msra.mxu0 0.0
        %1842 = vmatprep.subr.mxu0 0.0
        %1843 = vmatpush1.xpose.msra.mxu0 0.0
        %1844 = vmatprep.subr.mxu0 0.0
        %1845 = vmatpush1.xpose.msra.mxu0 0.0
        %1846 = vmatprep.subr.mxu0 0.0
        %1847 = vmatpush1.xpose.msra.mxu0 0.0
        %1848 = vmatprep.subr.mxu0 0.0
        %1849 = vmatpush1.xpose.msra.mxu0 0.0
        %1850 = vmatprep.subr.mxu0 0.0
        %1851 = vmatpush1.xpose.msra.mxu0 0.0
        %1852 = vmatprep.subr.mxu0 0.0
        %1853 = vmatpush1.xpose.msra.mxu0 0.0
        %1854 = vmatprep.subr.mxu0 0.0
        %1855 = vmatpush1.xpose.msra.mxu0 0.0
        %1856 = vmatprep.subr.mxu0 0.0
        %1857 = vmatpush1.xpose.msra.mxu0 0.0
        %1858 = vmatprep.subr.mxu0 0.0
        %1859 = vmatpush1.xpose.msra.mxu0 0.0
        %1860 = vmatprep.subr.mxu0 0.0
        %1861 = vmatpush1.xpose.msra.mxu0 0.0
        %1862 = vmatprep.subr.mxu0 0.0
        %1863 = vmatpush1.xpose.msra.mxu0 0.0
        %1864 = vmatprep.subr.mxu0 0.0
        %1865 = vmatpush1.xpose.msra.mxu0 0.0
        %1866 = vmatprep.subr.mxu0 0.0
        %1867 = vmatpush1.xpose.msra.mxu0 0.0
        %1868 = vmatprep.subr.mxu0 0.0
        %1869 = vmatpush1.xpose.msra.mxu0 0.0
        %1870 = vmatprep.subr.mxu0 0.0
        %1871 = vmatpush1.xpose.msra.mxu0 0.0
        %1872 = vmatprep.subr.mxu0 0.0
        %1873 = vmatpush1.xpose.msra.mxu0 0.0
        %1874 = vmatprep.subr.mxu0 0.0
        %1875 = vmatpush1.xpose.msra.mxu0 0.0
        %1876 = vmatprep.subr.mxu0 0.0
        %1877 = vmatpush1.xpose.msra.mxu0 0.0
        %1878 = vmatprep.subr.mxu0 0.0
        %1879 = vmatpush1.xpose.msra.mxu0 0.0
        %1880 = vmatprep.subr.mxu0 0.0
        %1881 = vmatpush1.xpose.msra.mxu0 0.0
        %1882 = vmatprep.subr.mxu0 0.0
        %1883 = vmatpush1.xpose.msra.mxu0 0.0
        %1884 = vmatprep.subr.mxu0 0.0
        %1885 = vmatpush1.xpose.msra.mxu0 0.0
        %1886 = vmatprep.mubr.f32.mxu0 0.0
        %1887 = vmatmul.mubr.f32.gmra.mrb[0].mxu0 %v1818
        %v1888 = vpop.f32.mrb[0].mxu0
        %v1889 = vadd.f32 %v1139, %v1888
        %v1890 = vpop.f32.mrb[0].mxu0
        %1891 = vdwg.mxu0
        %1892 = vrot.lane.b32.xlu0 %v1135, 112
        %v1893 = vpop.permute.xlu0 %1892
        %1894 = vrot.lane.b32.xlu0 %v1131, 80
        %v1895 = vpop.permute.xlu0 %1894
        %v1896 = vsel %vm1143, %v1893, 0
        %v1898 = vsel %vm1143, %v1895, 0
        %1900 = vmatprep.subr.mxu0 0.0
        %1901 = vmatpush1.xpose.msra.mxu0 %v1898
        %1902 = vmatprep.subr.mxu0 0.0
        %1903 = vmatpush1.xpose.msra.mxu0 0.0
        %1904 = vmatprep.subr.mxu0 0.0
        %1905 = vmatpush1.xpose.msra.mxu0 0.0
        %1906 = vmatprep.subr.mxu0 0.0
        %1907 = vmatpush1.xpose.msra.mxu0 0.0
        %1908 = vmatprep.subr.mxu0 0.0
        %1909 = vmatpush1.xpose.msra.mxu0 0.0
        %1910 = vmatprep.subr.mxu0 0.0
        %1911 = vmatpush1.xpose.msra.mxu0 0.0
        %1912 = vmatprep.subr.mxu0 0.0
        %1913 = vmatpush1.xpose.msra.mxu0 0.0
        %1914 = vmatprep.subr.mxu0 0.0
        %1915 = vmatpush1.xpose.msra.mxu0 0.0
        %1916 = vmatprep.subr.mxu0 0.0
        %1917 = vmatpush1.xpose.msra.mxu0 0.0
        %1918 = vmatprep.subr.mxu0 0.0
        %1919 = vmatpush1.xpose.msra.mxu0 0.0
        %1920 = vmatprep.subr.mxu0 0.0
        %1921 = vmatpush1.xpose.msra.mxu0 0.0
        %1922 = vmatprep.subr.mxu0 0.0
        %1923 = vmatpush1.xpose.msra.mxu0 0.0
        %1924 = vmatprep.subr.mxu0 0.0
        %1925 = vmatpush1.xpose.msra.mxu0 0.0
        %1926 = vmatprep.subr.mxu0 0.0
        %1927 = vmatpush1.xpose.msra.mxu0 0.0
        %1928 = vmatprep.subr.mxu0 0.0
        %1929 = vmatpush1.xpose.msra.mxu0 0.0
        %1930 = vmatprep.subr.mxu0 0.0
        %1931 = vmatpush1.xpose.msra.mxu0 0.0
        %1932 = vmatprep.subr.mxu0 0.0
        %1933 = vmatpush1.xpose.msra.mxu0 0.0
        %1934 = vmatprep.subr.mxu0 0.0
        %1935 = vmatpush1.xpose.msra.mxu0 0.0
        %1936 = vmatprep.subr.mxu0 0.0
        %1937 = vmatpush1.xpose.msra.mxu0 0.0
        %1938 = vmatprep.subr.mxu0 0.0
        %1939 = vmatpush1.xpose.msra.mxu0 0.0
        %1940 = vmatprep.subr.mxu0 0.0
        %1941 = vmatpush1.xpose.msra.mxu0 0.0
        %1942 = vmatprep.subr.mxu0 0.0
        %1943 = vmatpush1.xpose.msra.mxu0 0.0
        %1944 = vmatprep.subr.mxu0 0.0
        %1945 = vmatpush1.xpose.msra.mxu0 0.0
        %1946 = vmatprep.subr.mxu0 0.0
        %1947 = vmatpush1.xpose.msra.mxu0 0.0
        %1948 = vmatprep.subr.mxu0 0.0
        %1949 = vmatpush1.xpose.msra.mxu0 0.0
        %1950 = vmatprep.subr.mxu0 0.0
        %1951 = vmatpush1.xpose.msra.mxu0 0.0
        %1952 = vmatprep.subr.mxu0 0.0
        %1953 = vmatpush1.xpose.msra.mxu0 0.0
        %1954 = vmatprep.subr.mxu0 0.0
        %1955 = vmatpush1.xpose.msra.mxu0 0.0
        %1956 = vmatprep.subr.mxu0 0.0
        %1957 = vmatpush1.xpose.msra.mxu0 0.0
        %1958 = vmatprep.subr.mxu0 0.0
        %1959 = vmatpush1.xpose.msra.mxu0 0.0
        %1960 = vmatprep.subr.mxu0 0.0
        %1961 = vmatpush1.xpose.msra.mxu0 0.0
        %1962 = vmatprep.subr.mxu0 0.0
        %1963 = vmatpush1.xpose.msra.mxu0 0.0
        %1964 = vmatprep.mubr.f32.mxu0 0.0
        %1965 = vmatmul.mubr.f32.gmra.mrb[0].mxu0 %v1896
        %v1966 = vpop.f32.mrb[0].mxu0
        %v1967 = vadd.f32 %v1139, %v1966
        %v1968 = vpop.f32.mrb[0].mxu0
        %1969 = vdwg.mxu0
        %v1970 = vsel %vm1143, %v1889, -inf
        %1971 = vmax.xlane.f32.xlu0 %v1970
        %v1972 = vpop.xlane.xlu0 %1971
        %v1973 = vsel %vm1143, %v1967, -inf
        %1974 = vmax.xlane.f32.xlu0 %v1973
        %v1975 = vpop.xlane.xlu0 %1974
        %v1976 = vsub.f32 %v1889, %v1972
        %v1977 = vsub.f32 %v1967, %v1975
        %v1978 = vmul.f32 %v1976, 1.442695
        %v1979 = vpow.pop %v1978
        %v1980 = vmul.f32 %v1977, 1.442695
        %v1981 = vpow.pop %v1980
        %v1982 = vsel %vm1143, %v1979, 0.0
        %1983 = vadd.xlane.f32.xlu0 %v1982
        %v1984 = vpop.xlane.xlu0 %1983
        %v1985 = vsel %vm1143, %v1981, 0.0
        %1986 = vadd.xlane.f32.xlu0 %v1985
        %v1987 = vpop.xlane.xlu0 %1986
        %v1988 = vrcp.pop %v1984
        %v1989 = vrcp.pop %v1987
        %v1990 = vmul.f32 %v1979, %v1988
        %v1991 = vmul.f32 %v1981, %v1989
        %1992 = vrot.lane.b32.xlu0 %v1128, 48
        %v1993 = vpop.permute.xlu0 %1992
        %v1996 = vsel %vm1143, %v1990, 0
        %1998 = vmatprep.subr.mxu0 0.0
        %1999 = vmatpush1.msra.mxu0 %v1993
        %2000 = vmatprep.subr.mxu0 0.0
        %2001 = vmatpush1.msra.mxu0 0.0
        %2002 = vmatprep.subr.mxu0 0.0
        %2003 = vmatpush1.msra.mxu0 0.0
        %2004 = vmatprep.subr.mxu0 0.0
        %2005 = vmatpush1.msra.mxu0 0.0
        %2006 = vmatprep.subr.mxu0 0.0
        %2007 = vmatpush1.msra.mxu0 0.0
        %2008 = vmatprep.subr.mxu0 0.0
        %2009 = vmatpush1.msra.mxu0 0.0
        %2010 = vmatprep.subr.mxu0 0.0
        %2011 = vmatpush1.msra.mxu0 0.0
        %2012 = vmatprep.subr.mxu0 0.0
        %2013 = vmatpush1.msra.mxu0 0.0
        %2014 = vmatprep.subr.mxu0 0.0
        %2015 = vmatpush1.msra.mxu0 0.0
        %2016 = vmatprep.subr.mxu0 0.0
        %2017 = vmatpush1.msra.mxu0 0.0
        %2018 = vmatprep.subr.mxu0 0.0
        %2019 = vmatpush1.msra.mxu0 0.0
        %2020 = vmatprep.subr.mxu0 0.0
        %2021 = vmatpush1.msra.mxu0 0.0
        %2022 = vmatprep.subr.mxu0 0.0
        %2023 = vmatpush1.msra.mxu0 0.0
        %2024 = vmatprep.subr.mxu0 0.0
        %2025 = vmatpush1.msra.mxu0 0.0
        %2026 = vmatprep.subr.mxu0 0.0
        %2027 = vmatpush1.msra.mxu0 0.0
        %2028 = vmatprep.subr.mxu0 0.0
        %2029 = vmatpush1.msra.mxu0 0.0
        %2030 = vmatprep.subr.mxu0 0.0
        %2031 = vmatpush1.msra.mxu0 0.0
        %2032 = vmatprep.subr.mxu0 0.0
        %2033 = vmatpush1.msra.mxu0 0.0
        %2034 = vmatprep.subr.mxu0 0.0
        %2035 = vmatpush1.msra.mxu0 0.0
        %2036 = vmatprep.subr.mxu0 0.0
        %2037 = vmatpush1.msra.mxu0 0.0
        %2038 = vmatprep.subr.mxu0 0.0
        %2039 = vmatpush1.msra.mxu0 0.0
        %2040 = vmatprep.subr.mxu0 0.0
        %2041 = vmatpush1.msra.mxu0 0.0
        %2042 = vmatprep.subr.mxu0 0.0
        %2043 = vmatpush1.msra.mxu0 0.0
        %2044 = vmatprep.subr.mxu0 0.0
        %2045 = vmatpush1.msra.mxu0 0.0
        %2046 = vmatprep.subr.mxu0 0.0
        %2047 = vmatpush1.msra.mxu0 0.0
        %2048 = vmatprep.subr.mxu0 0.0
        %2049 = vmatpush1.msra.mxu0 0.0
        %2050 = vmatprep.subr.mxu0 0.0
        %2051 = vmatpush1.msra.mxu0 0.0
        %2052 = vmatprep.subr.mxu0 0.0
        %2053 = vmatpush1.msra.mxu0 0.0
        %2054 = vmatprep.subr.mxu0 0.0
        %2055 = vmatpush1.msra.mxu0 0.0
        %2056 = vmatprep.subr.mxu0 0.0
        %2057 = vmatpush1.msra.mxu0 0.0
        %2058 = vmatprep.subr.mxu0 0.0
        %2059 = vmatpush1.msra.mxu0 0.0
        %2060 = vmatprep.subr.mxu0 0.0
        %2061 = vmatpush1.msra.mxu0 0.0
        %2062 = vmatprep.mubr.f32.mxu0 0.0
        %2063 = vmatmul.mubr.f32.gmra.mrb[0].mxu0 %v1996
        %v2064 = vpop.f32.mrb[0].mxu0
        %v2065 = vadd.f32 0.0, %v2064
        %v2066 = vpop.f32.mrb[0].mxu0
        %2067 = vdwg.mxu0
        %2068 = vrot.lane.b32.xlu0 %v1131, 48
        %v2069 = vpop.permute.xlu0 %2068
        %v2072 = vsel %vm1143, %v1991, 0
        %2074 = vmatprep.subr.mxu0 0.0
        %2075 = vmatpush1.msra.mxu0 %v2069
        %2076 = vmatprep.subr.mxu0 0.0
        %2077 = vmatpush1.msra.mxu0 0.0
        %2078 = vmatprep.subr.mxu0 0.0
        %2079 = vmatpush1.msra.mxu0 0.0
        %2080 = vmatprep.subr.mxu0 0.0
        %2081 = vmatpush1.msra.mxu0 0.0
        %2082 = vmatprep.subr.mxu0 0.0
        %2083 = vmatpush1.msra.mxu0 0.0
        %2084 = vmatprep.subr.mxu0 0.0
        %2085 = vmatpush1.msra.mxu0 0.0
        %2086 = vmatprep.subr.mxu0 0.0
        %2087 = vmatpush1.msra.mxu0 0.0
        %2088 = vmatprep.subr.mxu0 0.0
        %2089 = vmatpush1.msra.mxu0 0.0
        %2090 = vmatprep.subr.mxu0 0.0
        %2091 = vmatpush1.msra.mxu0 0.0
        %2092 = vmatprep.subr.mxu0 0.0
        %2093 = vmatpush1.msra.mxu0 0.0
        %2094 = vmatprep.subr.mxu0 0.0
        %2095 = vmatpush1.msra.mxu0 0.0
        %2096 = vmatprep.subr.mxu0 0.0
        %2097 = vmatpush1.msra.mxu0 0.0
        %2098 = vmatprep.subr.mxu0 0.0
        %2099 = vmatpush1.msra.mxu0 0.0
        %2100 = vmatprep.subr.mxu0 0.0
        %2101 = vmatpush1.msra.mxu0 0.0
        %2102 = vmatprep.subr.mxu0 0.0
        %2103 = vmatpush1.msra.mxu0 0.0
        %2104 = vmatprep.subr.mxu0 0.0
        %2105 = vmatpush1.msra.mxu0 0.0
        %2106 = vmatprep.subr.mxu0 0.0
        %2107 = vmatpush1.msra.mxu0 0.0
        %2108 = vmatprep.subr.mxu0 0.0
        %2109 = vmatpush1.msra.mxu0 0.0
        %2110 = vmatprep.subr.mxu0 0.0
        %2111 = vmatpush1.msra.mxu0 0.0
        %2112 = vmatprep.subr.mxu0 0.0
        %2113 = vmatpush1.msra.mxu0 0.0
        %2114 = vmatprep.subr.mxu0 0.0
        %2115 = vmatpush1.msra.mxu0 0.0
        %2116 = vmatprep.subr.mxu0 0.0
        %2117 = vmatpush1.msra.mxu0 0.0
        %2118 = vmatprep.subr.mxu0 0.0
        %2119 = vmatpush1.msra.mxu0 0.0
        %2120 = vmatprep.subr.mxu0 0.0
        %2121 = vmatpush1.msra.mxu0 0.0
        %2122 = vmatprep.subr.mxu0 0.0
        %2123 = vmatpush1.msra.mxu0 0.0
        %2124 = vmatprep.subr.mxu0 0.0
        %2125 = vmatpush1.msra.mxu0 0.0
        %2126 = vmatprep.subr.mxu0 0.0
        %2127 = vmatpush1.msra.mxu0 0.0
        %2128 = vmatprep.subr.mxu0 0.0
        %2129 = vmatpush1.msra.mxu0 0.0
        %2130 = vmatprep.subr.mxu0 0.0
        %2131 = vmatpush1.msra.mxu0 0.0
        %2132 = vmatprep.subr.mxu0 0.0
        %2133 = vmatpush1.msra.mxu0 0.0
        %2134 = vmatprep.subr.mxu0 0.0
        %2135 = vmatpush1.msra.mxu0 0.0
        %2136 = vmatprep.subr.mxu0 0.0
        %2137 = vmatpush1.msra.mxu0 0.0
        %2138 = vmatprep.mubr.f32.mxu0 0.0
        %2139 = vmatmul.mubr.f32.gmra.mrb[0].mxu0 %v2072
        %v2140 = vpop.f32.mrb[0].mxu0
        %v2141 = vadd.f32 0.0, %v2140
        %v2142 = vpop.f32.mrb[0].mxu0
        %2143 = vdwg.mxu0
        %2146 = vrot.lane.b32.xlu0 %v2065, 16
        %v2147 = vpop.permute.xlu0 %2146
        %2148 = vrot.lane.b32.xlu0 %v2141, 16
        %v2149 = vpop.permute.xlu0 %2148
        %vm2152 = vcmask 195712
        %2153 = vst.msk [vmem:[#allocation3] sm:$0xff] %vm2152, %v2147
        %2154 = vst.msk [vmem:[#allocation3 + $0x8] sm:$0xff] %vm2152, %v2149
        %2155 = vrot.lane.b32.xlu0 %v1134, 104
        %v2156 = vpop.permute.xlu0 %2155
        %2157 = vrot.lane.b32.xlu0 %v1128, 72
        %v2158 = vpop.permute.xlu0 %2157
        %v2159 = vsel %vm1143, %v2156, 0
        %v2161 = vsel %vm1143, %v2158, 0
        %2163 = vmatprep.subr.mxu0 0.0
        %2164 = vmatpush1.xpose.msra.mxu0 %v2161
        %2165 = vmatprep.subr.mxu0 0.0
        %2166 = vmatpush1.xpose.msra.mxu0 0.0
        %2167 = vmatprep.subr.mxu0 0.0
        %2168 = vmatpush1.xpose.msra.mxu0 0.0
        %2169 = vmatprep.subr.mxu0 0.0
        %2170 = vmatpush1.xpose.msra.mxu0 0.0
        %2171 = vmatprep.subr.mxu0 0.0
        %2172 = vmatpush1.xpose.msra.mxu0 0.0
        %2173 = vmatprep.subr.mxu0 0.0
        %2174 = vmatpush1.xpose.msra.mxu0 0.0
        %2175 = vmatprep.subr.mxu0 0.0
        %2176 = vmatpush1.xpose.msra.mxu0 0.0
        %2177 = vmatprep.subr.mxu0 0.0
        %2178 = vmatpush1.xpose.msra.mxu0 0.0
        %2179 = vmatprep.subr.mxu0 0.0
        %2180 = vmatpush1.xpose.msra.mxu0 0.0
        %2181 = vmatprep.subr.mxu0 0.0
        %2182 = vmatpush1.xpose.msra.mxu0 0.0
        %2183 = vmatprep.subr.mxu0 0.0
        %2184 = vmatpush1.xpose.msra.mxu0 0.0
        %2185 = vmatprep.subr.mxu0 0.0
        %2186 = vmatpush1.xpose.msra.mxu0 0.0
        %2187 = vmatprep.subr.mxu0 0.0
        %2188 = vmatpush1.xpose.msra.mxu0 0.0
        %2189 = vmatprep.subr.mxu0 0.0
        %2190 = vmatpush1.xpose.msra.mxu0 0.0
        %2191 = vmatprep.subr.mxu0 0.0
        %2192 = vmatpush1.xpose.msra.mxu0 0.0
        %2193 = vmatprep.subr.mxu0 0.0
        %2194 = vmatpush1.xpose.msra.mxu0 0.0
        %2195 = vmatprep.subr.mxu0 0.0
        %2196 = vmatpush1.xpose.msra.mxu0 0.0
        %2197 = vmatprep.subr.mxu0 0.0
        %2198 = vmatpush1.xpose.msra.mxu0 0.0
        %2199 = vmatprep.subr.mxu0 0.0
        %2200 = vmatpush1.xpose.msra.mxu0 0.0
        %2201 = vmatprep.subr.mxu0 0.0
        %2202 = vmatpush1.xpose.msra.mxu0 0.0
        %2203 = vmatprep.subr.mxu0 0.0
        %2204 = vmatpush1.xpose.msra.mxu0 0.0
        %2205 = vmatprep.subr.mxu0 0.0
        %2206 = vmatpush1.xpose.msra.mxu0 0.0
        %2207 = vmatprep.subr.mxu0 0.0
        %2208 = vmatpush1.xpose.msra.mxu0 0.0
        %2209 = vmatprep.subr.mxu0 0.0
        %2210 = vmatpush1.xpose.msra.mxu0 0.0
        %2211 = vmatprep.subr.mxu0 0.0
        %2212 = vmatpush1.xpose.msra.mxu0 0.0
        %2213 = vmatprep.subr.mxu0 0.0
        %2214 = vmatpush1.xpose.msra.mxu0 0.0
        %2215 = vmatprep.subr.mxu0 0.0
        %2216 = vmatpush1.xpose.msra.mxu0 0.0
        %2217 = vmatprep.subr.mxu0 0.0
        %2218 = vmatpush1.xpose.msra.mxu0 0.0
        %2219 = vmatprep.subr.mxu0 0.0
        %2220 = vmatpush1.xpose.msra.mxu0 0.0
        %2221 = vmatprep.subr.mxu0 0.0
        %2222 = vmatpush1.xpose.msra.mxu0 0.0
        %2223 = vmatprep.subr.mxu0 0.0
        %2224 = vmatpush1.xpose.msra.mxu0 0.0
        %2225 = vmatprep.subr.mxu0 0.0
        %2226 = vmatpush1.xpose.msra.mxu0 0.0
        %2227 = vmatprep.mubr.f32.mxu0 0.0
        %2228 = vmatmul.mubr.f32.gmra.mrb[0].mxu0 %v2159
        %v2229 = vpop.f32.mrb[0].mxu0
        %v2230 = vadd.f32 %v1139, %v2229
        %v2231 = vpop.f32.mrb[0].mxu0
        %2232 = vdwg.mxu0
        %2233 = vrot.lane.b32.xlu0 %v1135, 104
        %v2234 = vpop.permute.xlu0 %2233
        %2235 = vrot.lane.b32.xlu0 %v1131, 72
        %v2236 = vpop.permute.xlu0 %2235
        %v2237 = vsel %vm1143, %v2234, 0
        %v2239 = vsel %vm1143, %v2236, 0
        %2241 = vmatprep.subr.mxu0 0.0
        %2242 = vmatpush1.xpose.msra.mxu0 %v2239
        %2243 = vmatprep.subr.mxu0 0.0
        %2244 = vmatpush1.xpose.msra.mxu0 0.0
        %2245 = vmatprep.subr.mxu0 0.0
        %2246 = vmatpush1.xpose.msra.mxu0 0.0
        %2247 = vmatprep.subr.mxu0 0.0
        %2248 = vmatpush1.xpose.msra.mxu0 0.0
        %2249 = vmatprep.subr.mxu0 0.0
        %2250 = vmatpush1.xpose.msra.mxu0 0.0
        %2251 = vmatprep.subr.mxu0 0.0
        %2252 = vmatpush1.xpose.msra.mxu0 0.0
        %2253 = vmatprep.subr.mxu0 0.0
        %2254 = vmatpush1.xpose.msra.mxu0 0.0
        %2255 = vmatprep.subr.mxu0 0.0
        %2256 = vmatpush1.xpose.msra.mxu0 0.0
        %2257 = vmatprep.subr.mxu0 0.0
        %2258 = vmatpush1.xpose.msra.mxu0 0.0
        %2259 = vmatprep.subr.mxu0 0.0
        %2260 = vmatpush1.xpose.msra.mxu0 0.0
        %2261 = vmatprep.subr.mxu0 0.0
        %2262 = vmatpush1.xpose.msra.mxu0 0.0
        %2263 = vmatprep.subr.mxu0 0.0
        %2264 = vmatpush1.xpose.msra.mxu0 0.0
        %2265 = vmatprep.subr.mxu0 0.0
        %2266 = vmatpush1.xpose.msra.mxu0 0.0
        %2267 = vmatprep.subr.mxu0 0.0
        %2268 = vmatpush1.xpose.msra.mxu0 0.0
        %2269 = vmatprep.subr.mxu0 0.0
        %2270 = vmatpush1.xpose.msra.mxu0 0.0
        %2271 = vmatprep.subr.mxu0 0.0
        %2272 = vmatpush1.xpose.msra.mxu0 0.0
        %2273 = vmatprep.subr.mxu0 0.0
        %2274 = vmatpush1.xpose.msra.mxu0 0.0
        %2275 = vmatprep.subr.mxu0 0.0
        %2276 = vmatpush1.xpose.msra.mxu0 0.0
        %2277 = vmatprep.subr.mxu0 0.0
        %2278 = vmatpush1.xpose.msra.mxu0 0.0
        %2279 = vmatprep.subr.mxu0 0.0
        %2280 = vmatpush1.xpose.msra.mxu0 0.0
        %2281 = vmatprep.subr.mxu0 0.0
        %2282 = vmatpush1.xpose.msra.mxu0 0.0
        %2283 = vmatprep.subr.mxu0 0.0
        %2284 = vmatpush1.xpose.msra.mxu0 0.0
        %2285 = vmatprep.subr.mxu0 0.0
        %2286 = vmatpush1.xpose.msra.mxu0 0.0
        %2287 = vmatprep.subr.mxu0 0.0
        %2288 = vmatpush1.xpose.msra.mxu0 0.0
        %2289 = vmatprep.subr.mxu0 0.0
        %2290 = vmatpush1.xpose.msra.mxu0 0.0
        %2291 = vmatprep.subr.mxu0 0.0
        %2292 = vmatpush1.xpose.msra.mxu0 0.0
        %2293 = vmatprep.subr.mxu0 0.0
        %2294 = vmatpush1.xpose.msra.mxu0 0.0
        %2295 = vmatprep.subr.mxu0 0.0
        %2296 = vmatpush1.xpose.msra.mxu0 0.0
        %2297 = vmatprep.subr.mxu0 0.0
        %2298 = vmatpush1.xpose.msra.mxu0 0.0
        %2299 = vmatprep.subr.mxu0 0.0
        %2300 = vmatpush1.xpose.msra.mxu0 0.0
        %2301 = vmatprep.subr.mxu0 0.0
        %2302 = vmatpush1.xpose.msra.mxu0 0.0
        %2303 = vmatprep.subr.mxu0 0.0
        %2304 = vmatpush1.xpose.msra.mxu0 0.0
        %2305 = vmatprep.mubr.f32.mxu0 0.0
        %2306 = vmatmul.mubr.f32.gmra.mrb[0].mxu0 %v2237
        %v2307 = vpop.f32.mrb[0].mxu0
        %v2308 = vadd.f32 %v1139, %v2307
        %v2309 = vpop.f32.mrb[0].mxu0
        %2310 = vdwg.mxu0
        %v2311 = vsel %vm1143, %v2230, -inf
        %2312 = vmax.xlane.f32.xlu0 %v2311
        %v2313 = vpop.xlane.xlu0 %2312
        %v2314 = vsel %vm1143, %v2308, -inf
        %2315 = vmax.xlane.f32.xlu0 %v2314
        %v2316 = vpop.xlane.xlu0 %2315
        %v2317 = vsub.f32 %v2230, %v2313
        %v2318 = vsub.f32 %v2308, %v2316
        %v2319 = vmul.f32 %v2317, 1.442695
        %v2320 = vpow.pop %v2319
        %v2321 = vmul.f32 %v2318, 1.442695
        %v2322 = vpow.pop %v2321
        %v2323 = vsel %vm1143, %v2320, 0.0
        %2324 = vadd.xlane.f32.xlu0 %v2323
        %v2325 = vpop.xlane.xlu0 %2324
        %v2326 = vsel %vm1143, %v2322, 0.0
        %2327 = vadd.xlane.f32.xlu0 %v2326
        %v2328 = vpop.xlane.xlu0 %2327
        %v2329 = vrcp.pop %v2325
        %v2330 = vrcp.pop %v2328
        %v2331 = vmul.f32 %v2320, %v2329
        %v2332 = vmul.f32 %v2322, %v2330
        %2333 = vrot.lane.b32.xlu0 %v1128, 40
        %v2334 = vpop.permute.xlu0 %2333
        %v2337 = vsel %vm1143, %v2331, 0
        %2339 = vmatprep.subr.mxu0 0.0
        %2340 = vmatpush1.msra.mxu0 %v2334
        %2341 = vmatprep.subr.mxu0 0.0
        %2342 = vmatpush1.msra.mxu0 0.0
        %2343 = vmatprep.subr.mxu0 0.0
        %2344 = vmatpush1.msra.mxu0 0.0
        %2345 = vmatprep.subr.mxu0 0.0
        %2346 = vmatpush1.msra.mxu0 0.0
        %2347 = vmatprep.subr.mxu0 0.0
        %2348 = vmatpush1.msra.mxu0 0.0
        %2349 = vmatprep.subr.mxu0 0.0
        %2350 = vmatpush1.msra.mxu0 0.0
        %2351 = vmatprep.subr.mxu0 0.0
        %2352 = vmatpush1.msra.mxu0 0.0
        %2353 = vmatprep.subr.mxu0 0.0
        %2354 = vmatpush1.msra.mxu0 0.0
        %2355 = vmatprep.subr.mxu0 0.0
        %2356 = vmatpush1.msra.mxu0 0.0
        %2357 = vmatprep.subr.mxu0 0.0
        %2358 = vmatpush1.msra.mxu0 0.0
        %2359 = vmatprep.subr.mxu0 0.0
        %2360 = vmatpush1.msra.mxu0 0.0
        %2361 = vmatprep.subr.mxu0 0.0
        %2362 = vmatpush1.msra.mxu0 0.0
        %2363 = vmatprep.subr.mxu0 0.0
        %2364 = vmatpush1.msra.mxu0 0.0
        %2365 = vmatprep.subr.mxu0 0.0
        %2366 = vmatpush1.msra.mxu0 0.0
        %2367 = vmatprep.subr.mxu0 0.0
        %2368 = vmatpush1.msra.mxu0 0.0
        %2369 = vmatprep.subr.mxu0 0.0
        %2370 = vmatpush1.msra.mxu0 0.0
        %2371 = vmatprep.subr.mxu0 0.0
        %2372 = vmatpush1.msra.mxu0 0.0
        %2373 = vmatprep.subr.mxu0 0.0
        %2374 = vmatpush1.msra.mxu0 0.0
        %2375 = vmatprep.subr.mxu0 0.0
        %2376 = vmatpush1.msra.mxu0 0.0
        %2377 = vmatprep.subr.mxu0 0.0
        %2378 = vmatpush1.msra.mxu0 0.0
        %2379 = vmatprep.subr.mxu0 0.0
        %2380 = vmatpush1.msra.mxu0 0.0
        %2381 = vmatprep.subr.mxu0 0.0
        %2382 = vmatpush1.msra.mxu0 0.0
        %2383 = vmatprep.subr.mxu0 0.0
        %2384 = vmatpush1.msra.mxu0 0.0
        %2385 = vmatprep.subr.mxu0 0.0
        %2386 = vmatpush1.msra.mxu0 0.0
        %2387 = vmatprep.subr.mxu0 0.0
        %2388 = vmatpush1.msra.mxu0 0.0
        %2389 = vmatprep.subr.mxu0 0.0
        %2390 = vmatpush1.msra.mxu0 0.0
        %2391 = vmatprep.subr.mxu0 0.0
        %2392 = vmatpush1.msra.mxu0 0.0
        %2393 = vmatprep.subr.mxu0 0.0
        %2394 = vmatpush1.msra.mxu0 0.0
        %2395 = vmatprep.subr.mxu0 0.0
        %2396 = vmatpush1.msra.mxu0 0.0
        %2397 = vmatprep.subr.mxu0 0.0
        %2398 = vmatpush1.msra.mxu0 0.0
        %2399 = vmatprep.subr.mxu0 0.0
        %2400 = vmatpush1.msra.mxu0 0.0
        %2401 = vmatprep.subr.mxu0 0.0
        %2402 = vmatpush1.msra.mxu0 0.0
        %2403 = vmatprep.mubr.f32.mxu0 0.0
        %2404 = vmatmul.mubr.f32.gmra.mrb[0].mxu0 %v2337
        %v2405 = vpop.f32.mrb[0].mxu0
        %v2406 = vadd.f32 0.0, %v2405
        %v2407 = vpop.f32.mrb[0].mxu0
        %2408 = vdwg.mxu0
        %2409 = vrot.lane.b32.xlu0 %v1131, 40
        %v2410 = vpop.permute.xlu0 %2409
        %v2413 = vsel %vm1143, %v2332, 0
        %2415 = vmatprep.subr.mxu0 0.0
        %2416 = vmatpush1.msra.mxu0 %v2410
        %2417 = vmatprep.subr.mxu0 0.0
        %2418 = vmatpush1.msra.mxu0 0.0
        %2419 = vmatprep.subr.mxu0 0.0
        %2420 = vmatpush1.msra.mxu0 0.0
        %2421 = vmatprep.subr.mxu0 0.0
        %2422 = vmatpush1.msra.mxu0 0.0
        %2423 = vmatprep.subr.mxu0 0.0
        %2424 = vmatpush1.msra.mxu0 0.0
        %2425 = vmatprep.subr.mxu0 0.0
        %2426 = vmatpush1.msra.mxu0 0.0
        %2427 = vmatprep.subr.mxu0 0.0
        %2428 = vmatpush1.msra.mxu0 0.0
        %2429 = vmatprep.subr.mxu0 0.0
        %2430 = vmatpush1.msra.mxu0 0.0
        %2431 = vmatprep.subr.mxu0 0.0
        %2432 = vmatpush1.msra.mxu0 0.0
        %2433 = vmatprep.subr.mxu0 0.0
        %2434 = vmatpush1.msra.mxu0 0.0
        %2435 = vmatprep.subr.mxu0 0.0
        %2436 = vmatpush1.msra.mxu0 0.0
        %2437 = vmatprep.subr.mxu0 0.0
        %2438 = vmatpush1.msra.mxu0 0.0
        %2439 = vmatprep.subr.mxu0 0.0
        %2440 = vmatpush1.msra.mxu0 0.0
        %2441 = vmatprep.subr.mxu0 0.0
        %2442 = vmatpush1.msra.mxu0 0.0
        %2443 = vmatprep.subr.mxu0 0.0
        %2444 = vmatpush1.msra.mxu0 0.0
        %2445 = vmatprep.subr.mxu0 0.0
        %2446 = vmatpush1.msra.mxu0 0.0
        %2447 = vmatprep.subr.mxu0 0.0
        %2448 = vmatpush1.msra.mxu0 0.0
        %2449 = vmatprep.subr.mxu0 0.0
        %2450 = vmatpush1.msra.mxu0 0.0
        %2451 = vmatprep.subr.mxu0 0.0
        %2452 = vmatpush1.msra.mxu0 0.0
        %2453 = vmatprep.subr.mxu0 0.0
        %2454 = vmatpush1.msra.mxu0 0.0
        %2455 = vmatprep.subr.mxu0 0.0
        %2456 = vmatpush1.msra.mxu0 0.0
        %2457 = vmatprep.subr.mxu0 0.0
        %2458 = vmatpush1.msra.mxu0 0.0
        %2459 = vmatprep.subr.mxu0 0.0
        %2460 = vmatpush1.msra.mxu0 0.0
        %2461 = vmatprep.subr.mxu0 0.0
        %2462 = vmatpush1.msra.mxu0 0.0
        %2463 = vmatprep.subr.mxu0 0.0
        %2464 = vmatpush1.msra.mxu0 0.0
        %2465 = vmatprep.subr.mxu0 0.0
        %2466 = vmatpush1.msra.mxu0 0.0
        %2467 = vmatprep.subr.mxu0 0.0
        %2468 = vmatpush1.msra.mxu0 0.0
        %2469 = vmatprep.subr.mxu0 0.0
        %2470 = vmatpush1.msra.mxu0 0.0
        %2471 = vmatprep.subr.mxu0 0.0
        %2472 = vmatpush1.msra.mxu0 0.0
        %2473 = vmatprep.subr.mxu0 0.0
        %2474 = vmatpush1.msra.mxu0 0.0
        %2475 = vmatprep.subr.mxu0 0.0
        %2476 = vmatpush1.msra.mxu0 0.0
        %2477 = vmatprep.subr.mxu0 0.0
        %2478 = vmatpush1.msra.mxu0 0.0
        %2479 = vmatprep.mubr.f32.mxu0 0.0
        %2480 = vmatmul.mubr.f32.gmra.mrb[0].mxu0 %v2413
        %v2481 = vpop.f32.mrb[0].mxu0
        %v2482 = vadd.f32 0.0, %v2481
        %v2483 = vpop.f32.mrb[0].mxu0
        %2484 = vdwg.mxu0
        %2487 = vrot.lane.b32.xlu0 %v2406, 24
        %v2488 = vpop.permute.xlu0 %2487
        %2489 = vrot.lane.b32.xlu0 %v2482, 24
        %v2490 = vpop.permute.xlu0 %2489
        %vm2493 = vcmask 261312
        %2494 = vst.msk [vmem:[#allocation3] sm:$0xff] %vm2493, %v2488
        %2495 = vst.msk [vmem:[#allocation3 + $0x8] sm:$0xff] %vm2493, %v2490
        %v2496 = vld [vmem:[#allocation3] sm:$0xff]
        %v2497 = vld [vmem:[#allocation3 + $0x8] sm:$0xff]
        %v2498 = vld [vmem:[%s858] sm:$0x1]
        %v2499 = vld [vmem:[%s861] sm:$0x1]
        %v2500 = vsel %vm1022, %v2496, 0.0
        %2501 = vadd.xlane.f32.xlu0 %v2500
        %v2502 = vpop.xlane.xlu0 %2501
        %v2503 = vsel %vm1022, %v2497, 0.0
        %2504 = vadd.xlane.f32.xlu0 %v2503
        %v2505 = vpop.xlane.xlu0 %2504
        %v2506 = vmul.f32 %v2502, %v1029
        %v2507 = vmul.f32 %v2505, %v1029
        %v2508 = vsub.f32 %v2496, %v2506
        %v2509 = vsub.f32 %v2497, %v2507
        %v2510 = vmul.f32 %v2508, %v2508
        %v2511 = vmul.f32 %v2509, %v2509
        %v2512 = vsel %vm1022, %v2510, 0.0
        %2513 = vadd.xlane.f32.xlu0 %v2512
        %v2514 = vpop.xlane.xlu0 %2513
        %v2515 = vsel %vm1022, %v2511, 0.0
        %2516 = vadd.xlane.f32.xlu0 %v2515
        %v2517 = vpop.xlane.xlu0 %2516
        %v2518 = vmul.f32 %v2514, %v1029
        %v2519 = vmul.f32 %v2517, %v1029
        %v2520 = vadd.f32 %v2518, 1e-05
        %v2521 = vadd.f32 %v2519, 1e-05
        %v2522 = vrsqrt.pop %v2520
        %v2523 = vrsqrt.pop %v2521
        %v2524 = vmul.f32 %v2508, %v2522
        %v2525 = vmul.f32 %v2509, %v2523
        %v2527 = vlaneseq
        %v2528 = vshrl.u32 %v2527, 7
        %v2529 = vsub.s32 0, %v2528
        %v2530 = vrot.slane %v2498, %v2529
        %v2532 = vmul.f32 %v2524, %v2530
        %v2533 = vmul.f32 %v2525, %v2530
        %v2535 = vlaneseq
        %v2536 = vshrl.u32 %v2535, 7
        %v2537 = vsub.s32 0, %v2536
        %v2538 = vrot.slane %v2499, %v2537
        %v2540 = vadd.f32 %v2532, %v2538
        %v2541 = vadd.f32 %v2533, %v2538
        %v2542 = vpack.c.bf16 %v2541, %v2540
        %v2543 = vld [vmem:[%s866] sm:$0xf]
        %v2544 = vld [vmem:[%s866 + $0x4] sm:$0xf]
        %v2545 = vld [vmem:[%s866 + $0x8] sm:$0xf]
        %v2546 = vld [vmem:[%s866 + $0xc] sm:$0xf]
        %v2551 = vunpack.c.l.b16 %v2543
        %v2552 = vunpack.c.l.b16 %v2544
        %v2553 = vunpack.c.l.b16 %v2545
        %v2554 = vunpack.c.l.b16 %v2546
        %v2555 = vpack.c.b16 %v2552, %v2551
        %v2556 = vpack.c.b16 %v2554, %v2553
        %v2560 = vsel %vm1022, %v2542, 0
        %2562 = vmatprep.subr.bf16.mxu0 0
        %2563 = vmatpush1.bf16.msra.mxu0 %v2555
        %2564 = vmatprep.subr.bf16.mxu0 0
        %2565 = vmatpush1.bf16.msra.mxu0 %v2556
        %2566 = vmatprep.subr.bf16.mxu0 0
        %2567 = vmatpush1.bf16.msra.mxu0 0
        %2568 = vmatprep.subr.bf16.mxu0 0
        %2569 = vmatpush1.bf16.msra.mxu0 0
        %2570 = vmatprep.subr.bf16.mxu0 0
        %2571 = vmatpush1.bf16.msra.mxu0 0
        %2572 = vmatprep.subr.bf16.mxu0 0
        %2573 = vmatpush1.bf16.msra.mxu0 0
        %2574 = vmatprep.subr.bf16.mxu0 0
        %2575 = vmatpush1.bf16.msra.mxu0 0
        %2576 = vmatprep.subr.bf16.mxu0 0
        %2577 = vmatpush1.bf16.msra.mxu0 0
        %2578 = vmatprep.subr.bf16.mxu0 0
        %2579 = vmatpush1.bf16.msra.mxu0 0
        %2580 = vmatprep.subr.bf16.mxu0 0
        %2581 = vmatpush1.bf16.msra.mxu0 0
        %2582 = vmatprep.subr.bf16.mxu0 0
        %2583 = vmatpush1.bf16.msra.mxu0 0
        %2584 = vmatprep.subr.bf16.mxu0 0
        %2585 = vmatpush1.bf16.msra.mxu0 0
        %2586 = vmatprep.subr.bf16.mxu0 0
        %2587 = vmatpush1.bf16.msra.mxu0 0
        %2588 = vmatprep.subr.bf16.mxu0 0
        %2589 = vmatpush1.bf16.msra.mxu0 0
        %2590 = vmatprep.subr.bf16.mxu0 0
        %2591 = vmatpush1.bf16.msra.mxu0 0
        %2592 = vmatprep.subr.bf16.mxu0 0
        %2593 = vmatpush1.bf16.msra.mxu0 0
        %2594 = vmatprep.mubr.bf16.mxu0 0
        %2595 = vmatmul.mubr.bf16.gmra.mrb[0].mxu0 %v2560
        %v2596 = vpop.f32.mrb[0].mxu0
        %v2597 = vadd.f32 0.0, %v2596
        %v2598 = vpop.f32.mrb[0].mxu0
        %v2599 = vpop.f32.mrb[0].mxu0
        %v2600 = vadd.f32 0.0, %v2599
        %v2601 = vpop.f32.mrb[0].mxu0
        %2602 = vdwg.mxu0
        %v2603 = vadd.f32 %v1018, %v2597
        %v2604 = vadd.f32 %v1019, %v2600
        %v2605 = vld [vmem:[%s869] sm:$0x1]
        %v2607 = vlaneseq
        %v2608 = vshrl.u32 %v2607, 7
        %v2609 = vsub.s32 0, %v2608
        %v2610 = vrot.slane %v2605, %v2609
        %v2612 = vadd.f32 %v2603, %v2610
        %v2613 = vadd.f32 %v2604, %v2610
        %v2614 = vld [vmem:[%s872] sm:$0x1]
        %v2615 = vld [vmem:[%s875] sm:$0x1]
        %v2616 = vsel %vm1022, %v2612, 0.0
        %2617 = vadd.xlane.f32.xlu0 %v2616
        %v2618 = vpop.xlane.xlu0 %2617
        %v2619 = vsel %vm1022, %v2613, 0.0
        %2620 = vadd.xlane.f32.xlu0 %v2619
        %v2621 = vpop.xlane.xlu0 %2620
        %v2622 = vmul.f32 %v2618, %v1029
        %v2623 = vmul.f32 %v2621, %v1029
        %v2624 = vsub.f32 %v2612, %v2622
        %v2625 = vsub.f32 %v2613, %v2623
        %v2626 = vmul.f32 %v2624, %v2624
        %v2627 = vmul.f32 %v2625, %v2625
        %v2628 = vsel %vm1022, %v2626, 0.0
        %2629 = vadd.xlane.f32.xlu0 %v2628
        %v2630 = vpop.xlane.xlu0 %2629
        %v2631 = vsel %vm1022, %v2627, 0.0
        %2632 = vadd.xlane.f32.xlu0 %v2631
        %v2633 = vpop.xlane.xlu0 %2632
        %v2634 = vmul.f32 %v2630, %v1029
        %v2635 = vmul.f32 %v2633, %v1029
        %v2636 = vadd.f32 %v2634, 1e-05
        %v2637 = vadd.f32 %v2635, 1e-05
        %v2638 = vrsqrt.pop %v2636
        %v2639 = vrsqrt.pop %v2637
        %v2640 = vmul.f32 %v2624, %v2638
        %v2641 = vmul.f32 %v2625, %v2639
        %v2643 = vlaneseq
        %v2644 = vshrl.u32 %v2643, 7
        %v2645 = vsub.s32 0, %v2644
        %v2646 = vrot.slane %v2614, %v2645
        %v2648 = vmul.f32 %v2640, %v2646
        %v2649 = vmul.f32 %v2641, %v2646
        %v2651 = vlaneseq
        %v2652 = vshrl.u32 %v2651, 7
        %v2653 = vsub.s32 0, %v2652
        %v2654 = vrot.slane %v2615, %v2653
        %v2656 = vadd.f32 %v2648, %v2654
        %v2657 = vadd.f32 %v2649, %v2654
        %v2658 = vpack.c.bf16 %v2657, %v2656
        %v2659 = vld [vmem:[%s880] sm:$0xf]
        %v2660 = vld [vmem:[%s880 + $0x4] sm:$0xf]
        %v2661 = vld [vmem:[%s880 + $0x8] sm:$0xf]
        %v2662 = vld [vmem:[%s880 + $0xc] sm:$0xf]
        %v2663 = vld [vmem:[%s883] sm:$0x1]
        %v2665 = vlaneseq
        %v2666 = vshrl.u32 %v2665, 7
        %v2667 = vsub.s32 0, %v2666
        %v2668 = vrot.slane %v2663, %v2667
        %v2674 = vunpack.c.l.b16 %v2659
        %v2675 = vunpack.c.l.b16 %v2660
        %v2676 = vunpack.c.l.b16 %v2661
        %v2677 = vunpack.c.l.b16 %v2662
        %v2678 = vpack.c.b16 %v2675, %v2674
        %v2679 = vpack.c.b16 %v2677, %v2676
        %v2683 = vsel %vm1022, %v2658, 0
        %2685 = vmatprep.subr.bf16.mxu0 0
        %2686 = vmatpush1.bf16.msra.mxu0 %v2678
        %2687 = vmatprep.subr.bf16.mxu0 0
        %2688 = vmatpush1.bf16.msra.mxu0 %v2679
        %2689 = vmatprep.subr.bf16.mxu0 0
        %2690 = vmatpush1.bf16.msra.mxu0 0
        %2691 = vmatprep.subr.bf16.mxu0 0
        %2692 = vmatpush1.bf16.msra.mxu0 0
        %2693 = vmatprep.subr.bf16.mxu0 0
        %2694 = vmatpush1.bf16.msra.mxu0 0
        %2695 = vmatprep.subr.bf16.mxu0 0
        %2696 = vmatpush1.bf16.msra.mxu0 0
        %2697 = vmatprep.subr.bf16.mxu0 0
        %2698 = vmatpush1.bf16.msra.mxu0 0
        %2699 = vmatprep.subr.bf16.mxu0 0
        %2700 = vmatpush1.bf16.msra.mxu0 0
        %2701 = vmatprep.subr.bf16.mxu0 0
        %2702 = vmatpush1.bf16.msra.mxu0 0
        %2703 = vmatprep.subr.bf16.mxu0 0
        %2704 = vmatpush1.bf16.msra.mxu0 0
        %2705 = vmatprep.subr.bf16.mxu0 0
        %2706 = vmatpush1.bf16.msra.mxu0 0
        %2707 = vmatprep.subr.bf16.mxu0 0
        %2708 = vmatpush1.bf16.msra.mxu0 0
        %2709 = vmatprep.subr.bf16.mxu0 0
        %2710 = vmatpush1.bf16.msra.mxu0 0
        %2711 = vmatprep.subr.bf16.mxu0 0
        %2712 = vmatpush1.bf16.msra.mxu0 0
        %2713 = vmatprep.subr.bf16.mxu0 0
        %2714 = vmatpush1.bf16.msra.mxu0 0
        %2715 = vmatprep.subr.bf16.mxu0 0
        %2716 = vmatpush1.bf16.msra.mxu0 0
        %2717 = vmatprep.mubr.bf16.mxu0 0
        %2718 = vmatmul.mubr.bf16.gmra.mrb[0].mxu0 %v2683
        %v2719 = vpop.f32.mrb[0].mxu0
        %v2720 = vadd.f32 %v2668, %v2719
        %v2721 = vpop.f32.mrb[0].mxu0
        %v2722 = vpop.f32.mrb[0].mxu0
        %v2723 = vadd.f32 %v2668, %v2722
        %v2724 = vpop.f32.mrb[0].mxu0
        %2725 = vdwg.mxu0
        %v2726 = vmul.f32 %v2720, %v2720
        %v2727 = vmul.f32 %v2723, %v2723
        %v2728 = vmul.f32 %v2720, %v2726
        %v2729 = vmul.f32 %v2723, %v2727
        %v2730 = vmul.f32 %v2728, 0.044715
        %v2731 = vmul.f32 %v2729, 0.044715
        %v2732 = vadd.f32 %v2720, %v2730
        %v2733 = vadd.f32 %v2723, %v2731
        %v2734 = vmul.f32 %v2732, 0.7978846
        %v2735 = vmul.f32 %v2733, 0.7978846
        %v2736 = vtanh.pop %v2734
        %v2737 = vtanh.pop %v2735
        %v2738 = vadd.f32 %v2736, 1.0
        %v2739 = vadd.f32 %v2737, 1.0
        %v2740 = vmul.f32 %v2738, 0.5
        %v2741 = vmul.f32 %v2739, 0.5
        %v2742 = vmul.f32 %v2720, %v2740
        %v2743 = vmul.f32 %v2723, %v2741
        %v2744 = vld [vmem:[%s886] sm:$0x1]
        %v2745 = vld [vmem:[%s889] sm:$0x1]
        %vm2746 = vcmask 523264
        %v2747 = vsel %vm2746, %v2742, 0.0
        %2748 = vadd.xlane.f32.xlu0 %v2747
        %v2749 = vpop.xlane.xlu0 %2748
        %v2750 = vsel %vm2746, %v2743, 0.0
        %2751 = vadd.xlane.f32.xlu0 %v2750
        %v2752 = vpop.xlane.xlu0 %2751
        %v2753 = vrcp.pop 64.0
        %v2754 = vmul.f32 %v2749, %v2753
        %v2755 = vmul.f32 %v2752, %v2753
        %v2756 = vsub.f32 %v2742, %v2754
        %v2757 = vsub.f32 %v2743, %v2755
        %v2758 = vmul.f32 %v2756, %v2756
        %v2759 = vmul.f32 %v2757, %v2757
        %v2760 = vsel %vm2746, %v2758, 0.0
        %2761 = vadd.xlane.f32.xlu0 %v2760
        %v2762 = vpop.xlane.xlu0 %2761
        %v2763 = vsel %vm2746, %v2759, 0.0
        %2764 = vadd.xlane.f32.xlu0 %v2763
        %v2765 = vpop.xlane.xlu0 %2764
        %v2766 = vmul.f32 %v2762, %v2753
        %v2767 = vmul.f32 %v2765, %v2753
        %v2768 = vadd.f32 %v2766, 1e-05
        %v2769 = vadd.f32 %v2767, 1e-05
        %v2770 = vrsqrt.pop %v2768
        %v2771 = vrsqrt.pop %v2769
        %v2772 = vmul.f32 %v2756, %v2770
        %v2773 = vmul.f32 %v2757, %v2771
        %v2775 = vlaneseq
        %v2776 = vshrl.u32 %v2775, 7
        %v2777 = vsub.s32 0, %v2776
        %v2778 = vrot.slane %v2744, %v2777
        %v2780 = vmul.f32 %v2772, %v2778
        %v2781 = vmul.f32 %v2773, %v2778
        %v2783 = vlaneseq
        %v2784 = vshrl.u32 %v2783, 7
        %v2785 = vsub.s32 0, %v2784
        %v2786 = vrot.slane %v2745, %v2785
        %v2788 = vadd.f32 %v2780, %v2786
        %v2789 = vadd.f32 %v2781, %v2786
        %v2790 = vpack.c.bf16 %v2789, %v2788
        %v2791 = vld [vmem:[%s894] sm:$0xf]
        %v2792 = vld [vmem:[%s894 + $0x4] sm:$0xf]
        %v2793 = vld [vmem:[%s894 + $0x8] sm:$0xf]
        %v2794 = vld [vmem:[%s894 + $0xc] sm:$0xf]
        %v2795 = vld [vmem:[%s894 + $0x10] sm:$0xf]
        %v2796 = vld [vmem:[%s894 + $0x14] sm:$0xf]
        %v2797 = vld [vmem:[%s894 + $0x18] sm:$0xf]
        %v2798 = vld [vmem:[%s894 + $0x1c] sm:$0xf]
        %v2799 = vld [vmem:[%s897] sm:$0x1]
        %v2801 = vlaneseq
        %v2802 = vshrl.u32 %v2801, 7
        %v2803 = vsub.s32 0, %v2802
        %v2804 = vrot.slane %v2799, %v2803
        %v2814 = vunpack.c.l.b16 %v2791
        %v2815 = vunpack.c.l.b16 %v2792
        %v2816 = vunpack.c.l.b16 %v2793
        %v2817 = vunpack.c.l.b16 %v2794
        %v2818 = vunpack.c.l.b16 %v2795
        %v2819 = vunpack.c.l.b16 %v2796
        %v2820 = vunpack.c.l.b16 %v2797
        %v2821 = vunpack.c.l.b16 %v2798
        %v2822 = vpack.c.b16 %v2815, %v2814
        %v2823 = vpack.c.b16 %v2817, %v2816
        %v2824 = vpack.c.b16 %v2819, %v2818
        %v2825 = vpack.c.b16 %v2821, %v2820
        %v2831 = vsel %vm2746, %v2790, 0
        %2833 = vmatprep.subr.bf16.mxu0 0
        %2834 = vmatpush1.bf16.msra.mxu0 %v2822
        %2835 = vmatprep.subr.bf16.mxu0 0
        %2836 = vmatpush1.bf16.msra.mxu0 %v2823
        %2837 = vmatprep.subr.bf16.mxu0 0
        %2838 = vmatpush1.bf16.msra.mxu0 %v2824
        %2839 = vmatprep.subr.bf16.mxu0 0
        %2840 = vmatpush1.bf16.msra.mxu0 %v2825
        %2841 = vmatprep.subr.bf16.mxu0 0
        %2842 = vmatpush1.bf16.msra.mxu0 0
        %2843 = vmatprep.subr.bf16.mxu0 0
        %2844 = vmatpush1.bf16.msra.mxu0 0
        %2845 = vmatprep.subr.bf16.mxu0 0
        %2846 = vmatpush1.bf16.msra.mxu0 0
        %2847 = vmatprep.subr.bf16.mxu0 0
        %2848 = vmatpush1.bf16.msra.mxu0 0
        %2849 = vmatprep.subr.bf16.mxu0 0
        %2850 = vmatpush1.bf16.msra.mxu0 0
        %2851 = vmatprep.subr.bf16.mxu0 0
        %2852 = vmatpush1.bf16.msra.mxu0 0
        %2853 = vmatprep.subr.bf16.mxu0 0
        %2854 = vmatpush1.bf16.msra.mxu0 0
        %2855 = vmatprep.subr.bf16.mxu0 0
        %2856 = vmatpush1.bf16.msra.mxu0 0
        %2857 = vmatprep.subr.bf16.mxu0 0
        %2858 = vmatpush1.bf16.msra.mxu0 0
        %2859 = vmatprep.subr.bf16.mxu0 0
        %2860 = vmatpush1.bf16.msra.mxu0 0
        %2861 = vmatprep.subr.bf16.mxu0 0
        %2862 = vmatpush1.bf16.msra.mxu0 0
        %2863 = vmatprep.subr.bf16.mxu0 0
        %2864 = vmatpush1.bf16.msra.mxu0 0
        %2865 = vmatprep.mubr.bf16.mxu0 0
        %2866 = vmatmul.mubr.bf16.gmra.mrb[0].mxu0 %v2831
        %v2867 = vpop.f32.mrb[0].mxu0
        %v2868 = vadd.f32 %v2804, %v2867
        %v2869 = vpop.f32.mrb[0].mxu0
        %v2870 = vpop.f32.mrb[0].mxu0
        %v2871 = vadd.f32 %v2804, %v2870
        %v2872 = vpop.f32.mrb[0].mxu0
        %2873 = vdwg.mxu0
        %v2874 = vadd.f32 %v2612, %v2868
        %v2875 = vadd.f32 %v2613, %v2871
        %2876 = vst.msk [vmem:[#allocation2] sm:$0xff] %vm1022, %v2874
        %2877 = vst.msk [vmem:[#allocation2 + $0x8] sm:$0xff] %vm1022, %v2875
        %p2878 = scmp.eq.s32.totalorder %s34, 1
        // Predicated region
        $region113: #{tpu_custom_call.1} parent=107 // pred_check
          %p2879 = pneg %p2878
        $region114: #{tpu_custom_call.1} parent=107 // pred_check_branch
          %2881 = sbr.rel (%p2879) target = $region116
        $region115: #{tpu_custom_call.1} parent=107 // pred_region
          %v2882 = vld [vmem:[%s19] sm:$0x1]
          %v2883 = vld [vmem:[%s20] sm:$0x1]
          %vm2884 = vcmask 253952
          %v2885 = vsel %vm2884, %v2874, 0.0
          %2886 = vadd.xlane.f32.xlu0 %v2885
          %v2887 = vpop.xlane.xlu0 %2886
          %v2888 = vmul.f32 %v2887, %v1029
          %v2889 = vsub.f32 %v2874, %v2888
          %v2890 = vmul.f32 %v2889, %v2889
          %v2891 = vsel %vm2884, %v2890, 0.0
          %2892 = vadd.xlane.f32.xlu0 %v2891
          %v2893 = vpop.xlane.xlu0 %2892
          %v2894 = vmul.f32 %v2893, %v1029
          %v2895 = vadd.f32 %v2894, 1e-05
          %v2896 = vrsqrt.pop %v2895
          %v2897 = vmul.f32 %v2889, %v2896
          %v2898 = vmul.f32 %v2897, %v2882
          %v2899 = vadd.f32 %v2898, %v2883
          %v2900 = vmul.f32 %v2899, %v2899
          %v2901 = vsel %vm2884, %v2900, 0.0
          %2902 = vadd.xlane.f32.xlu0 %v2901
          %v2903 = vpop.xlane.xlu0 %2902
          %v2904 = vmax.f32 %v2903, 1e-24
          %v2905 = vrsqrt.pop %v2904
          %v2906 = vmul.f32 %v2899, %v2905
          %2907 = vst.msk [vmem:[#allocation4] sm:$0x1] %vm2884, %v2906
          %v2908 = vld [vmem:[%s19] sm:$0x1]
          %v2909 = vld [vmem:[%s20] sm:$0x1]
          %v2910 = vsel %vm2884, %v2875, 0.0
          %2911 = vadd.xlane.f32.xlu0 %v2910
          %v2912 = vpop.xlane.xlu0 %2911
          %v2913 = vmul.f32 %v2912, %v1029
          %v2914 = vsub.f32 %v2875, %v2913
          %v2915 = vmul.f32 %v2914, %v2914
          %v2916 = vsel %vm2884, %v2915, 0.0
          %2917 = vadd.xlane.f32.xlu0 %v2916
          %v2918 = vpop.xlane.xlu0 %2917
          %v2919 = vmul.f32 %v2918, %v1029
          %v2920 = vadd.f32 %v2919, 1e-05
          %v2921 = vrsqrt.pop %v2920
          %v2922 = vmul.f32 %v2914, %v2921
          %v2923 = vmul.f32 %v2922, %v2908
          %v2924 = vadd.f32 %v2923, %v2909
          %v2925 = vmul.f32 %v2924, %v2924
          %v2926 = vsel %vm2884, %v2925, 0.0
          %2927 = vadd.xlane.f32.xlu0 %v2926
          %v2928 = vpop.xlane.xlu0 %2927
          %v2929 = vmax.f32 %v2928, 1e-24
          %v2930 = vrsqrt.pop %v2929
          %v2931 = vmul.f32 %v2924, %v2930
          %2932 = vst.msk [vmem:[#allocation4 + $0x1] sm:$0x1] %vm2884, %v2931
        $region116: #{tpu_custom_call.1} parent=107 // pred_fallthru
          _
        // Predicated region
        $region117: #{tpu_custom_call.1} parent=107 // pred_check
          %p2933 = pneg %p589
        $region118: #{tpu_custom_call.1} parent=107 // pred_check_branch
          %2935 = sbr.rel (%p2933) target = $region120
        $region119: #{tpu_custom_call.1} parent=107 // pred_region
          %s2937 = ssub.s32 32, 32
          %2938 = vsyncadd [#allocation5], %s2937
          %s2940 = sshll.u32 [#allocation4], 4
          %s2941 = int_to_ptr.vmem [resolvable:$true] %s2940
          %2943 = dma.vmem_to_hbm [thread:$0]  %s2941, 32, %s22, [#allocation5]
        $region120: #{tpu_custom_call.1} parent=107 // pred_fallthru
          _
        // Predicated region
        $region121: #{tpu_custom_call.1} parent=107 // pred_check
          %p2944 = pneg %p589
        $region122: #{tpu_custom_call.1} parent=107 // pred_check_branch
          %2946 = sbr.rel (%p2944) target = $region124
        $region123: #{tpu_custom_call.1} parent=107 // pred_region
          %2947 = dma.done [#allocation5], 32
        $region124: #{tpu_custom_call.1} parent=107 // pred_fallthru
          _
      $region108: #{tpu_custom_call.1} parent=5 // pred_fallthru
        _
      %p2948 = scmp.le.s32.totalorder 2, %s29
      // Predicated region
      $region125: #{tpu_custom_call.1} parent=5 // pred_check
        %p2949 = pneg %p2948
      $region126: #{tpu_custom_call.1} parent=5 // pred_check_branch
        %2951 = sbr.rel (%p2949) target = $region128
      $region127: #{tpu_custom_call.1} parent=5 // pred_region
        %s2952 = ssub.s32 %s29, 2
      $region128: #{tpu_custom_call.1} parent=5 // pred_fallthru
        _
    $region6: #{tpu_custom_call.1} parent=1 // loop_footer
      %s33 = sadd.s32 1, %s29
    $region7: #{tpu_custom_call.1} parent=1 // loop_footer_branch
      %28 = sbr.rel target = $region3
    $region8: #{tpu_custom_call.1} parent=1 // loop_exit
      _
    %2953 = vsyncpa [#allocation5], 1
    %s2954 = scalar_lea.sflag [#allocation5], 1
    %2955 = vsyncpa %s2954, 1

</llo_original>
